<compile_context>
chip_gen: v6e
topology: v6e:2x2x1
jax: 0.10.0
libtpu: 0.0.40
codegen_flags: <defaults>
</compile_context>

<pallas_src>
import functools
import math

import jax
import jax.numpy as jnp
from jax.experimental import pallas as pl
from jax.experimental.pallas import tpu as pltpu


# ----------------------------------------------------------------------------
# tiling / compiler-param helpers
# ----------------------------------------------------------------------------
def _tile(dim, target, unit):
    """Full dim if small; else the largest multiple of `unit` <= target dividing dim;
    else `target` rounded down to `unit` (edge tiles handled by Pallas masking)."""
    if dim <= target:
        return dim
    best = (target // unit) * unit
    t = best
    while t >= unit:
        if dim % t == 0:
            return t
        t -= unit
    return best


_VMEM_CAP_CACHE = []


def _vmem_cap():
    """~85% of the physical per-core VMEM (generation-aware; safe fallback = 64 MiB)."""
    if not _VMEM_CAP_CACHE:
        cap = 64 * 2**20
        try:
            info = pltpu.get_tpu_info()
            for attr in ("vmem_capacity_bytes", "vmem_bytes", "vmem_size_bytes"):
                v = getattr(info, attr, None)
                if v:
                    cap = int(v)
                    break
        except Exception:
            pass
        _VMEM_CAP_CACHE.append(int(cap * 0.85))
    return _VMEM_CAP_CACHE[0]


def _mosaic(semantics, block_bytes):
    """CompilerParams with a scoped-VMEM limit: 2x blocks (double buffering) + slack, capped
    at ~85% of this generation's physical VMEM (v7x-safe)."""
    need = 2 * int(block_bytes) + (8 << 20)
    limit = int(min(_vmem_cap(), max(32 << 20, need)))
    return pltpu.CompilerParams(dimension_semantics=semantics, vmem_limit_bytes=limit)


# ----------------------------------------------------------------------------
# fused LayerNorm -> matmul -> activation -> residual -> LayerNorm kernel
# ----------------------------------------------------------------------------
def _make_fused_linear_kernel(has_ln, act, has_gate, has_res, res_scale, has_out_ln, eps):
    def kernel(*refs):
        i = 0
        x_ref = refs[i]; i += 1
        if has_ln:
            g_ref, be_ref = refs[i], refs[i + 1]; i += 2
        w_ref, b_ref = refs[i], refs[i + 1]; i += 2
        if has_gate:
            wg_ref, bg_ref = refs[i], refs[i + 1]; i += 2
        if has_res:
            r_ref = refs[i]; i += 1
        if has_out_ln:
            og_ref, ob_ref = refs[i], refs[i + 1]; i += 2
        o_ref = refs[i]

        xin = x_ref[...]
        if has_ln:                                           # fused LayerNorm prologue (f32)
            x = xin.astype(jnp.float32)
            mean = jnp.mean(x, axis=-1, keepdims=True)
            xc = x - mean
            var = jnp.mean(xc * xc, axis=-1, keepdims=True)
            x = xc * jax.lax.rsqrt(var + eps) * g_ref[...] + be_ref[...]
            xb = x.astype(jnp.bfloat16)
        else:
            xb = xin.astype(jnp.bfloat16)                    # bf16 MXU input, f32 accumulate
        y = jnp.dot(xb, w_ref[...], preferred_element_type=jnp.float32) + b_ref[...]
        if has_gate:                                         # GLU: value * sigmoid(gate)
            g = jnp.dot(xb, wg_ref[...], preferred_element_type=jnp.float32) + bg_ref[...]
            y = y * jax.nn.sigmoid(g)
        elif act == "swish":
            y = y * jax.nn.sigmoid(y)
        if has_res:                                          # fused residual epilogue (f32)
            y = r_ref[...] + res_scale * y
        if has_out_ln:                                       # fused per-layer final LayerNorm
            mean = jnp.mean(y, axis=-1, keepdims=True)
            yc = y - mean
            var = jnp.mean(yc * yc, axis=-1, keepdims=True)
            y = yc * jax.lax.rsqrt(var + eps) * og_ref[...] + ob_ref[...]
        o_ref[...] = y.astype(o_ref.dtype)

    return kernel


def fused_linear(x, w, b, *, ln=None, act=None, gate=None, residual=None, res_scale=1.0,
                 out_ln=None, out_dtype=jnp.float32):
    """y = [out_LN(] [residual + res_scale *] act((LN(x) if ln else x) @ w + b) [)];
    GLU when `gate` is given.  out_ln requires the whole feature row resident (tn == N)."""
    M, K = x.shape
    N = w.shape[1]
    tm = _tile(M, 512, 8)
    tn = N if out_ln is not None else _tile(N, 1024, 128)
    grid = (pl.cdiv(M, tm), pl.cdiv(N, tn))

    in_specs = [pl.BlockSpec((tm, K), lambda i, j: (i, 0))]
    args = [x]
    if ln is not None:
        gma, bta = ln
        in_specs += [pl.BlockSpec((1, K), lambda i, j: (0, 0)),
                     pl.BlockSpec((1, K), lambda i, j: (0, 0))]
        args += [gma.reshape(1, K), bta.reshape(1, K)]
    in_specs += [pl.BlockSpec((K, tn), lambda i, j: (0, j)),
                 pl.BlockSpec((1, tn), lambda i, j: (0, j))]
    args += [w, b.reshape(1, N)]
    if gate is not None:
        wg, bg = gate
        in_specs += [pl.BlockSpec((K, tn), lambda i, j: (0, j)),
                     pl.BlockSpec((1, tn), lambda i, j: (0, j))]
        args += [wg, bg.reshape(1, N)]
    if residual is not None:
        in_specs.append(pl.BlockSpec((tm, tn), lambda i, j: (i, j)))
        args.append(residual)
    if out_ln is not None:
        og, ob = out_ln
        in_specs += [pl.BlockSpec((1, tn), lambda i, j: (0, j)),
                     pl.BlockSpec((1, tn), lambda i, j: (0, j))]
        args += [og.reshape(1, N), ob.reshape(1, N)]

    xsz = x.dtype.itemsize
    osz = jnp.dtype(out_dtype).itemsize
    n_mm = 2 if gate is not None else 1
    flops = int(2 * M * K * N * n_mm)
    transcend = int(M * N) if (act == "swish" or gate is not None) else 0
    bytes_acc = int(M * K * xsz + K * N * 2 * n_mm + M * N * osz
                    + (M * N * 4 if residual is not None else 0))
    blocks = (tm * K * xsz + n_mm * (K * tn * 2 + tn * 4) + tm * tn * osz
              + (tm * tn * 4 if residual is not None else 0)
              + (2 * K * 4 if ln is not None else 0)
              + (2 * N * 4 if out_ln is not None else 0)
              + tm * max(K, tn) * 4)                         # in-kernel f32 temporaries

    kernel = _make_fused_linear_kernel(ln is not None, act, gate is not None,
                                       residual is not None, res_scale,
                                       out_ln is not None, 1e-12)
    return pl.pallas_call(
        kernel,
        out_shape=jax.ShapeDtypeStruct((M, N), out_dtype),
        grid=grid,
        in_specs=in_specs,
        out_specs=pl.BlockSpec((tm, tn), lambda i, j: (i, j)),
        compiler_params=_mosaic(("parallel", "parallel"), blocks),
        cost_estimate=pl.CostEstimate(flops=flops, transcendentals=transcend,
                                      bytes_accessed=bytes_acc),
    )(*args)


# ----------------------------------------------------------------------------
# standalone LayerNorm (only for the encoder's after_norm), M-tiled
# ----------------------------------------------------------------------------
def _layernorm_kernel(eps, x_ref, g_ref, b_ref, o_ref):
    x = x_ref[...].astype(jnp.float32)
    mean = jnp.mean(x, axis=-1, keepdims=True)
    xc = x - mean
    var = jnp.mean(xc * xc, axis=-1, keepdims=True)
    o_ref[...] = xc * jax.lax.rsqrt(var + eps) * g_ref[...] + b_ref[...]


def layernorm(x, gamma, beta, eps=1e-12):                    # ESPnet LayerNorm eps=1e-12
    M, D = x.shape
    tm = _tile(M, 512, 8)
    blocks = (tm * D * x.dtype.itemsize + 2 * D * 4 + 2 * tm * D * 4)
    return pl.pallas_call(
        functools.partial(_layernorm_kernel, eps),
        out_shape=jax.ShapeDtypeStruct((M, D), jnp.float32),
        grid=(pl.cdiv(M, tm),),
        in_specs=[pl.BlockSpec((tm, D), lambda i: (i, 0)),
                  pl.BlockSpec((1, D), lambda i: (0, 0)),
                  pl.BlockSpec((1, D), lambda i: (0, 0))],
        out_specs=pl.BlockSpec((tm, D), lambda i: (i, 0)),
        compiler_params=_mosaic(("parallel",), blocks),
        cost_estimate=pl.CostEstimate(flops=int(6 * M * D), transcendentals=int(M),
                                      bytes_accessed=int(8 * M * D)),
    )(x, gamma.reshape(1, D), beta.reshape(1, D))


# ----------------------------------------------------------------------------
# fused relative-position MHA core: all heads of one batch row per grid step
# (reads the fused qkv tensor directly, slices q/k/v in-VMEM; bd term is bf16)
# ----------------------------------------------------------------------------
def _make_attn_kernel(H, dk, D, scale):
    def kernel(qkv_ref, bu_ref, bd_ref, m_ref, o_ref):
        x = qkv_ref[0]                                       # (T, 3D) bf16, in-VMEM slices
        q = x[:, 0:D].astype(jnp.float32)
        k = x[:, D:2 * D].astype(jnp.bfloat16)
        v = x[:, 2 * D:3 * D].astype(jnp.bfloat16)
        qu = ((q + bu_ref[...]) * scale).astype(jnp.bfloat16)  # fold q+bias_u and 1/sqrt(dk)
        m = m_ref[0]                                         # (1, T) key-validity mask
        outs = []
        for h in range(H):                                   # static loop over heads (in-VMEM)
            sl = slice(h * dk, (h + 1) * dk)
            ac = jax.lax.dot_general(qu[:, sl], k[:, sl], (((1,), (1,)), ((), ())),
                                     preferred_element_type=jnp.float32)       # (T, T)
            s = ac + bd_ref[0, h].astype(jnp.float32)        # bd already scaled on host side
            s = jnp.where(m > 0, s, jnp.float32(-1e30))
            mx = jnp.max(s, axis=-1, keepdims=True)
            p = jnp.exp(s - mx)
            denom = jnp.sum(p, axis=-1, keepdims=True)
            attn = p * pl.reciprocal(denom, approx=True) * m  # softmax then masked_fill(0)
            outs.append(jnp.dot(attn.astype(jnp.bfloat16), v[:, sl],
                                preferred_element_type=jnp.float32))
        o_ref[0] = jnp.concatenate(outs, axis=-1).astype(o_ref.dtype)  # lane-dense (T, D) store

    return kernel


def rel_mha_core(qkv3, pos_bias_u, bd_shifted, mask3, H, scale):
    B, T, D3 = qkv3.shape
    D = D3 // 3
    dk = D // H
    blocks = (T * D3 * qkv3.dtype.itemsize + D * 4
              + H * T * T * bd_shifted.dtype.itemsize + T * 4 + T * D * 2
              + 6 * T * T * 4 + 2 * T * D * 4)               # in-kernel f32 temporaries
    flops = int(4 * B * H * T * T * dk)
    bytes_acc = int(B * T * D3 * 2 + B * H * T * T * 2 + B * T * D * 2 + B * T * 4)
    return pl.pallas_call(
        _make_attn_kernel(H, dk, D, scale),
        out_shape=jax.ShapeDtypeStruct((B, T, D), jnp.bfloat16),
        grid=(B,),
        in_specs=[pl.BlockSpec((1, T, D3), lambda b: (b, 0, 0)),
                  pl.BlockSpec((1, D), lambda b: (0, 0)),
                  pl.BlockSpec((1, H, T, T), lambda b: (b, 0, 0, 0)),
                  pl.BlockSpec((1, 1, T), lambda b: (b, 0, 0))],
        out_specs=pl.BlockSpec((1, T, D), lambda b: (b, 0, 0)),
        compiler_params=_mosaic(("parallel",), blocks),
        cost_estimate=pl.CostEstimate(flops=flops, transcendentals=int(B * H * T * T),
                                      bytes_accessed=bytes_acc),
    )(qkv3, pos_bias_u, bd_shifted, mask3)


# ----------------------------------------------------------------------------
# depthwise Conv1d + BatchNorm(eval) + Swish (halo built in-VMEM, no HBM pad pass)
# ----------------------------------------------------------------------------
def _dwconv_kernel(K, T, pad, x_ref, w_ref, scale_ref, shift_ref, o_ref):
    x = x_ref[0].astype(jnp.float32)                   # (T, C) unpadded input
    C = x.shape[1]
    zpad = jnp.zeros((pad, C), jnp.float32)
    xp = jnp.concatenate([zpad, x, zpad], axis=0)      # (T + 2*pad, C), VMEM only
    w = w_ref[...]                                     # (K, C) depthwise taps
    acc = xp[0:T, :] * w[0:1, :]
    for k in range(1, K):                              # static unroll over taps (cross-corr)
        # TODO(synk): replace per-tap shifted slices with pltpu.roll(+ iota mask) to keep the
        #             shifts on the XLU slot; kept as slices for lowering robustness.
        acc = acc + xp[k:k + T, :] * w[k:k + 1, :]
    y = acc * scale_ref[...] + shift_ref[...]          # conv bias + BatchNorm(eval) folded
    o_ref[0] = (y * jax.nn.sigmoid(y)).astype(o_ref.dtype)   # Swish, bf16 store


def depthwise_conv_bn_swish(x, w, scale, shift):
    B, T, C = x.shape
    K = w.shape[0]
    pad = (K - 1) // 2
    blocks = (T * C * x.dtype.itemsize + K * C * 4 + 2 * C * 4 + T * C * 2
              + 2 * (T + 2 * pad) * C * 4)
    return pl.pallas_call(
        functools.partial(_dwconv_kernel, K, T, pad),
        out_shape=jax.ShapeDtypeStruct((B, T, C), jnp.bfloat16),
        grid=(B,),
        in_specs=[pl.BlockSpec((1, T, C), lambda b: (b, 0, 0)),
                  pl.BlockSpec((K, C), lambda b: (0, 0)),
                  pl.BlockSpec((1, C), lambda b: (0, 0)),
                  pl.BlockSpec((1, C), lambda b: (0, 0))],
        out_specs=pl.BlockSpec((1, T, C), lambda b: (b, 0, 0)),
        compiler_params=_mosaic(("parallel",), blocks),
        cost_estimate=pl.CostEstimate(flops=int(2 * B * T * C * K), transcendentals=int(B * T * C),
                                      bytes_accessed=int(B * T * C * 4 + K * C * 4)),
    )(x, w, scale.reshape(1, C), shift.reshape(1, C))


# ----------------------------------------------------------------------------
# plain-JAX glue (positional encoding, legacy rel_shift, layer orchestration)
# ----------------------------------------------------------------------------
def _sinusoidal_pe(T, d):
    pos = jnp.arange(T, dtype=jnp.float32)[:, None]
    div = jnp.exp(jnp.arange(0, d, 2, dtype=jnp.float32) * -(math.log(10000.0) / d))
    pe = jnp.zeros((T, d), jnp.float32)
    pe = pe.at[:, 0::2].set(jnp.sin(pos * div))
    pe = pe.at[:, 1::2].set(jnp.cos(pos * div))
    return pe


def _rel_shift(x):
    """Legacy ESPnet rel_shift on (B, H, T, T)."""
    B, H, T, Tp = x.shape
    zero_pad = jnp.zeros((B, H, T, 1), x.dtype)
    xpad = jnp.concatenate([zero_pad, x], axis=-1)           # (B,H,T,Tp+1)
    xpad = xpad.reshape(B, H, Tp + 1, T)
    return xpad[:, :, 1:, :].reshape(B, H, T, Tp)


def encoder_layer(hf, B, T, pos_emb, mask3, lp):
    M, D = hf.shape
    H = lp["pos_bias_v"].shape[0]
    dk = D // H
    scale = 1.0 / math.sqrt(dk)

    # --- macaron feed-forward: h += 0.5 * W2(Swish(W1(LN(h)))) ---
    y = fused_linear(hf, lp["ffm_w1"], lp["ffm_b1"],
                     ln=(lp["norm_ff_mac_g"], lp["norm_ff_mac_b"]),
                     act="swish", out_dtype=jnp.bfloat16)
    hf = fused_linear(y, lp["ffm_w2"], lp["ffm_b2"], residual=hf, res_scale=0.5)

    # --- relative-position MHA: h += Wo(RelAttn(LN(h), pos_emb, mask)) ---
    qkv = fused_linear(hf, lp["wqkv"], lp["bqkv"],
                       ln=(lp["norm_mha_g"], lp["norm_mha_b"]),
                       out_dtype=jnp.bfloat16)               # (M, 3D) bf16, no q/k/v slices

    # positional term bd + legacy rel_shift (bf16; 1/sqrt(dk) pre-folded into wpos)
    # TODO(synk): move bd + rel_shift in-kernel (strided pltpu.roll) to drop this HBM tensor.
    p_proj = jnp.dot(pos_emb, lp["wpos"]).reshape(T, H, dk)
    q_v = qkv[:, :D].astype(jnp.float32).reshape(B, T, H, dk) + lp["pos_bias_v"][None, None]
    bd = jnp.einsum("bthd,shd->bhts", q_v.astype(jnp.bfloat16), p_proj.astype(jnp.bfloat16),
                    preferred_element_type=jnp.float32)
    bd = _rel_shift(bd).astype(jnp.bfloat16)

    att = rel_mha_core(qkv.reshape(B, T, 3 * D), lp["pos_bias_u"], bd, mask3, H, scale)
    hf = fused_linear(att.reshape(M, D), lp["wo"], lp["bo"], residual=hf)

    # --- convolution module: h += PW2(Swish(BN(DWConv(GLU(PW1(LN(h))))))) ---
    y = fused_linear(hf, lp["pw1_wa"], lp["pw1_ba"],
                     ln=(lp["norm_conv_g"], lp["norm_conv_b"]),
                     gate=(lp["pw1_wg"], lp["pw1_bg"]), out_dtype=jnp.bfloat16)
    y = depthwise_conv_bn_swish(y.reshape(B, T, D), lp["dw_w"], lp["bn_scale"], lp["bn_shift"])
    hf = fused_linear(y.reshape(M, D), lp["pw2_w"], lp["pw2_b"], residual=hf)

    # --- feed-forward + fused per-layer final LayerNorm ---
    y = fused_linear(hf, lp["ff_w1"], lp["ff_b1"],
                     ln=(lp["norm_ff_g"], lp["norm_ff_b"]), act="swish",
                     out_dtype=jnp.bfloat16)
    hf = fused_linear(y, lp["ff_w2"], lp["ff_b2"], residual=hf, res_scale=0.5,
                      out_ln=(lp["norm_final_g"], lp["norm_final_b"]))
    return hf


def conformer_forward(params, x, lengths):
    B, T, idim = x.shape
    adim = params["after_norm_g"].shape[0]

    # make_non_pad_mask(lengths).unsqueeze(-2): valid-frame mask
    mask = (jnp.arange(T)[None, :] < lengths[:, None]).astype(jnp.float32)   # (B, T)
    mask3 = mask[:, None, :]                                                 # (B, 1, T)

    # input layer 'vanilla_linear' (+ x*sqrt(adim) folded into the embed weights)
    hf = fused_linear(x.reshape(B * T, idim), params["embed_w"], params["embed_b"])
    pos_emb = _sinusoidal_pe(T, adim)                                        # (T, adim)

    for lp in params["layers"]:
        hf = encoder_layer(hf, B, T, pos_emb, mask3, lp)

    hf = layernorm(hf, params["after_norm_g"], params["after_norm_b"])       # after_norm
    return hf.reshape(B, T, adim), (mask > 0)[:, :, None]    # (x, mask.squeeze().unsqueeze(-1))


# ----------------------------------------------------------------------------
# parameter construction (PyTorch-structured) + one-time layout/dtype preparation
# ----------------------------------------------------------------------------
def init_params(key, idim, adim, aheads, eunits, elayers, cnn_kernel):
    dk = adim // aheads
    keys = iter(jax.random.split(key, 4 + elayers * 16))

    def dense(shape, scale=0.05):
        return scale * jax.random.normal(next(keys), shape, dtype=jnp.float32)

    zeros = lambda n: jnp.zeros((n,), jnp.float32)
    ones = lambda n: jnp.ones((n,), jnp.float32)

    params = {
        "embed_w": dense((idim, adim)), "embed_b": zeros(adim),
        "after_norm_g": ones(adim), "after_norm_b": zeros(adim),
        "layers": [],
    }
    for _ in range(elayers):
        lp = {
            "ffm_w1": dense((adim, eunits)), "ffm_b1": zeros(eunits),
            "ffm_w2": dense((eunits, adim)), "ffm_b2": zeros(adim),
            "ff_w1": dense((adim, eunits)), "ff_b1": zeros(eunits),
            "ff_w2": dense((eunits, adim)), "ff_b2": zeros(adim),
            "wq": dense((adim, adim)), "bq": zeros(adim),
            "wk": dense((adim, adim)), "bk": zeros(adim),
            "wv": dense((adim, adim)), "bv": zeros(adim),
            "wo": dense((adim, adim)), "bo": zeros(adim),
            "wpos": dense((adim, adim)),
            "pos_bias_u": dense((aheads, dk)), "pos_bias_v": dense((aheads, dk)),
            "pw1_w": dense((adim, 2 * adim)), "pw1_b": zeros(2 * adim),
            "dw_w": dense((cnn_kernel, adim)), "dw_b": zeros(adim),
            "bn_g": ones(adim), "bn_b": zeros(adim),
            "bn_mean": zeros(adim), "bn_var": ones(adim),
            "pw2_w": dense((adim, adim)), "pw2_b": zeros(adim),
            "norm_ff_mac_g": ones(adim), "norm_ff_mac_b": zeros(adim),
            "norm_mha_g": ones(adim), "norm_mha_b": zeros(adim),
            "norm_conv_g": ones(adim), "norm_conv_b": zeros(adim),
            "norm_ff_g": ones(adim), "norm_ff_b": zeros(adim),
            "norm_final_g": ones(adim), "norm_final_b": zeros(adim),
        }
        params["layers"].append(lp)
    return params


def prepare_params(params):
    """One-time conversion: bf16 weights, fused QKV, folded BN(eval) scale/shift, folded
    x*sqrt(adim) into the embed weights and folded 1/sqrt(dk) into linear_pos."""
    adim = params["embed_w"].shape[1]
    xscale = math.sqrt(float(adim))
    bf = lambda w: w.astype(jnp.bfloat16)

    out = {
        "embed_w": bf(params["embed_w"] * xscale),           # fold x * sqrt(adim) into embed
        "embed_b": params["embed_b"] * xscale,
        "after_norm_g": params["after_norm_g"], "after_norm_b": params["after_norm_b"],
        "layers": [],
    }
    for lp in params["layers"]:
        D = adim
        H = lp["pos_bias_u"].shape[0]
        dk = D // H
        bn_scale = lp["bn_g"] / jnp.sqrt(lp["bn_var"] + 1e-5)
        nl = {
            "ffm_w1": bf(lp["ffm_w1"]), "ffm_b1": lp["ffm_b1"],
            "ffm_w2": bf(lp["ffm_w2"]), "ffm_b2": lp["ffm_b2"],
            "ff_w1": bf(lp["ff_w1"]), "ff_b1": lp["ff_b1"],
            "ff_w2": bf(lp["ff_w2"]), "ff_b2": lp["ff_b2"],
            "wqkv": bf(jnp.concatenate([lp["wq"], lp["wk"], lp["wv"]], axis=1)),
            "bqkv": jnp.concatenate([lp["bq"], lp["bk"], lp["bv"]]),
            "wo": bf(lp["wo"]), "bo": lp["bo"],
            "wpos": lp["wpos"] * (1.0 / math.sqrt(dk)),      # fold 1/sqrt(dk) into linear_pos
            "pos_bias_u": lp["pos_bias_u"].reshape(1, D),
            "pos_bias_v": lp["pos_bias_v"],
            "pw1_wa": bf(lp["pw1_w"][:, :D]), "pw1_ba": lp["pw1_b"][:D],
            "pw1_wg": bf(lp["pw1_w"][:, D:]), "pw1_bg": lp["pw1_b"][D:],
            "dw_w": lp["dw_w"],
            "bn_scale": bn_scale,
            "bn_shift": (lp["dw_b"] - lp["bn_mean"]) * bn_scale + lp["bn_b"],
            "pw2_w": bf(lp["pw2_w"]), "pw2_b": lp["pw2_b"],
            "norm_ff_mac_g": lp["norm_ff_mac_g"], "norm_ff_mac_b": lp["norm_ff_mac_b"],
            "norm_mha_g": lp["norm_mha_g"], "norm_mha_b": lp["norm_mha_b"],
            "norm_conv_g": lp["norm_conv_g"], "norm_conv_b": lp["norm_conv_b"],
            "norm_ff_g": lp["norm_ff_g"], "norm_ff_b": lp["norm_ff_b"],
            "norm_final_g": lp["norm_final_g"], "norm_final_b": lp["norm_final_b"],
        }
        out["layers"].append(nl)
    return out


if __name__ == "__main__":
    # small shapes consistent with Conformer(idim, adim, aheads, elayers, eunits, cnn_module_kernel)
    idim, adim, aheads, eunits, elayers, cnn_kernel = 16, 32, 4, 64, 2, 7
    B, T = 2, 16

    key = jax.random.PRNGKey(0)
    kx, kp = jax.random.split(key)
    raw_params = init_params(kp, idim, adim, aheads, eunits, elayers, cnn_kernel)
    params = prepare_params(raw_params)
    x = jax.random.normal(kx, (B, T, idim), dtype=jnp.float32)
    lengths = jnp.array([T, T - 3], dtype=jnp.int32)

    fwd = jax.jit(conformer_forward)
    out, out_mask = fwd(params, x, lengths)
    jax.block_until_ready(out)

    assert out.shape == (B, T, adim)
    assert out_mask.shape == (B, T, 1)
    assert bool(jnp.all(jnp.isfinite(out)))
    print("KERNEL_OK")
</pallas_src>

<mosaic_0001>
module attributes {stable_mosaic.version = 11 : i64} {
  func.func @kernel(%arg0: i32, %arg1: i32, %arg2: memref<32x16xf32, #tpu.memory_space<vmem>>, %arg3: memref<16x32xbf16, #tpu.memory_space<vmem>>, %arg4: memref<1x32xf32, #tpu.memory_space<vmem>>, %arg5: memref<32x32xf32, #tpu.memory_space<vmem>>) attributes {dimension_semantics = [#tpu.dimension_semantics<parallel>, #tpu.dimension_semantics<parallel>], iteration_bounds = array<i64: 1, 1>, scalar_prefetch = 0 : i64, scratch_operands = 0 : i64, tpu.core_type = #tpu.core_type<tc>, window_params = [{transform_indices = @transform_0, window_bounds = array<i64: 32, 16>}, {transform_indices = @transform_1, window_bounds = array<i64: 16, 32>}, {transform_indices = @transform_2, window_bounds = array<i64: 1, 32>}, {transform_indices = @transform_3, window_bounds = array<i64: 32, 32>}]} {
    %c0 = arith.constant 0 : index
    %c0_0 = arith.constant 0 : index
    %0 = vector.load %arg2[%c0, %c0_0] : memref<32x16xf32, #tpu.memory_space<vmem>>, vector<32x16xf32>
    %1 = arith.truncf %0 : vector<32x16xf32> to vector<32x16xbf16>
    %c0_1 = arith.constant 0 : index
    %c0_2 = arith.constant 0 : index
    %2 = vector.load %arg3[%c0_1, %c0_2] : memref<16x32xbf16, #tpu.memory_space<vmem>>, vector<16x32xbf16>
    %cst = arith.constant dense<0.000000e+00> : vector<32x32xf32>
    %3 = tpu.matmul %1, %2, %cst {dimension_numbers = #tpu.dot_dimension_numbers<[1], [0], [0], [1], [0, 0, 1, 1], [], []>} : vector<32x16xbf16>, vector<16x32xbf16>, vector<32x32xf32> -> vector<32x32xf32>
    %c0_3 = arith.constant 0 : index
    %c0_4 = arith.constant 0 : index
    %4 = vector.load %arg4[%c0_3, %c0_4] : memref<1x32xf32, #tpu.memory_space<vmem>>, vector<1x32xf32>
    %5 = vector.broadcast %4 : vector<1x32xf32> to vector<32x32xf32>
    %6 = arith.addf %3, %5 : vector<32x32xf32>
    %c0_5 = arith.constant 0 : index
    %c0_6 = arith.constant 0 : index
    %7 = vector.load %arg5[%c0_5, %c0_6] : memref<32x32xf32, #tpu.memory_space<vmem>>, vector<32x32xf32>
    tpu.vector_store %arg5[%c0_5, %c0_6], %6 {strides = array<i32>} : memref<32x32xf32, #tpu.memory_space<vmem>>, vector<32x32xf32>,
    return
  }
  func.func @transform_0(%arg0: i32, %arg1: i32) -> (i32, i32) {
    %c0_i32 = arith.constant 0 : i32
    %c0_i32_0 = arith.constant 0 : i32
    return %arg0, %c0_i32 : i32, i32
  }
  func.func @transform_1(%arg0: i32, %arg1: i32) -> (i32, i32) {
    %c0_i32 = arith.constant 0 : i32
    %c0_i32_0 = arith.constant 0 : i32
    return %c0_i32, %arg1 : i32, i32
  }
  func.func @transform_2(%arg0: i32, %arg1: i32) -> (i32, i32) {
    %c0_i32 = arith.constant 0 : i32
    %c0_i32_0 = arith.constant 0 : i32
    return %c0_i32, %arg1 : i32, i32
  }
  func.func @transform_3(%arg0: i32, %arg1: i32) -> (i32, i32) {
    %c0_i32 = arith.constant 0 : i32
    return %arg0, %arg1 : i32, i32
  }
}

module attributes {stable_mosaic.version = 11 : i64} {
  func.func @kernel(%arg0: i32, %arg1: i32, %arg2: memref<32x64xbf16, #tpu.memory_space<vmem>>, %arg3: memref<64x32xbf16, #tpu.memory_space<vmem>>, %arg4: memref<1x32xf32, #tpu.memory_space<vmem>>, %arg5: memref<32x32xf32, #tpu.memory_space<vmem>>, %arg6: memref<32x32xf32, #tpu.memory_space<vmem>>) attributes {dimension_semantics = [#tpu.dimension_semantics<parallel>, #tpu.dimension_semantics<parallel>], iteration_bounds = array<i64: 1, 1>, scalar_prefetch = 0 : i64, scratch_operands = 0 : i64, tpu.core_type = #tpu.core_type<tc>, window_params = [{transform_indices = @transform_0, window_bounds = array<i64: 32, 64>}, {transform_indices = @transform_1, window_bounds = array<i64: 64, 32>}, {transform_indices = @transform_2, window_bounds = array<i64: 1, 32>}, {transform_indices = @transform_3, window_bounds = array<i64: 32, 32>}, {transform_indices = @transform_4, window_bounds = array<i64: 32, 32>}]} {
    %c0 = arith.constant 0 : index
    %c0_0 = arith.constant 0 : index
    %0 = vector.load %arg2[%c0, %c0_0] : memref<32x64xbf16, #tpu.memory_space<vmem>>, vector<32x64xbf16>
    %c0_1 = arith.constant 0 : index
    %c0_2 = arith.constant 0 : index
    %1 = vector.load %arg3[%c0_1, %c0_2] : memref<64x32xbf16, #tpu.memory_space<vmem>>, vector<64x32xbf16>
    %cst = arith.constant dense<0.000000e+00> : vector<32x32xf32>
    %2 = tpu.matmul %0, %1, %cst {dimension_numbers = #tpu.dot_dimension_numbers<[1], [0], [0], [1], [0, 0, 1, 1], [], []>} : vector<32x64xbf16>, vector<64x32xbf16>, vector<32x32xf32> -> vector<32x32xf32>
    %c0_3 = arith.constant 0 : index
    %c0_4 = arith.constant 0 : index
    %3 = vector.load %arg4[%c0_3, %c0_4] : memref<1x32xf32, #tpu.memory_space<vmem>>, vector<1x32xf32>
    %4 = vector.broadcast %3 : vector<1x32xf32> to vector<32x32xf32>
    %5 = arith.addf %2, %4 : vector<32x32xf32>
    %c0_5 = arith.constant 0 : index
    %c0_6 = arith.constant 0 : index
    %6 = vector.load %arg5[%c0_5, %c0_6] : memref<32x32xf32, #tpu.memory_space<vmem>>, vector<32x32xf32>
    %cst_7 = arith.constant 5.000000e-01 : f32
    %7 = vector.broadcast %cst_7 : f32 to vector<32x32xf32>
    %8 = arith.mulf %7, %5 : vector<32x32xf32>
    %9 = arith.addf %6, %8 : vector<32x32xf32>
    %c0_8 = arith.constant 0 : index
    %c0_9 = arith.constant 0 : index
    %10 = vector.load %arg6[%c0_8, %c0_9] : memref<32x32xf32, #tpu.memory_space<vmem>>, vector<32x32xf32>
    tpu.vector_store %arg6[%c0_8, %c0_9], %9 {strides = array<i32>} : memref<32x32xf32, #tpu.memory_space<vmem>>, vector<32x32xf32>,
    return
  }
  func.func @transform_0(%arg0: i32, %arg1: i32) -> (i32, i32) {
    %c0_i32 = arith.constant 0 : i32
    %c0_i32_0 = arith.constant 0 : i32
    return %arg0, %c0_i32 : i32, i32
  }
  func.func @transform_1(%arg0: i32, %arg1: i32) -> (i32, i32) {
    %c0_i32 = arith.constant 0 : i32
    %c0_i32_0 = arith.constant 0 : i32
    return %c0_i32, %arg1 : i32, i32
  }
  func.func @transform_2(%arg0: i32, %arg1: i32) -> (i32, i32) {
    %c0_i32 = arith.constant 0 : i32
    %c0_i32_0 = arith.constant 0 : i32
    return %c0_i32, %arg1 : i32, i32
  }
  func.func @transform_3(%arg0: i32, %arg1: i32) -> (i32, i32) {
    %c0_i32 = arith.constant 0 : i32
    return %arg0, %arg1 : i32, i32
  }
  func.func @transform_4(%arg0: i32, %arg1: i32) -> (i32, i32) {
    %c0_i32 = arith.constant 0 : i32
    return %arg0, %arg1 : i32, i32
  }
}

module attributes {stable_mosaic.version = 11 : i64} {
  func.func @kernel(%arg0: i32, %arg1: i32, %arg2: memref<32x32xf32, #tpu.memory_space<vmem>>, %arg3: memref<1x32xf32, #tpu.memory_space<vmem>>, %arg4: memref<1x32xf32, #tpu.memory_space<vmem>>, %arg5: memref<32x64xbf16, #tpu.memory_space<vmem>>, %arg6: memref<1x64xf32, #tpu.memory_space<vmem>>, %arg7: memref<32x64xbf16, #tpu.memory_space<vmem>>) attributes {dimension_semantics = [#tpu.dimension_semantics<parallel>, #tpu.dimension_semantics<parallel>], iteration_bounds = array<i64: 1, 1>, scalar_prefetch = 0 : i64, scratch_operands = 0 : i64, tpu.core_type = #tpu.core_type<tc>, window_params = [{transform_indices = @transform_0, window_bounds = array<i64: 32, 32>}, {pipeline_mode = #tpu.pipeline_mode<synchronous>, transform_indices = @transform_1, window_bounds = array<i64: 1, 32>}, {pipeline_mode = #tpu.pipeline_mode<synchronous>, transform_indices = @transform_2, window_bounds = array<i64: 1, 32>}, {transform_indices = @transform_3, window_bounds = array<i64: 32, 64>}, {transform_indices = @transform_4, window_bounds = array<i64: 1, 64>}, {transform_indices = @transform_5, window_bounds = array<i64: 32, 64>}]} {
    %c0 = arith.constant 0 : index
    %c0_0 = arith.constant 0 : index
    %0 = vector.load %arg2[%c0, %c0_0] : memref<32x32xf32, #tpu.memory_space<vmem>>, vector<32x32xf32>
    %cst = arith.constant dense<0.000000e+00> : vector<32xf32>
    %1 = vector.multi_reduction <add>, %0, %cst [1] : vector<32x32xf32> to vector<32xf32>
    %2 = vector.shape_cast %1 : vector<32xf32> to vector<32x1xf32>
    %cst_1 = arith.constant 3.200000e+01 : f32
    %3 = vector.broadcast %cst_1 : f32 to vector<32x1xf32>
    %4 = arith.divf %2, %3 : vector<32x1xf32>
    %5 = vector.broadcast %4 : vector<32x1xf32> to vector<32x32xf32>
    %6 = arith.subf %0, %5 : vector<32x32xf32>
    %7 = arith.mulf %6, %6 : vector<32x32xf32>
    %cst_2 = arith.constant dense<0.000000e+00> : vector<32xf32>
    %8 = vector.multi_reduction <add>, %7, %cst_2 [1] : vector<32x32xf32> to vector<32xf32>
    %9 = vector.shape_cast %8 : vector<32xf32> to vector<32x1xf32>
    %cst_3 = arith.constant 3.200000e+01 : f32
    %10 = vector.broadcast %cst_3 : f32 to vector<32x1xf32>
    %11 = arith.divf %9, %10 : vector<32x1xf32>
    %cst_4 = arith.constant 9.99999996E-13 : f32
    %12 = vector.broadcast %cst_4 : f32 to vector<32x1xf32>
    %13 = arith.addf %11, %12 : vector<32x1xf32>
    %14 = math.rsqrt %13 : vector<32x1xf32>
    %15 = vector.broadcast %14 : vector<32x1xf32> to vector<32x32xf32>
    %16 = arith.mulf %6, %15 : vector<32x32xf32>
    %c0_5 = arith.constant 0 : index
    %c0_6 = arith.constant 0 : index
    %17 = vector.load %arg3[%c0_5, %c0_6] : memref<1x32xf32, #tpu.memory_space<vmem>>, vector<1x32xf32>
    %18 = vector.broadcast %17 : vector<1x32xf32> to vector<32x32xf32>
    %19 = arith.mulf %16, %18 : vector<32x32xf32>
    %c0_7 = arith.constant 0 : index
    %c0_8 = arith.constant 0 : index
    %20 = vector.load %arg4[%c0_7, %c0_8] : memref<1x32xf32, #tpu.memory_space<vmem>>, vector<1x32xf32>
    %21 = vector.broadcast %20 : vector<1x32xf32> to vector<32x32xf32>
    %22 = arith.addf %19, %21 : vector<32x32xf32>
    %23 = arith.truncf %22 : vector<32x32xf32> to vector<32x32xbf16>
    %c0_9 = arith.constant 0 : index
    %c0_10 = arith.constant 0 : index
    %24 = vector.load %arg5[%c0_9, %c0_10] : memref<32x64xbf16, #tpu.memory_space<vmem>>, vector<32x64xbf16>
    %cst_11 = arith.constant dense<0.000000e+00> : vector<32x64xf32>
    %25 = tpu.matmul %23, %24, %cst_11 {dimension_numbers = #tpu.dot_dimension_numbers<[1], [0], [0], [1], [0, 0, 1, 1], [], []>} : vector<32x32xbf16>, vector<32x64xbf16>, vector<32x64xf32> -> vector<32x64xf32>
    %c0_12 = arith.constant 0 : index
    %c0_13 = arith.constant 0 : index
    %26 = vector.load %arg6[%c0_12, %c0_13] : memref<1x64xf32, #tpu.memory_space<vmem>>, vector<1x64xf32>
    %27 = vector.broadcast %26 : vector<1x64xf32> to vector<32x64xf32>
    %28 = arith.addf %25, %27 : vector<32x64xf32>
    %29 = arith.negf %28 : vector<32x64xf32>
    %30 = math.exp %29 : vector<32x64xf32>
    %cst_14 = arith.constant 1.000000e+00 : f32
    %31 = vector.broadcast %cst_14 : f32 to vector<32x64xf32>
    %32 = arith.addf %31, %30 : vector<32x64xf32>
    %33 = arith.divf %31, %32 : vector<32x64xf32>
    %34 = arith.mulf %28, %33 : vector<32x64xf32>
    %35 = arith.truncf %34 : vector<32x64xf32> to vector<32x64xbf16>
    %c0_15 = arith.constant 0 : index
    %c0_16 = arith.constant 0 : index
    %36 = vector.load %arg7[%c0_15, %c0_16] : memref<32x64xbf16, #tpu.memory_space<vmem>>, vector<32x64xbf16>
    tpu.vector_store %arg7[%c0_15, %c0_16], %35 {strides = array<i32>} : memref<32x64xbf16, #tpu.memory_space<vmem>>, vector<32x64xbf16>,
    return
  }
  func.func @transform_0(%arg0: i32, %arg1: i32) -> (i32, i32) {
    %c0_i32 = arith.constant 0 : i32
    %c0_i32_0 = arith.constant 0 : i32
    return %arg0, %c0_i32 : i32, i32
  }
  func.func @transform_1(%arg0: i32, %arg1: i32) -> (i32, i32) {
    %c0_i32 = arith.constant 0 : i32
    %c0_i32_0 = arith.constant 0 : i32
    %c0_i32_1 = arith.constant 0 : i32
    return %c0_i32, %c0_i32_0 : i32, i32
  }
  func.func @transform_2(%arg0: i32, %arg1: i32) -> (i32, i32) {
    %c0_i32 = arith.constant 0 : i32
    %c0_i32_0 = arith.constant 0 : i32
    %c0_i32_1 = arith.constant 0 : i32
    return %c0_i32, %c0_i32_0 : i32, i32
  }
  func.func @transform_3(%arg0: i32, %arg1: i32) -> (i32, i32) {
    %c0_i32 = arith.constant 0 : i32
    %c0_i32_0 = arith.constant 0 : i32
    return %c0_i32, %arg1 : i32, i32
  }
  func.func @transform_4(%arg0: i32, %arg1: i32) -> (i32, i32) {
    %c0_i32 = arith.constant 0 : i32
    %c0_i32_0 = arith.constant 0 : i32
    return %c0_i32, %arg1 : i32, i32
  }
  func.func @transform_5(%arg0: i32, %arg1: i32) -> (i32, i32) {
    %c0_i32 = arith.constant 0 : i32
    return %arg0, %arg1 : i32, i32
  }
}

module attributes {stable_mosaic.version = 11 : i64} {
  func.func @kernel(%arg0: i32, %arg1: i32, %arg2: memref<32x32xf32, #tpu.memory_space<vmem>>, %arg3: memref<1x32xf32, #tpu.memory_space<vmem>>, %arg4: memref<1x32xf32, #tpu.memory_space<vmem>>, %arg5: memref<32x96xbf16, #tpu.memory_space<vmem>>, %arg6: memref<1x96xf32, #tpu.memory_space<vmem>>, %arg7: memref<32x96xbf16, #tpu.memory_space<vmem>>) attributes {dimension_semantics = [#tpu.dimension_semantics<parallel>, #tpu.dimension_semantics<parallel>], iteration_bounds = array<i64: 1, 1>, scalar_prefetch = 0 : i64, scratch_operands = 0 : i64, tpu.core_type = #tpu.core_type<tc>, window_params = [{transform_indices = @transform_0, window_bounds = array<i64: 32, 32>}, {pipeline_mode = #tpu.pipeline_mode<synchronous>, transform_indices = @transform_1, window_bounds = array<i64: 1, 32>}, {pipeline_mode = #tpu.pipeline_mode<synchronous>, transform_indices = @transform_2, window_bounds = array<i64: 1, 32>}, {transform_indices = @transform_3, window_bounds = array<i64: 32, 96>}, {transform_indices = @transform_4, window_bounds = array<i64: 1, 96>}, {transform_indices = @transform_5, window_bounds = array<i64: 32, 96>}]} {
    %c0 = arith.constant 0 : index
    %c0_0 = arith.constant 0 : index
    %0 = vector.load %arg2[%c0, %c0_0] : memref<32x32xf32, #tpu.memory_space<vmem>>, vector<32x32xf32>
    %cst = arith.constant dense<0.000000e+00> : vector<32xf32>
    %1 = vector.multi_reduction <add>, %0, %cst [1] : vector<32x32xf32> to vector<32xf32>
    %2 = vector.shape_cast %1 : vector<32xf32> to vector<32x1xf32>
    %cst_1 = arith.constant 3.200000e+01 : f32
    %3 = vector.broadcast %cst_1 : f32 to vector<32x1xf32>
    %4 = arith.divf %2, %3 : vector<32x1xf32>
    %5 = vector.broadcast %4 : vector<32x1xf32> to vector<32x32xf32>
    %6 = arith.subf %0, %5 : vector<32x32xf32>
    %7 = arith.mulf %6, %6 : vector<32x32xf32>
    %cst_2 = arith.constant dense<0.000000e+00> : vector<32xf32>
    %8 = vector.multi_reduction <add>, %7, %cst_2 [1] : vector<32x32xf32> to vector<32xf32>
    %9 = vector.shape_cast %8 : vector<32xf32> to vector<32x1xf32>
    %cst_3 = arith.constant 3.200000e+01 : f32
    %10 = vector.broadcast %cst_3 : f32 to vector<32x1xf32>
    %11 = arith.divf %9, %10 : vector<32x1xf32>
    %cst_4 = arith.constant 9.99999996E-13 : f32
    %12 = vector.broadcast %cst_4 : f32 to vector<32x1xf32>
    %13 = arith.addf %11, %12 : vector<32x1xf32>
    %14 = math.rsqrt %13 : vector<32x1xf32>
    %15 = vector.broadcast %14 : vector<32x1xf32> to vector<32x32xf32>
    %16 = arith.mulf %6, %15 : vector<32x32xf32>
    %c0_5 = arith.constant 0 : index
    %c0_6 = arith.constant 0 : index
    %17 = vector.load %arg3[%c0_5, %c0_6] : memref<1x32xf32, #tpu.memory_space<vmem>>, vector<1x32xf32>
    %18 = vector.broadcast %17 : vector<1x32xf32> to vector<32x32xf32>
    %19 = arith.mulf %16, %18 : vector<32x32xf32>
    %c0_7 = arith.constant 0 : index
    %c0_8 = arith.constant 0 : index
    %20 = vector.load %arg4[%c0_7, %c0_8] : memref<1x32xf32, #tpu.memory_space<vmem>>, vector<1x32xf32>
    %21 = vector.broadcast %20 : vector<1x32xf32> to vector<32x32xf32>
    %22 = arith.addf %19, %21 : vector<32x32xf32>
    %23 = arith.truncf %22 : vector<32x32xf32> to vector<32x32xbf16>
    %c0_9 = arith.constant 0 : index
    %c0_10 = arith.constant 0 : index
    %24 = vector.load %arg5[%c0_9, %c0_10] : memref<32x96xbf16, #tpu.memory_space<vmem>>, vector<32x96xbf16>
    %cst_11 = arith.constant dense<0.000000e+00> : vector<32x96xf32>
    %25 = tpu.matmul %23, %24, %cst_11 {dimension_numbers = #tpu.dot_dimension_numbers<[1], [0], [0], [1], [0, 0, 1, 1], [], []>} : vector<32x32xbf16>, vector<32x96xbf16>, vector<32x96xf32> -> vector<32x96xf32>
    %c0_12 = arith.constant 0 : index
    %c0_13 = arith.constant 0 : index
    %26 = vector.load %arg6[%c0_12, %c0_13] : memref<1x96xf32, #tpu.memory_space<vmem>>, vector<1x96xf32>
    %27 = vector.broadcast %26 : vector<1x96xf32> to vector<32x96xf32>
    %28 = arith.addf %25, %27 : vector<32x96xf32>
    %29 = arith.truncf %28 : vector<32x96xf32> to vector<32x96xbf16>
    %c0_14 = arith.constant 0 : index
    %c0_15 = arith.constant 0 : index
    %30 = vector.load %arg7[%c0_14, %c0_15] : memref<32x96xbf16, #tpu.memory_space<vmem>>, vector<32x96xbf16>
    tpu.vector_store %arg7[%c0_14, %c0_15], %29 {strides = array<i32>} : memref<32x96xbf16, #tpu.memory_space<vmem>>, vector<32x96xbf16>,
    return
  }
  func.func @transform_0(%arg0: i32, %arg1: i32) -> (i32, i32) {
    %c0_i32 = arith.constant 0 : i32
    %c0_i32_0 = arith.constant 0 : i32
    return %arg0, %c0_i32 : i32, i32
  }
  func.func @transform_1(%arg0: i32, %arg1: i32) -> (i32, i32) {
    %c0_i32 = arith.constant 0 : i32
    %c0_i32_0 = arith.constant 0 : i32
    %c0_i32_1 = arith.constant 0 : i32
    return %c0_i32, %c0_i32_0 : i32, i32
  }
  func.func @transform_2(%arg0: i32, %arg1: i32) -> (i32, i32) {
    %c0_i32 = arith.constant 0 : i32
    %c0_i32_0 = arith.constant 0 : i32
    %c0_i32_1 = arith.constant 0 : i32
    return %c0_i32, %c0_i32_0 : i32, i32
  }
  func.func @transform_3(%arg0: i32, %arg1: i32) -> (i32, i32) {
    %c0_i32 = arith.constant 0 : i32
    %c0_i32_0 = arith.constant 0 : i32
    return %c0_i32, %arg1 : i32, i32
  }
  func.func @transform_4(%arg0: i32, %arg1: i32) -> (i32, i32) {
    %c0_i32 = arith.constant 0 : i32
    %c0_i32_0 = arith.constant 0 : i32
    return %c0_i32, %arg1 : i32, i32
  }
  func.func @transform_5(%arg0: i32, %arg1: i32) -> (i32, i32) {
    %c0_i32 = arith.constant 0 : i32
    return %arg0, %arg1 : i32, i32
  }
}

module attributes {stable_mosaic.version = 11 : i64} {
  func.func @kernel(%arg0: i32, %arg1: memref<1x16x96xbf16, #tpu.memory_space<vmem>>, %arg2: memref<1x32xf32, #tpu.memory_space<vmem>>, %arg3: memref<1x4x16x16xbf16, #tpu.memory_space<vmem>>, %arg4: memref<1x1x16xf32, #tpu.memory_space<vmem>>, %arg5: memref<1x16x32xbf16, #tpu.memory_space<vmem>>) attributes {dimension_semantics = [#tpu.dimension_semantics<parallel>], iteration_bounds = array<i64: 2>, scalar_prefetch = 0 : i64, scratch_operands = 0 : i64, tpu.core_type = #tpu.core_type<tc>, window_params = [{transform_indices = @transform_0, window_bounds = array<i64: 1, 16, 96>}, {pipeline_mode = #tpu.pipeline_mode<synchronous>, transform_indices = @transform_1, window_bounds = array<i64: 1, 32>}, {transform_indices = @transform_2, window_bounds = array<i64: 1, 4, 16, 16>}, {transform_indices = @transform_3, window_bounds = array<i64: 1, 1, 16>}, {transform_indices = @transform_4, window_bounds = array<i64: 1, 16, 32>}]} {
    %c0 = arith.constant 0 : index
    %c0_0 = arith.constant 0 : index
    %c0_1 = arith.constant 0 : index
    %0 = vector.load %arg1[%c0, %c0_0, %c0_1] : memref<1x16x96xbf16, #tpu.memory_space<vmem>>, vector<1x16x96xbf16>
    %1 = vector.shape_cast %0 : vector<1x16x96xbf16> to vector<16x96xbf16>
    %2 = vector.extract_strided_slice %1 {offsets = [0, 0], sizes = [16, 32], strides = [1, 1]} : vector<16x96xbf16> to vector<16x32xbf16>
    %3 = arith.extf %2 : vector<16x32xbf16> to vector<16x32xf32>
    %4 = vector.extract_strided_slice %1 {offsets = [0, 32], sizes = [16, 32], strides = [1, 1]} : vector<16x96xbf16> to vector<16x32xbf16>
    %5 = vector.extract_strided_slice %1 {offsets = [0, 64], sizes = [16, 32], strides = [1, 1]} : vector<16x96xbf16> to vector<16x32xbf16>
    %c0_2 = arith.constant 0 : index
    %c0_3 = arith.constant 0 : index
    %6 = vector.load %arg2[%c0_2, %c0_3] : memref<1x32xf32, #tpu.memory_space<vmem>>, vector<1x32xf32>
    %7 = vector.broadcast %6 : vector<1x32xf32> to vector<16x32xf32>
    %8 = arith.addf %3, %7 : vector<16x32xf32>
    %cst = arith.constant 0.353553385 : f32
    %9 = vector.broadcast %cst : f32 to vector<16x32xf32>
    %10 = arith.mulf %8, %9 : vector<16x32xf32>
    %11 = arith.truncf %10 : vector<16x32xf32> to vector<16x32xbf16>
    %c0_4 = arith.constant 0 : index
    %c0_5 = arith.constant 0 : index
    %c0_6 = arith.constant 0 : index
    %12 = vector.load %arg4[%c0_4, %c0_5, %c0_6] : memref<1x1x16xf32, #tpu.memory_space<vmem>>, vector<1x1x16xf32>
    %13 = vector.shape_cast %12 : vector<1x1x16xf32> to vector<1x16xf32>
    %14 = vector.extract_strided_slice %11 {offsets = [0, 0], sizes = [16, 8], strides = [1, 1]} : vector<16x32xbf16> to vector<16x8xbf16>
    %15 = vector.extract_strided_slice %4 {offsets = [0, 0], sizes = [16, 8], strides = [1, 1]} : vector<16x32xbf16> to vector<16x8xbf16>
    %cst_7 = arith.constant dense<0.000000e+00> : vector<16x16xf32>
    %16 = tpu.matmul %14, %15, %cst_7 {dimension_numbers = #tpu.dot_dimension_numbers<[1], [1], [0], [0], [0, 0, 1, 0], [], []>} : vector<16x8xbf16>, vector<16x8xbf16>, vector<16x16xf32> -> vector<16x16xf32>
    %c0_8 = arith.constant 0 : index
    %c0_9 = arith.constant 0 : index
    %c0_10 = arith.constant 0 : index
    %c0_11 = arith.constant 0 : index
    %17 = vector.load %arg3[%c0_8, %c0_9, %c0_10, %c0_11] : memref<1x4x16x16xbf16, #tpu.memory_space<vmem>>, vector<1x1x16x16xbf16>
    %18 = vector.shape_cast %17 : vector<1x1x16x16xbf16> to vector<16x16xbf16>
    %19 = arith.extf %18 : vector<16x16xbf16> to vector<16x16xf32>
    %20 = arith.addf %16, %19 : vector<16x16xf32>
    %cst_12 = arith.constant 0.000000e+00 : f32
    %21 = vector.broadcast %cst_12 : f32 to vector<1x16xf32>
    %22 = arith.cmpf ogt, %13, %21 : vector<1x16xf32>
    %cst_13 = arith.constant -1.000000e+30 : f32
    %23 = vector.shape_cast %22 : vector<1x16xi1> to vector<1x16xi1>
    %24 = vector.broadcast %23 : vector<1x16xi1> to vector<16x16xi1>
    %25 = vector.broadcast %cst_13 : f32 to vector<16x16xf32>
    %26 = arith.select %24, %20, %25 : vector<16x16xi1>, vector<16x16xf32>
    %cst_14 = arith.constant dense<0xFF800000> : vector<16xf32>
    %27 = vector.multi_reduction <maximumf>, %26, %cst_14 [1] : vector<16x16xf32> to vector<16xf32>
    %28 = vector.shape_cast %27 : vector<16xf32> to vector<16x1xf32>
    %29 = vector.broadcast %28 : vector<16x1xf32> to vector<16x16xf32>
    %30 = arith.subf %26, %29 : vector<16x16xf32>
    %31 = math.exp %30 : vector<16x16xf32>
    %cst_15 = arith.constant dense<0.000000e+00> : vector<16xf32>
    %32 = vector.multi_reduction <add>, %31, %cst_15 [1] : vector<16x16xf32> to vector<16xf32>
    %33 = vector.shape_cast %32 : vector<16xf32> to vector<16x1xf32>
    %34 = tpu.reciprocal %33 {approx = true} : vector<16x1xf32> -> vector<16x1xf32>
    %35 = vector.broadcast %34 : vector<16x1xf32> to vector<16x16xf32>
    %36 = arith.mulf %31, %35 : vector<16x16xf32>
    %37 = vector.broadcast %13 : vector<1x16xf32> to vector<16x16xf32>
    %38 = arith.mulf %36, %37 : vector<16x16xf32>
    %39 = arith.truncf %38 : vector<16x16xf32> to vector<16x16xbf16>
    %40 = vector.extract_strided_slice %5 {offsets = [0, 0], sizes = [16, 8], strides = [1, 1]} : vector<16x32xbf16> to vector<16x8xbf16>
    %cst_16 = arith.constant dense<0.000000e+00> : vector<16x8xf32>
    %41 = tpu.matmul %39, %40, %cst_16 {dimension_numbers = #tpu.dot_dimension_numbers<[1], [0], [0], [1], [0, 0, 1, 1], [], []>} : vector<16x16xbf16>, vector<16x8xbf16>, vector<16x8xf32> -> vector<16x8xf32>
    %42 = vector.extract_strided_slice %11 {offsets = [0, 8], sizes = [16, 8], strides = [1, 1]} : vector<16x32xbf16> to vector<16x8xbf16>
    %43 = vector.extract_strided_slice %4 {offsets = [0, 8], sizes = [16, 8], strides = [1, 1]} : vector<16x32xbf16> to vector<16x8xbf16>
    %cst_17 = arith.constant dense<0.000000e+00> : vector<16x16xf32>
    %44 = tpu.matmul %42, %43, %cst_17 {dimension_numbers = #tpu.dot_dimension_numbers<[1], [1], [0], [0], [0, 0, 1, 0], [], []>} : vector<16x8xbf16>, vector<16x8xbf16>, vector<16x16xf32> -> vector<16x16xf32>
    %c0_18 = arith.constant 0 : index
    %c1 = arith.constant 1 : index
    %c0_19 = arith.constant 0 : index
    %c0_20 = arith.constant 0 : index
    %45 = vector.load %arg3[%c0_18, %c1, %c0_19, %c0_20] : memref<1x4x16x16xbf16, #tpu.memory_space<vmem>>, vector<1x1x16x16xbf16>
    %46 = vector.shape_cast %45 : vector<1x1x16x16xbf16> to vector<16x16xbf16>
    %47 = arith.extf %46 : vector<16x16xbf16> to vector<16x16xf32>
    %48 = arith.addf %44, %47 : vector<16x16xf32>
    %cst_21 = arith.constant 0.000000e+00 : f32
    %49 = vector.broadcast %cst_21 : f32 to vector<1x16xf32>
    %50 = arith.cmpf ogt, %13, %49 : vector<1x16xf32>
    %cst_22 = arith.constant -1.000000e+30 : f32
    %51 = vector.shape_cast %50 : vector<1x16xi1> to vector<1x16xi1>
    %52 = vector.broadcast %51 : vector<1x16xi1> to vector<16x16xi1>
    %53 = vector.broadcast %cst_22 : f32 to vector<16x16xf32>
    %54 = arith.select %52, %48, %53 : vector<16x16xi1>, vector<16x16xf32>
    %cst_23 = arith.constant dense<0xFF800000> : vector<16xf32>
    %55 = vector.multi_reduction <maximumf>, %54, %cst_23 [1] : vector<16x16xf32> to vector<16xf32>
    %56 = vector.shape_cast %55 : vector<16xf32> to vector<16x1xf32>
    %57 = vector.broadcast %56 : vector<16x1xf32> to vector<16x16xf32>
    %58 = arith.subf %54, %57 : vector<16x16xf32>
    %59 = math.exp %58 : vector<16x16xf32>
    %cst_24 = arith.constant dense<0.000000e+00> : vector<16xf32>
    %60 = vector.multi_reduction <add>, %59, %cst_24 [1] : vector<16x16xf32> to vector<16xf32>
    %61 = vector.shape_cast %60 : vector<16xf32> to vector<16x1xf32>
    %62 = tpu.reciprocal %61 {approx = true} : vector<16x1xf32> -> vector<16x1xf32>
    %63 = vector.broadcast %62 : vector<16x1xf32> to vector<16x16xf32>
    %64 = arith.mulf %59, %63 : vector<16x16xf32>
    %65 = vector.broadcast %13 : vector<1x16xf32> to vector<16x16xf32>
    %66 = arith.mulf %64, %65 : vector<16x16xf32>
    %67 = arith.truncf %66 : vector<16x16xf32> to vector<16x16xbf16>
    %68 = vector.extract_strided_slice %5 {offsets = [0, 8], sizes = [16, 8], strides = [1, 1]} : vector<16x32xbf16> to vector<16x8xbf16>
    %cst_25 = arith.constant dense<0.000000e+00> : vector<16x8xf32>
    %69 = tpu.matmul %67, %68, %cst_25 {dimension_numbers = #tpu.dot_dimension_numbers<[1], [0], [0], [1], [0, 0, 1, 1], [], []>} : vector<16x16xbf16>, vector<16x8xbf16>, vector<16x8xf32> -> vector<16x8xf32>
    %70 = vector.extract_strided_slice %11 {offsets = [0, 16], sizes = [16, 8], strides = [1, 1]} : vector<16x32xbf16> to vector<16x8xbf16>
    %71 = vector.extract_strided_slice %4 {offsets = [0, 16], sizes = [16, 8], strides = [1, 1]} : vector<16x32xbf16> to vector<16x8xbf16>
    %cst_26 = arith.constant dense<0.000000e+00> : vector<16x16xf32>
    %72 = tpu.matmul %70, %71, %cst_26 {dimension_numbers = #tpu.dot_dimension_numbers<[1], [1], [0], [0], [0, 0, 1, 0], [], []>} : vector<16x8xbf16>, vector<16x8xbf16>, vector<16x16xf32> -> vector<16x16xf32>
    %c0_27 = arith.constant 0 : index
    %c2 = arith.constant 2 : index
    %c0_28 = arith.constant 0 : index
    %c0_29 = arith.constant 0 : index
    %73 = vector.load %arg3[%c0_27, %c2, %c0_28, %c0_29] : memref<1x4x16x16xbf16, #tpu.memory_space<vmem>>, vector<1x1x16x16xbf16>
    %74 = vector.shape_cast %73 : vector<1x1x16x16xbf16> to vector<16x16xbf16>
    %75 = arith.extf %74 : vector<16x16xbf16> to vector<16x16xf32>
    %76 = arith.addf %72, %75 : vector<16x16xf32>
    %cst_30 = arith.constant 0.000000e+00 : f32
    %77 = vector.broadcast %cst_30 : f32 to vector<1x16xf32>
    %78 = arith.cmpf ogt, %13, %77 : vector<1x16xf32>
    %cst_31 = arith.constant -1.000000e+30 : f32
    %79 = vector.shape_cast %78 : vector<1x16xi1> to vector<1x16xi1>
    %80 = vector.broadcast %79 : vector<1x16xi1> to vector<16x16xi1>
    %81 = vector.broadcast %cst_31 : f32 to vector<16x16xf32>
    %82 = arith.select %80, %76, %81 : vector<16x16xi1>, vector<16x16xf32>
    %cst_32 = arith.constant dense<0xFF800000> : vector<16xf32>
    %83 = vector.multi_reduction <maximumf>, %82, %cst_32 [1] : vector<16x16xf32> to vector<16xf32>
    %84 = vector.shape_cast %83 : vector<16xf32> to vector<16x1xf32>
    %85 = vector.broadcast %84 : vector<16x1xf32> to vector<16x16xf32>
    %86 = arith.subf %82, %85 : vector<16x16xf32>
    %87 = math.exp %86 : vector<16x16xf32>
    %cst_33 = arith.constant dense<0.000000e+00> : vector<16xf32>
    %88 = vector.multi_reduction <add>, %87, %cst_33 [1] : vector<16x16xf32> to vector<16xf32>
    %89 = vector.shape_cast %88 : vector<16xf32> to vector<16x1xf32>
    %90 = tpu.reciprocal %89 {approx = true} : vector<16x1xf32> -> vector<16x1xf32>
    %91 = vector.broadcast %90 : vector<16x1xf32> to vector<16x16xf32>
    %92 = arith.mulf %87, %91 : vector<16x16xf32>
    %93 = vector.broadcast %13 : vector<1x16xf32> to vector<16x16xf32>
    %94 = arith.mulf %92, %93 : vector<16x16xf32>
    %95 = arith.truncf %94 : vector<16x16xf32> to vector<16x16xbf16>
    %96 = vector.extract_strided_slice %5 {offsets = [0, 16], sizes = [16, 8], strides = [1, 1]} : vector<16x32xbf16> to vector<16x8xbf16>
    %cst_34 = arith.constant dense<0.000000e+00> : vector<16x8xf32>
    %97 = tpu.matmul %95, %96, %cst_34 {dimension_numbers = #tpu.dot_dimension_numbers<[1], [0], [0], [1], [0, 0, 1, 1], [], []>} : vector<16x16xbf16>, vector<16x8xbf16>, vector<16x8xf32> -> vector<16x8xf32>
    %98 = vector.extract_strided_slice %11 {offsets = [0, 24], sizes = [16, 8], strides = [1, 1]} : vector<16x32xbf16> to vector<16x8xbf16>
    %99 = vector.extract_strided_slice %4 {offsets = [0, 24], sizes = [16, 8], strides = [1, 1]} : vector<16x32xbf16> to vector<16x8xbf16>
    %cst_35 = arith.constant dense<0.000000e+00> : vector<16x16xf32>
    %100 = tpu.matmul %98, %99, %cst_35 {dimension_numbers = #tpu.dot_dimension_numbers<[1], [1], [0], [0], [0, 0, 1, 0], [], []>} : vector<16x8xbf16>, vector<16x8xbf16>, vector<16x16xf32> -> vector<16x16xf32>
    %c0_36 = arith.constant 0 : index
    %c3 = arith.constant 3 : index
    %c0_37 = arith.constant 0 : index
    %c0_38 = arith.constant 0 : index
    %101 = vector.load %arg3[%c0_36, %c3, %c0_37, %c0_38] : memref<1x4x16x16xbf16, #tpu.memory_space<vmem>>, vector<1x1x16x16xbf16>
    %102 = vector.shape_cast %101 : vector<1x1x16x16xbf16> to vector<16x16xbf16>
    %103 = arith.extf %102 : vector<16x16xbf16> to vector<16x16xf32>
    %104 = arith.addf %100, %103 : vector<16x16xf32>
    %cst_39 = arith.constant 0.000000e+00 : f32
    %105 = vector.broadcast %cst_39 : f32 to vector<1x16xf32>
    %106 = arith.cmpf ogt, %13, %105 : vector<1x16xf32>
    %cst_40 = arith.constant -1.000000e+30 : f32
    %107 = vector.shape_cast %106 : vector<1x16xi1> to vector<1x16xi1>
    %108 = vector.broadcast %107 : vector<1x16xi1> to vector<16x16xi1>
    %109 = vector.broadcast %cst_40 : f32 to vector<16x16xf32>
    %110 = arith.select %108, %104, %109 : vector<16x16xi1>, vector<16x16xf32>
    %cst_41 = arith.constant dense<0xFF800000> : vector<16xf32>
    %111 = vector.multi_reduction <maximumf>, %110, %cst_41 [1] : vector<16x16xf32> to vector<16xf32>
    %112 = vector.shape_cast %111 : vector<16xf32> to vector<16x1xf32>
    %113 = vector.broadcast %112 : vector<16x1xf32> to vector<16x16xf32>
    %114 = arith.subf %110, %113 : vector<16x16xf32>
    %115 = math.exp %114 : vector<16x16xf32>
    %cst_42 = arith.constant dense<0.000000e+00> : vector<16xf32>
    %116 = vector.multi_reduction <add>, %115, %cst_42 [1] : vector<16x16xf32> to vector<16xf32>
    %117 = vector.shape_cast %116 : vector<16xf32> to vector<16x1xf32>
    %118 = tpu.reciprocal %117 {approx = true} : vector<16x1xf32> -> vector<16x1xf32>
    %119 = vector.broadcast %118 : vector<16x1xf32> to vector<16x16xf32>
    %120 = arith.mulf %115, %119 : vector<16x16xf32>
    %121 = vector.broadcast %13 : vector<1x16xf32> to vector<16x16xf32>
    %122 = arith.mulf %120, %121 : vector<16x16xf32>
    %123 = arith.truncf %122 : vector<16x16xf32> to vector<16x16xbf16>
    %124 = vector.extract_strided_slice %5 {offsets = [0, 24], sizes = [16, 8], strides = [1, 1]} : vector<16x32xbf16> to vector<16x8xbf16>
    %cst_43 = arith.constant dense<0.000000e+00> : vector<16x8xf32>
    %125 = tpu.matmul %123, %124, %cst_43 {dimension_numbers = #tpu.dot_dimension_numbers<[1], [0], [0], [1], [0, 0, 1, 1], [], []>} : vector<16x16xbf16>, vector<16x8xbf16>, vector<16x8xf32> -> vector<16x8xf32>
    %126 = tpu.concatenate %41, %69, %97, %125 in 1 : vector<16x8xf32>, vector<16x8xf32>, vector<16x8xf32>, vector<16x8xf32> -> vector<16x32xf32>
    %127 = arith.truncf %126 : vector<16x32xf32> to vector<16x32xbf16>
    %c0_44 = arith.constant 0 : index
    %c0_45 = arith.constant 0 : index
    %c0_46 = arith.constant 0 : index
    %128 = vector.load %arg5[%c0_44, %c0_45, %c0_46] : memref<1x16x32xbf16, #tpu.memory_space<vmem>>, vector<1x16x32xbf16>
    %129 = vector.shape_cast %128 : vector<1x16x32xbf16> to vector<16x32xbf16>
    %130 = vector.shape_cast %127 : vector<16x32xbf16> to vector<1x16x32xbf16>
    tpu.vector_store %arg5[%c0_44, %c0_45, %c0_46], %130 {strides = array<i32>} : memref<1x16x32xbf16, #tpu.memory_space<vmem>>, vector<1x16x32xbf16>,
    return
  }
  func.func @transform_0(%arg0: i32) -> (i32, i32, i32) {
    %c0_i32 = arith.constant 0 : i32
    %c0_i32_0 = arith.constant 0 : i32
    %c0_i32_1 = arith.constant 0 : i32
    return %arg0, %c0_i32, %c0_i32_0 : i32, i32, i32
  }
  func.func @transform_1(%arg0: i32) -> (i32, i32) {
    %c0_i32 = arith.constant 0 : i32
    %c0_i32_0 = arith.constant 0 : i32
    %c0_i32_1 = arith.constant 0 : i32
    return %c0_i32, %c0_i32_0 : i32, i32
  }
  func.func @transform_2(%arg0: i32) -> (i32, i32, i32, i32) {
    %c0_i32 = arith.constant 0 : i32
    %c0_i32_0 = arith.constant 0 : i32
    %c0_i32_1 = arith.constant 0 : i32
    %c0_i32_2 = arith.constant 0 : i32
    return %arg0, %c0_i32, %c0_i32_0, %c0_i32_1 : i32, i32, i32, i32
  }
  func.func @transform_3(%arg0: i32) -> (i32, i32, i32) {
    %c0_i32 = arith.constant 0 : i32
    %c0_i32_0 = arith.constant 0 : i32
    %c0_i32_1 = arith.constant 0 : i32
    return %arg0, %c0_i32, %c0_i32_0 : i32, i32, i32
  }
  func.func @transform_4(%arg0: i32) -> (i32, i32, i32) {
    %c0_i32 = arith.constant 0 : i32
    %c0_i32_0 = arith.constant 0 : i32
    %c0_i32_1 = arith.constant 0 : i32
    return %arg0, %c0_i32, %c0_i32_0 : i32, i32, i32
  }
}

module attributes {stable_mosaic.version = 11 : i64} {
  func.func @kernel(%arg0: i32, %arg1: i32, %arg2: memref<32x32xbf16, #tpu.memory_space<vmem>>, %arg3: memref<32x32xbf16, #tpu.memory_space<vmem>>, %arg4: memref<1x32xf32, #tpu.memory_space<vmem>>, %arg5: memref<32x32xf32, #tpu.memory_space<vmem>>, %arg6: memref<32x32xf32, #tpu.memory_space<vmem>>) attributes {dimension_semantics = [#tpu.dimension_semantics<parallel>, #tpu.dimension_semantics<parallel>], iteration_bounds = array<i64: 1, 1>, scalar_prefetch = 0 : i64, scratch_operands = 0 : i64, tpu.core_type = #tpu.core_type<tc>, window_params = [{transform_indices = @transform_0, window_bounds = array<i64: 32, 32>}, {transform_indices = @transform_1, window_bounds = array<i64: 32, 32>}, {transform_indices = @transform_2, window_bounds = array<i64: 1, 32>}, {transform_indices = @transform_3, window_bounds = array<i64: 32, 32>}, {transform_indices = @transform_4, window_bounds = array<i64: 32, 32>}]} {
    %c0 = arith.constant 0 : index
    %c0_0 = arith.constant 0 : index
    %0 = vector.load %arg2[%c0, %c0_0] : memref<32x32xbf16, #tpu.memory_space<vmem>>, vector<32x32xbf16>
    %c0_1 = arith.constant 0 : index
    %c0_2 = arith.constant 0 : index
    %1 = vector.load %arg3[%c0_1, %c0_2] : memref<32x32xbf16, #tpu.memory_space<vmem>>, vector<32x32xbf16>
    %cst = arith.constant dense<0.000000e+00> : vector<32x32xf32>
    %2 = tpu.matmul %0, %1, %cst {dimension_numbers = #tpu.dot_dimension_numbers<[1], [0], [0], [1], [0, 0, 1, 1], [], []>} : vector<32x32xbf16>, vector<32x32xbf16>, vector<32x32xf32> -> vector<32x32xf32>
    %c0_3 = arith.constant 0 : index
    %c0_4 = arith.constant 0 : index
    %3 = vector.load %arg4[%c0_3, %c0_4] : memref<1x32xf32, #tpu.memory_space<vmem>>, vector<1x32xf32>
    %4 = vector.broadcast %3 : vector<1x32xf32> to vector<32x32xf32>
    %5 = arith.addf %2, %4 : vector<32x32xf32>
    %c0_5 = arith.constant 0 : index
    %c0_6 = arith.constant 0 : index
    %6 = vector.load %arg5[%c0_5, %c0_6] : memref<32x32xf32, #tpu.memory_space<vmem>>, vector<32x32xf32>
    %cst_7 = arith.constant 1.000000e+00 : f32
    %7 = vector.broadcast %cst_7 : f32 to vector<32x32xf32>
    %8 = arith.mulf %7, %5 : vector<32x32xf32>
    %9 = arith.addf %6, %8 : vector<32x32xf32>
    %c0_8 = arith.constant 0 : index
    %c0_9 = arith.constant 0 : index
    %10 = vector.load %arg6[%c0_8, %c0_9] : memref<32x32xf32, #tpu.memory_space<vmem>>, vector<32x32xf32>
    tpu.vector_store %arg6[%c0_8, %c0_9], %9 {strides = array<i32>} : memref<32x32xf32, #tpu.memory_space<vmem>>, vector<32x32xf32>,
    return
  }
  func.func @transform_0(%arg0: i32, %arg1: i32) -> (i32, i32) {
    %c0_i32 = arith.constant 0 : i32
    %c0_i32_0 = arith.constant 0 : i32
    return %arg0, %c0_i32 : i32, i32
  }
  func.func @transform_1(%arg0: i32, %arg1: i32) -> (i32, i32) {
    %c0_i32 = arith.constant 0 : i32
    %c0_i32_0 = arith.constant 0 : i32
    return %c0_i32, %arg1 : i32, i32
  }
  func.func @transform_2(%arg0: i32, %arg1: i32) -> (i32, i32) {
    %c0_i32 = arith.constant 0 : i32
    %c0_i32_0 = arith.constant 0 : i32
    return %c0_i32, %arg1 : i32, i32
  }
  func.func @transform_3(%arg0: i32, %arg1: i32) -> (i32, i32) {
    %c0_i32 = arith.constant 0 : i32
    return %arg0, %arg1 : i32, i32
  }
  func.func @transform_4(%arg0: i32, %arg1: i32) -> (i32, i32) {
    %c0_i32 = arith.constant 0 : i32
    return %arg0, %arg1 : i32, i32
  }
}

module attributes {stable_mosaic.version = 11 : i64} {
  func.func @kernel(%arg0: i32, %arg1: i32, %arg2: memref<32x32xf32, #tpu.memory_space<vmem>>, %arg3: memref<1x32xf32, #tpu.memory_space<vmem>>, %arg4: memref<1x32xf32, #tpu.memory_space<vmem>>, %arg5: memref<32x32xbf16, #tpu.memory_space<vmem>>, %arg6: memref<1x32xf32, #tpu.memory_space<vmem>>, %arg7: memref<32x32xbf16, #tpu.memory_space<vmem>>, %arg8: memref<1x32xf32, #tpu.memory_space<vmem>>, %arg9: memref<32x32xbf16, #tpu.memory_space<vmem>>) attributes {dimension_semantics = [#tpu.dimension_semantics<parallel>, #tpu.dimension_semantics<parallel>], iteration_bounds = array<i64: 1, 1>, scalar_prefetch = 0 : i64, scratch_operands = 0 : i64, tpu.core_type = #tpu.core_type<tc>, window_params = [{transform_indices = @transform_0, window_bounds = array<i64: 32, 32>}, {pipeline_mode = #tpu.pipeline_mode<synchronous>, transform_indices = @transform_1, window_bounds = array<i64: 1, 32>}, {pipeline_mode = #tpu.pipeline_mode<synchronous>, transform_indices = @transform_2, window_bounds = array<i64: 1, 32>}, {transform_indices = @transform_3, window_bounds = array<i64: 32, 32>}, {transform_indices = @transform_4, window_bounds = array<i64: 1, 32>}, {transform_indices = @transform_5, window_bounds = array<i64: 32, 32>}, {transform_indices = @transform_6, window_bounds = array<i64: 1, 32>}, {transform_indices = @transform_7, window_bounds = array<i64: 32, 32>}]} {
    %c0 = arith.constant 0 : index
    %c0_0 = arith.constant 0 : index
    %0 = vector.load %arg2[%c0, %c0_0] : memref<32x32xf32, #tpu.memory_space<vmem>>, vector<32x32xf32>
    %cst = arith.constant dense<0.000000e+00> : vector<32xf32>
    %1 = vector.multi_reduction <add>, %0, %cst [1] : vector<32x32xf32> to vector<32xf32>
    %2 = vector.shape_cast %1 : vector<32xf32> to vector<32x1xf32>
    %cst_1 = arith.constant 3.200000e+01 : f32
    %3 = vector.broadcast %cst_1 : f32 to vector<32x1xf32>
    %4 = arith.divf %2, %3 : vector<32x1xf32>
    %5 = vector.broadcast %4 : vector<32x1xf32> to vector<32x32xf32>
    %6 = arith.subf %0, %5 : vector<32x32xf32>
    %7 = arith.mulf %6, %6 : vector<32x32xf32>
    %cst_2 = arith.constant dense<0.000000e+00> : vector<32xf32>
    %8 = vector.multi_reduction <add>, %7, %cst_2 [1] : vector<32x32xf32> to vector<32xf32>
    %9 = vector.shape_cast %8 : vector<32xf32> to vector<32x1xf32>
    %cst_3 = arith.constant 3.200000e+01 : f32
    %10 = vector.broadcast %cst_3 : f32 to vector<32x1xf32>
    %11 = arith.divf %9, %10 : vector<32x1xf32>
    %cst_4 = arith.constant 9.99999996E-13 : f32
    %12 = vector.broadcast %cst_4 : f32 to vector<32x1xf32>
    %13 = arith.addf %11, %12 : vector<32x1xf32>
    %14 = math.rsqrt %13 : vector<32x1xf32>
    %15 = vector.broadcast %14 : vector<32x1xf32> to vector<32x32xf32>
    %16 = arith.mulf %6, %15 : vector<32x32xf32>
    %c0_5 = arith.constant 0 : index
    %c0_6 = arith.constant 0 : index
    %17 = vector.load %arg3[%c0_5, %c0_6] : memref<1x32xf32, #tpu.memory_space<vmem>>, vector<1x32xf32>
    %18 = vector.broadcast %17 : vector<1x32xf32> to vector<32x32xf32>
    %19 = arith.mulf %16, %18 : vector<32x32xf32>
    %c0_7 = arith.constant 0 : index
    %c0_8 = arith.constant 0 : index
    %20 = vector.load %arg4[%c0_7, %c0_8] : memref<1x32xf32, #tpu.memory_space<vmem>>, vector<1x32xf32>
    %21 = vector.broadcast %20 : vector<1x32xf32> to vector<32x32xf32>
    %22 = arith.addf %19, %21 : vector<32x32xf32>
    %23 = arith.truncf %22 : vector<32x32xf32> to vector<32x32xbf16>
    %c0_9 = arith.constant 0 : index
    %c0_10 = arith.constant 0 : index
    %24 = vector.load %arg5[%c0_9, %c0_10] : memref<32x32xbf16, #tpu.memory_space<vmem>>, vector<32x32xbf16>
    %cst_11 = arith.constant dense<0.000000e+00> : vector<32x32xf32>
    %25 = tpu.matmul %23, %24, %cst_11 {dimension_numbers = #tpu.dot_dimension_numbers<[1], [0], [0], [1], [0, 0, 1, 1], [], []>} : vector<32x32xbf16>, vector<32x32xbf16>, vector<32x32xf32> -> vector<32x32xf32>
    %c0_12 = arith.constant 0 : index
    %c0_13 = arith.constant 0 : index
    %26 = vector.load %arg6[%c0_12, %c0_13] : memref<1x32xf32, #tpu.memory_space<vmem>>, vector<1x32xf32>
    %27 = vector.broadcast %26 : vector<1x32xf32> to vector<32x32xf32>
    %28 = arith.addf %25, %27 : vector<32x32xf32>
    %c0_14 = arith.constant 0 : index
    %c0_15 = arith.constant 0 : index
    %29 = vector.load %arg7[%c0_14, %c0_15] : memref<32x32xbf16, #tpu.memory_space<vmem>>, vector<32x32xbf16>
    %cst_16 = arith.constant dense<0.000000e+00> : vector<32x32xf32>
    %30 = tpu.matmul %23, %29, %cst_16 {dimension_numbers = #tpu.dot_dimension_numbers<[1], [0], [0], [1], [0, 0, 1, 1], [], []>} : vector<32x32xbf16>, vector<32x32xbf16>, vector<32x32xf32> -> vector<32x32xf32>
    %c0_17 = arith.constant 0 : index
    %c0_18 = arith.constant 0 : index
    %31 = vector.load %arg8[%c0_17, %c0_18] : memref<1x32xf32, #tpu.memory_space<vmem>>, vector<1x32xf32>
    %32 = vector.broadcast %31 : vector<1x32xf32> to vector<32x32xf32>
    %33 = arith.addf %30, %32 : vector<32x32xf32>
    %34 = arith.negf %33 : vector<32x32xf32>
    %35 = math.exp %34 : vector<32x32xf32>
    %cst_19 = arith.constant 1.000000e+00 : f32
    %36 = vector.broadcast %cst_19 : f32 to vector<32x32xf32>
    %37 = arith.addf %36, %35 : vector<32x32xf32>
    %38 = arith.divf %36, %37 : vector<32x32xf32>
    %39 = arith.mulf %28, %38 : vector<32x32xf32>
    %40 = arith.truncf %39 : vector<32x32xf32> to vector<32x32xbf16>
    %c0_20 = arith.constant 0 : index
    %c0_21 = arith.constant 0 : index
    %41 = vector.load %arg9[%c0_20, %c0_21] : memref<32x32xbf16, #tpu.memory_space<vmem>>, vector<32x32xbf16>
    tpu.vector_store %arg9[%c0_20, %c0_21], %40 {strides = array<i32>} : memref<32x32xbf16, #tpu.memory_space<vmem>>, vector<32x32xbf16>,
    return
  }
  func.func @transform_0(%arg0: i32, %arg1: i32) -> (i32, i32) {
    %c0_i32 = arith.constant 0 : i32
    %c0_i32_0 = arith.constant 0 : i32
    return %arg0, %c0_i32 : i32, i32
  }
  func.func @transform_1(%arg0: i32, %arg1: i32) -> (i32, i32) {
    %c0_i32 = arith.constant 0 : i32
    %c0_i32_0 = arith.constant 0 : i32
    %c0_i32_1 = arith.constant 0 : i32
    return %c0_i32, %c0_i32_0 : i32, i32
  }
  func.func @transform_2(%arg0: i32, %arg1: i32) -> (i32, i32) {
    %c0_i32 = arith.constant 0 : i32
    %c0_i32_0 = arith.constant 0 : i32
    %c0_i32_1 = arith.constant 0 : i32
    return %c0_i32, %c0_i32_0 : i32, i32
  }
  func.func @transform_3(%arg0: i32, %arg1: i32) -> (i32, i32) {
    %c0_i32 = arith.constant 0 : i32
    %c0_i32_0 = arith.constant 0 : i32
    return %c0_i32, %arg1 : i32, i32
  }
  func.func @transform_4(%arg0: i32, %arg1: i32) -> (i32, i32) {
    %c0_i32 = arith.constant 0 : i32
    %c0_i32_0 = arith.constant 0 : i32
    return %c0_i32, %arg1 : i32, i32
  }
  func.func @transform_5(%arg0: i32, %arg1: i32) -> (i32, i32) {
    %c0_i32 = arith.constant 0 : i32
    %c0_i32_0 = arith.constant 0 : i32
    return %c0_i32, %arg1 : i32, i32
  }
  func.func @transform_6(%arg0: i32, %arg1: i32) -> (i32, i32) {
    %c0_i32 = arith.constant 0 : i32
    %c0_i32_0 = arith.constant 0 : i32
    return %c0_i32, %arg1 : i32, i32
  }
  func.func @transform_7(%arg0: i32, %arg1: i32) -> (i32, i32) {
    %c0_i32 = arith.constant 0 : i32
    return %arg0, %arg1 : i32, i32
  }
}

module attributes {stable_mosaic.version = 11 : i64} {
  func.func @_dwconv_kernel(%arg0: i32, %arg1: memref<1x16x32xbf16, #tpu.memory_space<vmem>>, %arg2: memref<7x32xf32, #tpu.memory_space<vmem>>, %arg3: memref<1x32xf32, #tpu.memory_space<vmem>>, %arg4: memref<1x32xf32, #tpu.memory_space<vmem>>, %arg5: memref<1x16x32xbf16, #tpu.memory_space<vmem>>) attributes {dimension_semantics = [#tpu.dimension_semantics<parallel>], iteration_bounds = array<i64: 2>, scalar_prefetch = 0 : i64, scratch_operands = 0 : i64, tpu.core_type = #tpu.core_type<tc>, window_params = [{transform_indices = @transform_0, window_bounds = array<i64: 1, 16, 32>}, {pipeline_mode = #tpu.pipeline_mode<synchronous>, transform_indices = @transform_1, window_bounds = array<i64: 7, 32>}, {pipeline_mode = #tpu.pipeline_mode<synchronous>, transform_indices = @transform_2, window_bounds = array<i64: 1, 32>}, {pipeline_mode = #tpu.pipeline_mode<synchronous>, transform_indices = @transform_3, window_bounds = array<i64: 1, 32>}, {transform_indices = @transform_4, window_bounds = array<i64: 1, 16, 32>}]} {
    %c0 = arith.constant 0 : index
    %c0_0 = arith.constant 0 : index
    %c0_1 = arith.constant 0 : index
    %0 = vector.load %arg1[%c0, %c0_0, %c0_1] : memref<1x16x32xbf16, #tpu.memory_space<vmem>>, vector<1x16x32xbf16>
    %1 = vector.shape_cast %0 : vector<1x16x32xbf16> to vector<16x32xbf16>
    %2 = arith.extf %1 : vector<16x32xbf16> to vector<16x32xf32>
    %cst = arith.constant 0.000000e+00 : f32
    %3 = vector.broadcast %cst : f32 to vector<3x32xf32>
    %4 = tpu.concatenate %3, %2, %3 in 0 : vector<3x32xf32>, vector<16x32xf32>, vector<3x32xf32> -> vector<22x32xf32>
    %c0_2 = arith.constant 0 : index
    %c0_3 = arith.constant 0 : index
    %5 = vector.load %arg2[%c0_2, %c0_3] : memref<7x32xf32, #tpu.memory_space<vmem>>, vector<7x32xf32>
    %6 = vector.extract_strided_slice %4 {offsets = [0, 0], sizes = [16, 32], strides = [1, 1]} : vector<22x32xf32> to vector<16x32xf32>
    %7 = vector.extract_strided_slice %5 {offsets = [0, 0], sizes = [1, 32], strides = [1, 1]} : vector<7x32xf32> to vector<1x32xf32>
    %8 = vector.broadcast %7 : vector<1x32xf32> to vector<16x32xf32>
    %9 = arith.mulf %6, %8 : vector<16x32xf32>
    %10 = vector.extract_strided_slice %4 {offsets = [1, 0], sizes = [16, 32], strides = [1, 1]} : vector<22x32xf32> to vector<16x32xf32>
    %11 = vector.extract_strided_slice %5 {offsets = [1, 0], sizes = [1, 32], strides = [1, 1]} : vector<7x32xf32> to vector<1x32xf32>
    %12 = vector.broadcast %11 : vector<1x32xf32> to vector<16x32xf32>
    %13 = arith.mulf %10, %12 : vector<16x32xf32>
    %14 = arith.addf %9, %13 : vector<16x32xf32>
    %15 = vector.extract_strided_slice %4 {offsets = [2, 0], sizes = [16, 32], strides = [1, 1]} : vector<22x32xf32> to vector<16x32xf32>
    %16 = vector.extract_strided_slice %5 {offsets = [2, 0], sizes = [1, 32], strides = [1, 1]} : vector<7x32xf32> to vector<1x32xf32>
    %17 = vector.broadcast %16 : vector<1x32xf32> to vector<16x32xf32>
    %18 = arith.mulf %15, %17 : vector<16x32xf32>
    %19 = arith.addf %14, %18 : vector<16x32xf32>
    %20 = vector.extract_strided_slice %4 {offsets = [3, 0], sizes = [16, 32], strides = [1, 1]} : vector<22x32xf32> to vector<16x32xf32>
    %21 = vector.extract_strided_slice %5 {offsets = [3, 0], sizes = [1, 32], strides = [1, 1]} : vector<7x32xf32> to vector<1x32xf32>
    %22 = vector.broadcast %21 : vector<1x32xf32> to vector<16x32xf32>
    %23 = arith.mulf %20, %22 : vector<16x32xf32>
    %24 = arith.addf %19, %23 : vector<16x32xf32>
    %25 = vector.extract_strided_slice %4 {offsets = [4, 0], sizes = [16, 32], strides = [1, 1]} : vector<22x32xf32> to vector<16x32xf32>
    %26 = vector.extract_strided_slice %5 {offsets = [4, 0], sizes = [1, 32], strides = [1, 1]} : vector<7x32xf32> to vector<1x32xf32>
    %27 = vector.broadcast %26 : vector<1x32xf32> to vector<16x32xf32>
    %28 = arith.mulf %25, %27 : vector<16x32xf32>
    %29 = arith.addf %24, %28 : vector<16x32xf32>
    %30 = vector.extract_strided_slice %4 {offsets = [5, 0], sizes = [16, 32], strides = [1, 1]} : vector<22x32xf32> to vector<16x32xf32>
    %31 = vector.extract_strided_slice %5 {offsets = [5, 0], sizes = [1, 32], strides = [1, 1]} : vector<7x32xf32> to vector<1x32xf32>
    %32 = vector.broadcast %31 : vector<1x32xf32> to vector<16x32xf32>
    %33 = arith.mulf %30, %32 : vector<16x32xf32>
    %34 = arith.addf %29, %33 : vector<16x32xf32>
    %35 = vector.extract_strided_slice %4 {offsets = [6, 0], sizes = [16, 32], strides = [1, 1]} : vector<22x32xf32> to vector<16x32xf32>
    %36 = vector.extract_strided_slice %5 {offsets = [6, 0], sizes = [1, 32], strides = [1, 1]} : vector<7x32xf32> to vector<1x32xf32>
    %37 = vector.broadcast %36 : vector<1x32xf32> to vector<16x32xf32>
    %38 = arith.mulf %35, %37 : vector<16x32xf32>
    %39 = arith.addf %34, %38 : vector<16x32xf32>
    %c0_4 = arith.constant 0 : index
    %c0_5 = arith.constant 0 : index
    %40 = vector.load %arg3[%c0_4, %c0_5] : memref<1x32xf32, #tpu.memory_space<vmem>>, vector<1x32xf32>
    %41 = vector.broadcast %40 : vector<1x32xf32> to vector<16x32xf32>
    %42 = arith.mulf %39, %41 : vector<16x32xf32>
    %c0_6 = arith.constant 0 : index
    %c0_7 = arith.constant 0 : index
    %43 = vector.load %arg4[%c0_6, %c0_7] : memref<1x32xf32, #tpu.memory_space<vmem>>, vector<1x32xf32>
    %44 = vector.broadcast %43 : vector<1x32xf32> to vector<16x32xf32>
    %45 = arith.addf %42, %44 : vector<16x32xf32>
    %46 = arith.negf %45 : vector<16x32xf32>
    %47 = math.exp %46 : vector<16x32xf32>
    %cst_8 = arith.constant 1.000000e+00 : f32
    %48 = vector.broadcast %cst_8 : f32 to vector<16x32xf32>
    %49 = arith.addf %48, %47 : vector<16x32xf32>
    %50 = arith.divf %48, %49 : vector<16x32xf32>
    %51 = arith.mulf %45, %50 : vector<16x32xf32>
    %52 = arith.truncf %51 : vector<16x32xf32> to vector<16x32xbf16>
    %c0_9 = arith.constant 0 : index
    %c0_10 = arith.constant 0 : index
    %c0_11 = arith.constant 0 : index
    %53 = vector.load %arg5[%c0_9, %c0_10, %c0_11] : memref<1x16x32xbf16, #tpu.memory_space<vmem>>, vector<1x16x32xbf16>
    %54 = vector.shape_cast %53 : vector<1x16x32xbf16> to vector<16x32xbf16>
    %55 = vector.shape_cast %52 : vector<16x32xbf16> to vector<1x16x32xbf16>
    tpu.vector_store %arg5[%c0_9, %c0_10, %c0_11], %55 {strides = array<i32>} : memref<1x16x32xbf16, #tpu.memory_space<vmem>>, vector<1x16x32xbf16>,
    return
  }
  func.func @transform_0(%arg0: i32) -> (i32, i32, i32) {
    %c0_i32 = arith.constant 0 : i32
    %c0_i32_0 = arith.constant 0 : i32
    %c0_i32_1 = arith.constant 0 : i32
    return %arg0, %c0_i32, %c0_i32_0 : i32, i32, i32
  }
  func.func @transform_1(%arg0: i32) -> (i32, i32) {
    %c0_i32 = arith.constant 0 : i32
    %c0_i32_0 = arith.constant 0 : i32
    %c0_i32_1 = arith.constant 0 : i32
    return %c0_i32, %c0_i32_0 : i32, i32
  }
  func.func @transform_2(%arg0: i32) -> (i32, i32) {
    %c0_i32 = arith.constant 0 : i32
    %c0_i32_0 = arith.constant 0 : i32
    %c0_i32_1 = arith.constant 0 : i32
    return %c0_i32, %c0_i32_0 : i32, i32
  }
  func.func @transform_3(%arg0: i32) -> (i32, i32) {
    %c0_i32 = arith.constant 0 : i32
    %c0_i32_0 = arith.constant 0 : i32
    %c0_i32_1 = arith.constant 0 : i32
    return %c0_i32, %c0_i32_0 : i32, i32
  }
  func.func @transform_4(%arg0: i32) -> (i32, i32, i32) {
    %c0_i32 = arith.constant 0 : i32
    %c0_i32_0 = arith.constant 0 : i32
    %c0_i32_1 = arith.constant 0 : i32
    return %arg0, %c0_i32, %c0_i32_0 : i32, i32, i32
  }
}

module attributes {stable_mosaic.version = 11 : i64} {
  func.func @kernel(%arg0: i32, %arg1: i32, %arg2: memref<32x64xbf16, #tpu.memory_space<vmem>>, %arg3: memref<64x32xbf16, #tpu.memory_space<vmem>>, %arg4: memref<1x32xf32, #tpu.memory_space<vmem>>, %arg5: memref<32x32xf32, #tpu.memory_space<vmem>>, %arg6: memref<1x32xf32, #tpu.memory_space<vmem>>, %arg7: memref<1x32xf32, #tpu.memory_space<vmem>>, %arg8: memref<32x32xf32, #tpu.memory_space<vmem>>) attributes {dimension_semantics = [#tpu.dimension_semantics<parallel>, #tpu.dimension_semantics<parallel>], iteration_bounds = array<i64: 1, 1>, scalar_prefetch = 0 : i64, scratch_operands = 0 : i64, tpu.core_type = #tpu.core_type<tc>, window_params = [{transform_indices = @transform_0, window_bounds = array<i64: 32, 64>}, {transform_indices = @transform_1, window_bounds = array<i64: 64, 32>}, {transform_indices = @transform_2, window_bounds = array<i64: 1, 32>}, {transform_indices = @transform_3, window_bounds = array<i64: 32, 32>}, {transform_indices = @transform_4, window_bounds = array<i64: 1, 32>}, {transform_indices = @transform_5, window_bounds = array<i64: 1, 32>}, {transform_indices = @transform_6, window_bounds = array<i64: 32, 32>}]} {
    %c0 = arith.constant 0 : index
    %c0_0 = arith.constant 0 : index
    %0 = vector.load %arg2[%c0, %c0_0] : memref<32x64xbf16, #tpu.memory_space<vmem>>, vector<32x64xbf16>
    %c0_1 = arith.constant 0 : index
    %c0_2 = arith.constant 0 : index
    %1 = vector.load %arg3[%c0_1, %c0_2] : memref<64x32xbf16, #tpu.memory_space<vmem>>, vector<64x32xbf16>
    %cst = arith.constant dense<0.000000e+00> : vector<32x32xf32>
    %2 = tpu.matmul %0, %1, %cst {dimension_numbers = #tpu.dot_dimension_numbers<[1], [0], [0], [1], [0, 0, 1, 1], [], []>} : vector<32x64xbf16>, vector<64x32xbf16>, vector<32x32xf32> -> vector<32x32xf32>
    %c0_3 = arith.constant 0 : index
    %c0_4 = arith.constant 0 : index
    %3 = vector.load %arg4[%c0_3, %c0_4] : memref<1x32xf32, #tpu.memory_space<vmem>>, vector<1x32xf32>
    %4 = vector.broadcast %3 : vector<1x32xf32> to vector<32x32xf32>
    %5 = arith.addf %2, %4 : vector<32x32xf32>
    %c0_5 = arith.constant 0 : index
    %c0_6 = arith.constant 0 : index
    %6 = vector.load %arg5[%c0_5, %c0_6] : memref<32x32xf32, #tpu.memory_space<vmem>>, vector<32x32xf32>
    %cst_7 = arith.constant 5.000000e-01 : f32
    %7 = vector.broadcast %cst_7 : f32 to vector<32x32xf32>
    %8 = arith.mulf %7, %5 : vector<32x32xf32>
    %9 = arith.addf %6, %8 : vector<32x32xf32>
    %cst_8 = arith.constant dense<0.000000e+00> : vector<32xf32>
    %10 = vector.multi_reduction <add>, %9, %cst_8 [1] : vector<32x32xf32> to vector<32xf32>
    %11 = vector.shape_cast %10 : vector<32xf32> to vector<32x1xf32>
    %cst_9 = arith.constant 3.200000e+01 : f32
    %12 = vector.broadcast %cst_9 : f32 to vector<32x1xf32>
    %13 = arith.divf %11, %12 : vector<32x1xf32>
    %14 = vector.broadcast %13 : vector<32x1xf32> to vector<32x32xf32>
    %15 = arith.subf %9, %14 : vector<32x32xf32>
    %16 = arith.mulf %15, %15 : vector<32x32xf32>
    %cst_10 = arith.constant dense<0.000000e+00> : vector<32xf32>
    %17 = vector.multi_reduction <add>, %16, %cst_10 [1] : vector<32x32xf32> to vector<32xf32>
    %18 = vector.shape_cast %17 : vector<32xf32> to vector<32x1xf32>
    %cst_11 = arith.constant 3.200000e+01 : f32
    %19 = vector.broadcast %cst_11 : f32 to vector<32x1xf32>
    %20 = arith.divf %18, %19 : vector<32x1xf32>
    %cst_12 = arith.constant 9.99999996E-13 : f32
    %21 = vector.broadcast %cst_12 : f32 to vector<32x1xf32>
    %22 = arith.addf %20, %21 : vector<32x1xf32>
    %23 = math.rsqrt %22 : vector<32x1xf32>
    %24 = vector.broadcast %23 : vector<32x1xf32> to vector<32x32xf32>
    %25 = arith.mulf %15, %24 : vector<32x32xf32>
    %c0_13 = arith.constant 0 : index
    %c0_14 = arith.constant 0 : index
    %26 = vector.load %arg6[%c0_13, %c0_14] : memref<1x32xf32, #tpu.memory_space<vmem>>, vector<1x32xf32>
    %27 = vector.broadcast %26 : vector<1x32xf32> to vector<32x32xf32>
    %28 = arith.mulf %25, %27 : vector<32x32xf32>
    %c0_15 = arith.constant 0 : index
    %c0_16 = arith.constant 0 : index
    %29 = vector.load %arg7[%c0_15, %c0_16] : memref<1x32xf32, #tpu.memory_space<vmem>>, vector<1x32xf32>
    %30 = vector.broadcast %29 : vector<1x32xf32> to vector<32x32xf32>
    %31 = arith.addf %28, %30 : vector<32x32xf32>
    %c0_17 = arith.constant 0 : index
    %c0_18 = arith.constant 0 : index
    %32 = vector.load %arg8[%c0_17, %c0_18] : memref<32x32xf32, #tpu.memory_space<vmem>>, vector<32x32xf32>
    tpu.vector_store %arg8[%c0_17, %c0_18], %31 {strides = array<i32>} : memref<32x32xf32, #tpu.memory_space<vmem>>, vector<32x32xf32>,
    return
  }
  func.func @transform_0(%arg0: i32, %arg1: i32) -> (i32, i32) {
    %c0_i32 = arith.constant 0 : i32
    %c0_i32_0 = arith.constant 0 : i32
    return %arg0, %c0_i32 : i32, i32
  }
  func.func @transform_1(%arg0: i32, %arg1: i32) -> (i32, i32) {
    %c0_i32 = arith.constant 0 : i32
    %c0_i32_0 = arith.constant 0 : i32
    return %c0_i32, %arg1 : i32, i32
  }
  func.func @transform_2(%arg0: i32, %arg1: i32) -> (i32, i32) {
    %c0_i32 = arith.constant 0 : i32
    %c0_i32_0 = arith.constant 0 : i32
    return %c0_i32, %arg1 : i32, i32
  }
  func.func @transform_3(%arg0: i32, %arg1: i32) -> (i32, i32) {
    %c0_i32 = arith.constant 0 : i32
    return %arg0, %arg1 : i32, i32
  }
  func.func @transform_4(%arg0: i32, %arg1: i32) -> (i32, i32) {
    %c0_i32 = arith.constant 0 : i32
    %c0_i32_0 = arith.constant 0 : i32
    return %c0_i32, %arg1 : i32, i32
  }
  func.func @transform_5(%arg0: i32, %arg1: i32) -> (i32, i32) {
    %c0_i32 = arith.constant 0 : i32
    %c0_i32_0 = arith.constant 0 : i32
    return %c0_i32, %arg1 : i32, i32
  }
  func.func @transform_6(%arg0: i32, %arg1: i32) -> (i32, i32) {
    %c0_i32 = arith.constant 0 : i32
    return %arg0, %arg1 : i32, i32
  }
}

module attributes {stable_mosaic.version = 11 : i64} {
  func.func @_layernorm_kernel(%arg0: i32, %arg1: memref<32x32xf32, #tpu.memory_space<vmem>>, %arg2: memref<1x32xf32, #tpu.memory_space<vmem>>, %arg3: memref<1x32xf32, #tpu.memory_space<vmem>>, %arg4: memref<32x32xf32, #tpu.memory_space<vmem>>) attributes {dimension_semantics = [#tpu.dimension_semantics<parallel>], iteration_bounds = array<i64: 1>, scalar_prefetch = 0 : i64, scratch_operands = 0 : i64, tpu.core_type = #tpu.core_type<tc>, window_params = [{transform_indices = @transform_0, window_bounds = array<i64: 32, 32>}, {pipeline_mode = #tpu.pipeline_mode<synchronous>, transform_indices = @transform_1, window_bounds = array<i64: 1, 32>}, {pipeline_mode = #tpu.pipeline_mode<synchronous>, transform_indices = @transform_2, window_bounds = array<i64: 1, 32>}, {transform_indices = @transform_3, window_bounds = array<i64: 32, 32>}]} {
    %c0 = arith.constant 0 : index
    %c0_0 = arith.constant 0 : index
    %0 = vector.load %arg1[%c0, %c0_0] : memref<32x32xf32, #tpu.memory_space<vmem>>, vector<32x32xf32>
    %cst = arith.constant dense<0.000000e+00> : vector<32xf32>
    %1 = vector.multi_reduction <add>, %0, %cst [1] : vector<32x32xf32> to vector<32xf32>
    %2 = vector.shape_cast %1 : vector<32xf32> to vector<32x1xf32>
    %cst_1 = arith.constant 3.200000e+01 : f32
    %3 = vector.broadcast %cst_1 : f32 to vector<32x1xf32>
    %4 = arith.divf %2, %3 : vector<32x1xf32>
    %5 = vector.broadcast %4 : vector<32x1xf32> to vector<32x32xf32>
    %6 = arith.subf %0, %5 : vector<32x32xf32>
    %7 = arith.mulf %6, %6 : vector<32x32xf32>
    %cst_2 = arith.constant dense<0.000000e+00> : vector<32xf32>
    %8 = vector.multi_reduction <add>, %7, %cst_2 [1] : vector<32x32xf32> to vector<32xf32>
    %9 = vector.shape_cast %8 : vector<32xf32> to vector<32x1xf32>
    %cst_3 = arith.constant 3.200000e+01 : f32
    %10 = vector.broadcast %cst_3 : f32 to vector<32x1xf32>
    %11 = arith.divf %9, %10 : vector<32x1xf32>
    %cst_4 = arith.constant 9.99999996E-13 : f32
    %12 = vector.broadcast %cst_4 : f32 to vector<32x1xf32>
    %13 = arith.addf %11, %12 : vector<32x1xf32>
    %14 = math.rsqrt %13 : vector<32x1xf32>
    %15 = vector.broadcast %14 : vector<32x1xf32> to vector<32x32xf32>
    %16 = arith.mulf %6, %15 : vector<32x32xf32>
    %c0_5 = arith.constant 0 : index
    %c0_6 = arith.constant 0 : index
    %17 = vector.load %arg2[%c0_5, %c0_6] : memref<1x32xf32, #tpu.memory_space<vmem>>, vector<1x32xf32>
    %18 = vector.broadcast %17 : vector<1x32xf32> to vector<32x32xf32>
    %19 = arith.mulf %16, %18 : vector<32x32xf32>
    %c0_7 = arith.constant 0 : index
    %c0_8 = arith.constant 0 : index
    %20 = vector.load %arg3[%c0_7, %c0_8] : memref<1x32xf32, #tpu.memory_space<vmem>>, vector<1x32xf32>
    %21 = vector.broadcast %20 : vector<1x32xf32> to vector<32x32xf32>
    %22 = arith.addf %19, %21 : vector<32x32xf32>
    %c0_9 = arith.constant 0 : index
    %c0_10 = arith.constant 0 : index
    %23 = vector.load %arg4[%c0_9, %c0_10] : memref<32x32xf32, #tpu.memory_space<vmem>>, vector<32x32xf32>
    tpu.vector_store %arg4[%c0_9, %c0_10], %22 {strides = array<i32>} : memref<32x32xf32, #tpu.memory_space<vmem>>, vector<32x32xf32>,
    return
  }
  func.func @transform_0(%arg0: i32) -> (i32, i32) {
    %c0_i32 = arith.constant 0 : i32
    %c0_i32_0 = arith.constant 0 : i32
    return %arg0, %c0_i32 : i32, i32
  }
  func.func @transform_1(%arg0: i32) -> (i32, i32) {
    %c0_i32 = arith.constant 0 : i32
    %c0_i32_0 = arith.constant 0 : i32
    %c0_i32_1 = arith.constant 0 : i32
    return %c0_i32, %c0_i32_0 : i32, i32
  }
  func.func @transform_2(%arg0: i32) -> (i32, i32) {
    %c0_i32 = arith.constant 0 : i32
    %c0_i32_0 = arith.constant 0 : i32
    %c0_i32_1 = arith.constant 0 : i32
    return %c0_i32, %c0_i32_0 : i32, i32
  }
  func.func @transform_3(%arg0: i32) -> (i32, i32) {
    %c0_i32 = arith.constant 0 : i32
    %c0_i32_0 = arith.constant 0 : i32
    return %arg0, %c0_i32 : i32, i32
  }
}

</mosaic_0001>

<llo_original>
// kernel: conformer_forward.22
$region0: #{conformer_forward.22}
  #allocation0 [shape = 'u32[]', space=smem, size = 0x4, offset = 0x4, fixed_abs, tag = 'smem constant byte address 0x4 - core index']
  #allocation1 [shape = 'u32[144,128]{1,0:T(1,128)}', space=vmem, size = 0x12000, scoped, tag = 'internal scratch']
  %s0 = inlined_call_operand.vmem [shape: f32[32,16], index: 0, kind: input, shape index: {}]
  %s1 = inlined_call_operand.vmem [shape: bf16[16,32], index: 1, kind: input, shape index: {}]
  %s2 = inlined_call_operand.vmem [shape: f32[1,32], index: 2, kind: input, shape index: {}]
  %s3 = inlined_call_operand.vmem [shape: f32[32,32], index: 3, kind: output, shape index: {}]
  %s4 = sld [smem:[#allocation0]]
  $region22: #{conformer_forward.22} parent=0
    _
  %s6 = ssub.s32 1, %s4
  %s7 = scalar_select 0, %s6, %s4
  // Predicated region
  $region2: #{conformer_forward.22} parent=0 // pred_check
    _
  $region3: #{conformer_forward.22} parent=0 // pred_check_branch
    %9 = sbr.rel (0) target = $region5
  $region4: #{conformer_forward.22} parent=0 // pred_region
    _
  $region5: #{conformer_forward.22} parent=0 // pred_fallthru
    _
  // Predicated region
  $region6: #{conformer_forward.22} parent=0 // pred_check
    _
  $region7: #{conformer_forward.22} parent=0 // pred_check_branch
    %11 = sbr.rel (0) target = $region9
  $region8: #{conformer_forward.22} parent=0 // pred_region
    _
  $region9: #{conformer_forward.22} parent=0 // pred_fallthru
    _
  // Predicated region
  $region10: #{conformer_forward.22} parent=0 // pred_check
    _
  $region11: #{conformer_forward.22} parent=0 // pred_check_branch
    %13 = sbr.rel (0) target = $region13
  $region12: #{conformer_forward.22} parent=0 // pred_region
    _
  $region13: #{conformer_forward.22} parent=0 // pred_fallthru
    _
  %v15 = vld [vmem:[%s0] sm:$0xff]
  %v16 = vld [vmem:[%s0 + $0x8] sm:$0xff]
  %v17 = vld [vmem:[%s0 + $0x10] sm:$0xff]
  %v18 = vld [vmem:[%s0 + $0x18] sm:$0xff]
  %v19 = vpack.c.bf16 %v16, %v15
  %v20 = vpack.c.bf16 %v18, %v17
  %v21 = vld [vmem:[%s1] sm:$0xf]
  %v22 = vld [vmem:[%s1 + $0x4] sm:$0xf]
  %v23 = vld [vmem:[%s2] sm:$0x1]
  %v25 = vlaneseq
  %v26 = vshrl.u32 %v25, 7
  %v27 = vsub.s32 0, %v26
  %v28 = vrot.slane %v23, %v27
  %v32 = vunpack.c.l.b16 %v21
  %v33 = vunpack.c.l.b16 %v22
  %v34 = vpack.c.b16 %v33, %v32
  %vm36 = vcmask 130048
  %v38 = vsel %vm36, %v19, 0
  %v41 = vsel %vm36, %v20, 0
  %43 = vmatprep.subr.bf16.mxu0 0
  %44 = vmatpush1.bf16.msra.mxu0 0
  %45 = vmatprep.subr.bf16.mxu0 0
  %46 = vmatpush1.bf16.msra.mxu0 0
  %47 = vmatprep.subr.bf16.mxu0 0
  %48 = vmatpush1.bf16.msra.mxu0 0
  %49 = vmatprep.subr.bf16.mxu0 0
  %50 = vmatpush1.bf16.msra.mxu0 0
  %51 = vmatprep.subr.bf16.mxu0 0
  %52 = vmatpush1.bf16.msra.mxu0 0
  %53 = vmatprep.subr.bf16.mxu0 0
  %54 = vmatpush1.bf16.msra.mxu0 0
  %55 = vmatprep.subr.bf16.mxu0 0
  %56 = vmatpush1.bf16.msra.mxu0 0
  %57 = vmatprep.subr.bf16.mxu0 0
  %58 = vmatpush1.bf16.msra.mxu0 %v34
  %59 = vmatprep.subr.bf16.mxu0 0
  %60 = vmatpush2.bf16.msra.mxu0 0
  %61 = vmatprep.subr.bf16.mxu0 0
  %62 = vmatpush2.bf16.msra.mxu0 0
  %63 = vmatprep.subr.bf16.mxu0 0
  %64 = vmatpush2.bf16.msra.mxu0 0
  %65 = vmatprep.subr.bf16.mxu0 0
  %66 = vmatpush2.bf16.msra.mxu0 0
  %67 = vmatprep.subr.bf16.mxu0 0
  %68 = vmatpush2.bf16.msra.mxu0 0
  %69 = vmatprep.subr.bf16.mxu0 0
  %70 = vmatpush2.bf16.msra.mxu0 0
  %71 = vmatprep.subr.bf16.mxu0 0
  %72 = vmatpush2.bf16.msra.mxu0 0
  %73 = vmatprep.subr.bf16.mxu0 0
  %74 = vmatpush2.bf16.msra.mxu0 0
  %75 = vmatprep.mubr.bf16.mxu0 0
  %76 = vmatmul.mubr.bf16.gmra.mxu0 %v38
  %v77 = vpop.f32.mrf.mxu0
  %v78 = vadd.f32 %v28, %v77
  %v79 = vpop.f32.mrf.mxu0
  %v80 = vpop.f32.mrf.mxu0
  %v81 = vadd.f32 %v28, %v80
  %v82 = vpop.f32.mrf.mxu0
  %83 = vmatprep.mubr.bf16.mxu0 0
  %84 = vmatmul.mubr.bf16.gmra.mxu0 %v41
  %v85 = vpop.f32.mrf.mxu0
  %v86 = vadd.f32 %v28, %v85
  %v87 = vpop.f32.mrf.mxu0
  %v88 = vpop.f32.mrf.mxu0
  %v89 = vadd.f32 %v28, %v88
  %v90 = vpop.f32.mrf.mxu0
  %91 = vdwg.mxu0
  %vm92 = vcmask 261120
  %93 = vst.msk [vmem:[%s3] sm:$0xff] %vm92, %v78
  %94 = vst.msk [vmem:[%s3 + $0x8] sm:$0xff] %vm92, %v81
  %95 = vst.msk [vmem:[%s3 + $0x10] sm:$0xff] %vm92, %v86
  %96 = vst.msk [vmem:[%s3 + $0x18] sm:$0xff] %vm92, %v89
  // Predicated region
  $region14: #{conformer_forward.22} parent=0 // pred_check
    _
  $region15: #{conformer_forward.22} parent=0 // pred_check_branch
    %98 = sbr.rel (0) target = $region17
  $region16: #{conformer_forward.22} parent=0 // pred_region
    _
  $region17: #{conformer_forward.22} parent=0 // pred_fallthru
    _
  // Predicated region
  $region18: #{conformer_forward.22} parent=0 // pred_check
    _
  $region19: #{conformer_forward.22} parent=0 // pred_check_branch
    %100 = sbr.rel (0) target = $region21
  $region20: #{conformer_forward.22} parent=0 // pred_region
    _
  $region21: #{conformer_forward.22} parent=0 // pred_fallthru
    _

// kernel: conformer_forward.24
$region0: #{conformer_forward.24}
  #allocation0 [shape = 'u32[]', space=smem, size = 0x4, offset = 0x4, fixed_abs, tag = 'smem constant byte address 0x4 - core index']
  #allocation1 [shape = 'u32[144,128]{1,0:T(1,128)}', space=vmem, size = 0x12000, scoped, tag = 'internal scratch']
  %s0 = inlined_call_operand.vmem [shape: bf16[32,64], index: 0, kind: input, shape index: {}]
  %s1 = inlined_call_operand.vmem [shape: bf16[64,32], index: 1, kind: input, shape index: {}]
  %s2 = inlined_call_operand.vmem [shape: f32[1,32], index: 2, kind: input, shape index: {}]
  %s3 = inlined_call_operand.vmem [shape: f32[32,32], index: 3, kind: input, shape index: {}]
  %s4 = inlined_call_operand.vmem [shape: f32[32,32], index: 4, kind: output, shape index: {}]
  %s5 = sld [smem:[#allocation0]]
  $region26: #{conformer_forward.24} parent=0
    _
  %s7 = ssub.s32 1, %s5
  %s8 = scalar_select 0, %s7, %s5
  // Predicated region
  $region2: #{conformer_forward.24} parent=0 // pred_check
    _
  $region3: #{conformer_forward.24} parent=0 // pred_check_branch
    %10 = sbr.rel (0) target = $region5
  $region4: #{conformer_forward.24} parent=0 // pred_region
    _
  $region5: #{conformer_forward.24} parent=0 // pred_fallthru
    _
  // Predicated region
  $region6: #{conformer_forward.24} parent=0 // pred_check
    _
  $region7: #{conformer_forward.24} parent=0 // pred_check_branch
    %12 = sbr.rel (0) target = $region9
  $region8: #{conformer_forward.24} parent=0 // pred_region
    _
  $region9: #{conformer_forward.24} parent=0 // pred_fallthru
    _
  // Predicated region
  $region10: #{conformer_forward.24} parent=0 // pred_check
    _
  $region11: #{conformer_forward.24} parent=0 // pred_check_branch
    %14 = sbr.rel (0) target = $region13
  $region12: #{conformer_forward.24} parent=0 // pred_region
    _
  $region13: #{conformer_forward.24} parent=0 // pred_fallthru
    _
  // Predicated region
  $region14: #{conformer_forward.24} parent=0 // pred_check
    _
  $region15: #{conformer_forward.24} parent=0 // pred_check_branch
    %16 = sbr.rel (0) target = $region17
  $region16: #{conformer_forward.24} parent=0 // pred_region
    _
  $region17: #{conformer_forward.24} parent=0 // pred_fallthru
    _
  %v18 = vld [vmem:[%s0] sm:$0xf]
  %v19 = vld [vmem:[%s0 + $0x4] sm:$0xf]
  %v20 = vld [vmem:[%s0 + $0x8] sm:$0xf]
  %v21 = vld [vmem:[%s0 + $0xc] sm:$0xf]
  %v22 = vld [vmem:[%s1] sm:$0xf]
  %v23 = vld [vmem:[%s1 + $0x4] sm:$0xf]
  %v24 = vld [vmem:[%s1 + $0x8] sm:$0xf]
  %v25 = vld [vmem:[%s1 + $0xc] sm:$0xf]
  %v26 = vld [vmem:[%s1 + $0x10] sm:$0xf]
  %v27 = vld [vmem:[%s1 + $0x14] sm:$0xf]
  %v28 = vld [vmem:[%s1 + $0x18] sm:$0xf]
  %v29 = vld [vmem:[%s1 + $0x1c] sm:$0xf]
  %v30 = vld [vmem:[%s2] sm:$0x1]
  %v32 = vlaneseq
  %v33 = vshrl.u32 %v32, 7
  %v34 = vsub.s32 0, %v33
  %v35 = vrot.slane %v30, %v34
  %v41 = vunpack.c.l.b16 %v18
  %v42 = vunpack.c.l.b16 %v19
  %v43 = vunpack.c.l.b16 %v20
  %v44 = vunpack.c.l.b16 %v21
  %v45 = vpack.c.b16 %v42, %v41
  %v46 = vpack.c.b16 %v44, %v43
  %v55 = vunpack.c.l.b16 %v22
  %v56 = vunpack.c.l.b16 %v23
  %v57 = vunpack.c.l.b16 %v24
  %v58 = vunpack.c.l.b16 %v25
  %v59 = vunpack.c.l.b16 %v26
  %v60 = vunpack.c.l.b16 %v27
  %v61 = vunpack.c.l.b16 %v28
  %v62 = vunpack.c.l.b16 %v29
  %v63 = vpack.c.b16 %v56, %v55
  %v64 = vpack.c.b16 %v58, %v57
  %v65 = vpack.c.b16 %v60, %v59
  %v66 = vpack.c.b16 %v62, %v61
  %vm71 = vcmask 523264
  %v73 = vsel %vm71, %v45, 0
  %v76 = vsel %vm71, %v46, 0
  %78 = vmatprep.subr.bf16.mxu0 0
  %79 = vmatpush1.bf16.msra.mxu0 0
  %80 = vmatprep.subr.bf16.mxu0 0
  %81 = vmatpush1.bf16.msra.mxu0 0
  %82 = vmatprep.subr.bf16.mxu0 0
  %83 = vmatpush1.bf16.msra.mxu0 0
  %84 = vmatprep.subr.bf16.mxu0 0
  %85 = vmatpush1.bf16.msra.mxu0 0
  %86 = vmatprep.subr.bf16.mxu0 0
  %87 = vmatpush1.bf16.msra.mxu0 %v66
  %88 = vmatprep.subr.bf16.mxu0 0
  %89 = vmatpush1.bf16.msra.mxu0 %v65
  %90 = vmatprep.subr.bf16.mxu0 0
  %91 = vmatpush1.bf16.msra.mxu0 %v64
  %92 = vmatprep.subr.bf16.mxu0 0
  %93 = vmatpush1.bf16.msra.mxu0 %v63
  %94 = vmatprep.subr.bf16.mxu0 0
  %95 = vmatpush2.bf16.msra.mxu0 0
  %96 = vmatprep.subr.bf16.mxu0 0
  %97 = vmatpush2.bf16.msra.mxu0 0
  %98 = vmatprep.subr.bf16.mxu0 0
  %99 = vmatpush2.bf16.msra.mxu0 0
  %100 = vmatprep.subr.bf16.mxu0 0
  %101 = vmatpush2.bf16.msra.mxu0 0
  %102 = vmatprep.subr.bf16.mxu0 0
  %103 = vmatpush2.bf16.msra.mxu0 0
  %104 = vmatprep.subr.bf16.mxu0 0
  %105 = vmatpush2.bf16.msra.mxu0 0
  %106 = vmatprep.subr.bf16.mxu0 0
  %107 = vmatpush2.bf16.msra.mxu0 0
  %108 = vmatprep.subr.bf16.mxu0 0
  %109 = vmatpush2.bf16.msra.mxu0 0
  %110 = vmatprep.mubr.bf16.mxu0 0
  %111 = vmatmul.mubr.bf16.gmra.mxu0 %v73
  %v112 = vpop.f32.mrf.mxu0
  %v113 = vadd.f32 %v35, %v112
  %v114 = vpop.f32.mrf.mxu0
  %v115 = vpop.f32.mrf.mxu0
  %v116 = vadd.f32 %v35, %v115
  %v117 = vpop.f32.mrf.mxu0
  %118 = vmatprep.mubr.bf16.mxu0 0
  %119 = vmatmul.mubr.bf16.gmra.mxu0 %v76
  %v120 = vpop.f32.mrf.mxu0
  %v121 = vadd.f32 %v35, %v120
  %v122 = vpop.f32.mrf.mxu0
  %v123 = vpop.f32.mrf.mxu0
  %v124 = vadd.f32 %v35, %v123
  %v125 = vpop.f32.mrf.mxu0
  %126 = vdwg.mxu0
  %v127 = vld [vmem:[%s3] sm:$0xff]
  %v128 = vld [vmem:[%s3 + $0x8] sm:$0xff]
  %v129 = vld [vmem:[%s3 + $0x10] sm:$0xff]
  %v130 = vld [vmem:[%s3 + $0x18] sm:$0xff]
  %v131 = vmul.f32 %v113, 0.5
  %v132 = vmul.f32 %v116, 0.5
  %v133 = vmul.f32 %v121, 0.5
  %v134 = vmul.f32 %v124, 0.5
  %v135 = vadd.f32 %v127, %v131
  %v136 = vadd.f32 %v128, %v132
  %v137 = vadd.f32 %v129, %v133
  %v138 = vadd.f32 %v130, %v134
  %vm139 = vcmask 261120
  %140 = vst.msk [vmem:[%s4] sm:$0xff] %vm139, %v135
  %141 = vst.msk [vmem:[%s4 + $0x8] sm:$0xff] %vm139, %v136
  %142 = vst.msk [vmem:[%s4 + $0x10] sm:$0xff] %vm139, %v137
  %143 = vst.msk [vmem:[%s4 + $0x18] sm:$0xff] %vm139, %v138
  // Predicated region
  $region18: #{conformer_forward.24} parent=0 // pred_check
    _
  $region19: #{conformer_forward.24} parent=0 // pred_check_branch
    %145 = sbr.rel (0) target = $region21
  $region20: #{conformer_forward.24} parent=0 // pred_region
    _
  $region21: #{conformer_forward.24} parent=0 // pred_fallthru
    _
  // Predicated region
  $region22: #{conformer_forward.24} parent=0 // pred_check
    _
  $region23: #{conformer_forward.24} parent=0 // pred_check_branch
    %147 = sbr.rel (0) target = $region25
  $region24: #{conformer_forward.24} parent=0 // pred_region
    _
  $region25: #{conformer_forward.24} parent=0 // pred_fallthru
    _

// kernel: conformer_forward.23
$region0: #{conformer_forward.23}
  #allocation0 [shape = 'u32[]', space=smem, size = 0x4, offset = 0x4, fixed_abs, tag = 'smem constant byte address 0x4 - core index']
  #allocation1 [shape = 'u32[144,128]{1,0:T(1,128)}', space=vmem, size = 0x12000, scoped, tag = 'internal scratch']
  %s0 = inlined_call_operand.vmem [shape: f32[32,32], index: 0, kind: input, shape index: {}]
  %s1 = inlined_call_operand.vmem [shape: f32[1,32], index: 1, kind: input, shape index: {}]
  %s2 = inlined_call_operand.vmem [shape: f32[1,32], index: 2, kind: input, shape index: {}]
  %s3 = inlined_call_operand.vmem [shape: bf16[32,64], index: 3, kind: input, shape index: {}]
  %s4 = inlined_call_operand.vmem [shape: f32[1,64], index: 4, kind: input, shape index: {}]
  %s5 = inlined_call_operand.vmem [shape: bf16[32,64], index: 5, kind: output, shape index: {}]
  %s6 = sld [smem:[#allocation0]]
  $region30: #{conformer_forward.23} parent=0
    _
  %s8 = ssub.s32 1, %s6
  %s9 = scalar_select 0, %s8, %s6
  // Predicated region
  $region2: #{conformer_forward.23} parent=0 // pred_check
    _
  $region3: #{conformer_forward.23} parent=0 // pred_check_branch
    %11 = sbr.rel (0) target = $region5
  $region4: #{conformer_forward.23} parent=0 // pred_region
    _
  $region5: #{conformer_forward.23} parent=0 // pred_fallthru
    _
  // Predicated region
  $region6: #{conformer_forward.23} parent=0 // pred_check
    _
  $region7: #{conformer_forward.23} parent=0 // pred_check_branch
    %13 = sbr.rel (0) target = $region9
  $region8: #{conformer_forward.23} parent=0 // pred_region
    _
  $region9: #{conformer_forward.23} parent=0 // pred_fallthru
    _
  // Predicated region
  $region10: #{conformer_forward.23} parent=0 // pred_check
    _
  $region11: #{conformer_forward.23} parent=0 // pred_check_branch
    %15 = sbr.rel (0) target = $region13
  $region12: #{conformer_forward.23} parent=0 // pred_region
    _
  $region13: #{conformer_forward.23} parent=0 // pred_fallthru
    _
  // Predicated region
  $region14: #{conformer_forward.23} parent=0 // pred_check
    _
  $region15: #{conformer_forward.23} parent=0 // pred_check_branch
    %17 = sbr.rel (0) target = $region17
  $region16: #{conformer_forward.23} parent=0 // pred_region
    _
  $region17: #{conformer_forward.23} parent=0 // pred_fallthru
    _
  // Predicated region
  $region18: #{conformer_forward.23} parent=0 // pred_check
    _
  $region19: #{conformer_forward.23} parent=0 // pred_check_branch
    %19 = sbr.rel (0) target = $region21
  $region20: #{conformer_forward.23} parent=0 // pred_region
    _
  $region21: #{conformer_forward.23} parent=0 // pred_fallthru
    _
  %v21 = vld [vmem:[%s0] sm:$0xff]
  %v22 = vld [vmem:[%s0 + $0x8] sm:$0xff]
  %v23 = vld [vmem:[%s0 + $0x10] sm:$0xff]
  %v24 = vld [vmem:[%s0 + $0x18] sm:$0xff]
  %vm25 = vcmask 261120
  %v26 = vsel %vm25, %v21, 0.0
  %27 = vadd.xlane.f32.xlu0 %v26
  %v28 = vpop.xlane.xlu0 %27
  %v29 = vsel %vm25, %v22, 0.0
  %30 = vadd.xlane.f32.xlu0 %v29
  %v31 = vpop.xlane.xlu0 %30
  %v32 = vsel %vm25, %v23, 0.0
  %33 = vadd.xlane.f32.xlu0 %v32
  %v34 = vpop.xlane.xlu0 %33
  %v35 = vsel %vm25, %v24, 0.0
  %36 = vadd.xlane.f32.xlu0 %v35
  %v37 = vpop.xlane.xlu0 %36
  %v38 = vrcp.pop 32.0
  %v39 = vmul.f32 %v28, %v38
  %v40 = vmul.f32 %v31, %v38
  %v41 = vmul.f32 %v34, %v38
  %v42 = vmul.f32 %v37, %v38
  %v43 = vsub.f32 %v21, %v39
  %v44 = vsub.f32 %v22, %v40
  %v45 = vsub.f32 %v23, %v41
  %v46 = vsub.f32 %v24, %v42
  %v47 = vmul.f32 %v43, %v43
  %v48 = vmul.f32 %v44, %v44
  %v49 = vmul.f32 %v45, %v45
  %v50 = vmul.f32 %v46, %v46
  %v51 = vsel %vm25, %v47, 0.0
  %52 = vadd.xlane.f32.xlu0 %v51
  %v53 = vpop.xlane.xlu0 %52
  %v54 = vsel %vm25, %v48, 0.0
  %55 = vadd.xlane.f32.xlu0 %v54
  %v56 = vpop.xlane.xlu0 %55
  %v57 = vsel %vm25, %v49, 0.0
  %58 = vadd.xlane.f32.xlu0 %v57
  %v59 = vpop.xlane.xlu0 %58
  %v60 = vsel %vm25, %v50, 0.0
  %61 = vadd.xlane.f32.xlu0 %v60
  %v62 = vpop.xlane.xlu0 %61
  %v63 = vmul.f32 %v53, %v38
  %v64 = vmul.f32 %v56, %v38
  %v65 = vmul.f32 %v59, %v38
  %v66 = vmul.f32 %v62, %v38
  %v67 = vadd.f32 %v63, 1e-12
  %v68 = vadd.f32 %v64, 1e-12
  %v69 = vadd.f32 %v65, 1e-12
  %v70 = vadd.f32 %v66, 1e-12
  %v71 = vrsqrt.pop %v67
  %v72 = vrsqrt.pop %v68
  %v73 = vrsqrt.pop %v69
  %v74 = vrsqrt.pop %v70
  %v75 = vmul.f32 %v43, %v71
  %v76 = vmul.f32 %v44, %v72
  %v77 = vmul.f32 %v45, %v73
  %v78 = vmul.f32 %v46, %v74
  %v79 = vld [vmem:[%s1] sm:$0x1]
  %v81 = vlaneseq
  %v82 = vshrl.u32 %v81, 7
  %v83 = vsub.s32 0, %v82
  %v84 = vrot.slane %v79, %v83
  %v86 = vmul.f32 %v75, %v84
  %v87 = vmul.f32 %v76, %v84
  %v88 = vmul.f32 %v77, %v84
  %v89 = vmul.f32 %v78, %v84
  %v90 = vld [vmem:[%s2] sm:$0x1]
  %v92 = vlaneseq
  %v93 = vshrl.u32 %v92, 7
  %v94 = vsub.s32 0, %v93
  %v95 = vrot.slane %v90, %v94
  %v97 = vadd.f32 %v86, %v95
  %v98 = vadd.f32 %v87, %v95
  %v99 = vadd.f32 %v88, %v95
  %v100 = vadd.f32 %v89, %v95
  %v101 = vpack.c.bf16 %v98, %v97
  %v102 = vpack.c.bf16 %v100, %v99
  %v103 = vld [vmem:[%s3] sm:$0xf]
  %v104 = vld [vmem:[%s3 + $0x4] sm:$0xf]
  %v105 = vld [vmem:[%s3 + $0x8] sm:$0xf]
  %v106 = vld [vmem:[%s3 + $0xc] sm:$0xf]
  %v107 = vld [vmem:[%s4] sm:$0x1]
  %v109 = vlaneseq
  %v110 = vshrl.u32 %v109, 7
  %v111 = vsub.s32 0, %v110
  %v112 = vrot.slane %v107, %v111
  %v118 = vunpack.c.l.b16 %v103
  %v119 = vunpack.c.l.b16 %v104
  %v120 = vunpack.c.l.b16 %v105
  %v121 = vunpack.c.l.b16 %v106
  %v122 = vpack.c.b16 %v119, %v118
  %v123 = vpack.c.b16 %v121, %v120
  %v127 = vsel %vm25, %v101, 0
  %v130 = vsel %vm25, %v102, 0
  %132 = vmatprep.subr.bf16.mxu0 0
  %133 = vmatpush1.bf16.msra.mxu0 0
  %134 = vmatprep.subr.bf16.mxu0 0
  %135 = vmatpush1.bf16.msra.mxu0 0
  %136 = vmatprep.subr.bf16.mxu0 0
  %137 = vmatpush1.bf16.msra.mxu0 0
  %138 = vmatprep.subr.bf16.mxu0 0
  %139 = vmatpush1.bf16.msra.mxu0 0
  %140 = vmatprep.subr.bf16.mxu0 0
  %141 = vmatpush1.bf16.msra.mxu0 0
  %142 = vmatprep.subr.bf16.mxu0 0
  %143 = vmatpush1.bf16.msra.mxu0 0
  %144 = vmatprep.subr.bf16.mxu0 0
  %145 = vmatpush1.bf16.msra.mxu0 %v123
  %146 = vmatprep.subr.bf16.mxu0 0
  %147 = vmatpush1.bf16.msra.mxu0 %v122
  %148 = vmatprep.subr.bf16.mxu0 0
  %149 = vmatpush2.bf16.msra.mxu0 0
  %150 = vmatprep.subr.bf16.mxu0 0
  %151 = vmatpush2.bf16.msra.mxu0 0
  %152 = vmatprep.subr.bf16.mxu0 0
  %153 = vmatpush2.bf16.msra.mxu0 0
  %154 = vmatprep.subr.bf16.mxu0 0
  %155 = vmatpush2.bf16.msra.mxu0 0
  %156 = vmatprep.subr.bf16.mxu0 0
  %157 = vmatpush2.bf16.msra.mxu0 0
  %158 = vmatprep.subr.bf16.mxu0 0
  %159 = vmatpush2.bf16.msra.mxu0 0
  %160 = vmatprep.subr.bf16.mxu0 0
  %161 = vmatpush2.bf16.msra.mxu0 0
  %162 = vmatprep.subr.bf16.mxu0 0
  %163 = vmatpush2.bf16.msra.mxu0 0
  %164 = vmatprep.mubr.bf16.mxu0 0
  %165 = vmatmul.mubr.bf16.gmra.mxu0 %v127
  %v166 = vpop.f32.mrf.mxu0
  %v167 = vadd.f32 %v112, %v166
  %v168 = vpop.f32.mrf.mxu0
  %v169 = vpop.f32.mrf.mxu0
  %v170 = vadd.f32 %v112, %v169
  %v171 = vpop.f32.mrf.mxu0
  %172 = vmatprep.mubr.bf16.mxu0 0
  %173 = vmatmul.mubr.bf16.gmra.mxu0 %v130
  %v174 = vpop.f32.mrf.mxu0
  %v175 = vadd.f32 %v112, %v174
  %v176 = vpop.f32.mrf.mxu0
  %v177 = vpop.f32.mrf.mxu0
  %v178 = vadd.f32 %v112, %v177
  %v179 = vpop.f32.mrf.mxu0
  %180 = vdwg.mxu0
  %v181 = vxor.u32 %v167, 2147483648
  %v182 = vxor.u32 %v170, 2147483648
  %v183 = vxor.u32 %v175, 2147483648
  %v184 = vxor.u32 %v178, 2147483648
  %v185 = vmul.f32 %v181, 1.442695
  %v186 = vpow.pop %v185
  %v187 = vmul.f32 %v182, 1.442695
  %v188 = vpow.pop %v187
  %v189 = vmul.f32 %v183, 1.442695
  %v190 = vpow.pop %v189
  %v191 = vmul.f32 %v184, 1.442695
  %v192 = vpow.pop %v191
  %v193 = vadd.f32 %v186, 1.0
  %v194 = vadd.f32 %v188, 1.0
  %v195 = vadd.f32 %v190, 1.0
  %v196 = vadd.f32 %v192, 1.0
  %v197 = vrcp.pop %v193
  %v198 = vmul.f32 1.0, %v197
  %v199 = vrcp.pop %v194
  %v200 = vmul.f32 1.0, %v199
  %v201 = vrcp.pop %v195
  %v202 = vmul.f32 1.0, %v201
  %v203 = vrcp.pop %v196
  %v204 = vmul.f32 1.0, %v203
  %v205 = vmul.f32 %v167, %v198
  %v206 = vmul.f32 %v170, %v200
  %v207 = vmul.f32 %v175, %v202
  %v208 = vmul.f32 %v178, %v204
  %v209 = vpack.c.bf16 %v206, %v205
  %v210 = vpack.c.bf16 %v208, %v207
  %v213 = vunpack.c.l.b16 %v209
  %v214 = vunpack.c.h.b16 %v209
  %v215 = vunpack.c.l.b16 %v210
  %v216 = vunpack.c.h.b16 %v210
  %v217 = vpack.c.b16 %v213, %v213
  %v218 = vpack.c.b16 %v214, %v214
  %v219 = vpack.c.b16 %v215, %v215
  %v220 = vpack.c.b16 %v216, %v216
  %vm225 = vcmask 519168
  %226 = vst.msk [vmem:[%s5] sm:$0xf] %vm225, %v217
  %227 = vst.msk [vmem:[%s5 + $0x4] sm:$0xf] %vm225, %v218
  %228 = vst.msk [vmem:[%s5 + $0x8] sm:$0xf] %vm225, %v219
  %229 = vst.msk [vmem:[%s5 + $0xc] sm:$0xf] %vm225, %v220
  // Predicated region
  $region22: #{conformer_forward.23} parent=0 // pred_check
    _
  $region23: #{conformer_forward.23} parent=0 // pred_check_branch
    %231 = sbr.rel (0) target = $region25
  $region24: #{conformer_forward.23} parent=0 // pred_region
    _
  $region25: #{conformer_forward.23} parent=0 // pred_fallthru
    _
  // Predicated region
  $region26: #{conformer_forward.23} parent=0 // pred_check
    _
  $region27: #{conformer_forward.23} parent=0 // pred_check_branch
    %233 = sbr.rel (0) target = $region29
  $region28: #{conformer_forward.23} parent=0 // pred_region
    _
  $region29: #{conformer_forward.23} parent=0 // pred_fallthru
    _

// kernel: conformer_forward.25
$region0: #{conformer_forward.25}
  #allocation0 [shape = 'u32[]', space=smem, size = 0x4, offset = 0x4, fixed_abs, tag = 'smem constant byte address 0x4 - core index']
  #allocation1 [shape = 'u32[144,128]{1,0:T(1,128)}', space=vmem, size = 0x12000, scoped, tag = 'internal scratch']
  %s0 = inlined_call_operand.vmem [shape: f32[32,32], index: 0, kind: input, shape index: {}]
  %s1 = inlined_call_operand.vmem [shape: f32[1,32], index: 1, kind: input, shape index: {}]
  %s2 = inlined_call_operand.vmem [shape: f32[1,32], index: 2, kind: input, shape index: {}]
  %s3 = inlined_call_operand.vmem [shape: bf16[32,96], index: 3, kind: input, shape index: {}]
  %s4 = inlined_call_operand.vmem [shape: f32[1,96], index: 4, kind: input, shape index: {}]
  %s5 = inlined_call_operand.vmem [shape: bf16[32,96], index: 5, kind: output, shape index: {}]
  %s6 = sld [smem:[#allocation0]]
  $region30: #{conformer_forward.25} parent=0
    _
  %s8 = ssub.s32 1, %s6
  %s9 = scalar_select 0, %s8, %s6
  // Predicated region
  $region2: #{conformer_forward.25} parent=0 // pred_check
    _
  $region3: #{conformer_forward.25} parent=0 // pred_check_branch
    %11 = sbr.rel (0) target = $region5
  $region4: #{conformer_forward.25} parent=0 // pred_region
    _
  $region5: #{conformer_forward.25} parent=0 // pred_fallthru
    _
  // Predicated region
  $region6: #{conformer_forward.25} parent=0 // pred_check
    _
  $region7: #{conformer_forward.25} parent=0 // pred_check_branch
    %13 = sbr.rel (0) target = $region9
  $region8: #{conformer_forward.25} parent=0 // pred_region
    _
  $region9: #{conformer_forward.25} parent=0 // pred_fallthru
    _
  // Predicated region
  $region10: #{conformer_forward.25} parent=0 // pred_check
    _
  $region11: #{conformer_forward.25} parent=0 // pred_check_branch
    %15 = sbr.rel (0) target = $region13
  $region12: #{conformer_forward.25} parent=0 // pred_region
    _
  $region13: #{conformer_forward.25} parent=0 // pred_fallthru
    _
  // Predicated region
  $region14: #{conformer_forward.25} parent=0 // pred_check
    _
  $region15: #{conformer_forward.25} parent=0 // pred_check_branch
    %17 = sbr.rel (0) target = $region17
  $region16: #{conformer_forward.25} parent=0 // pred_region
    _
  $region17: #{conformer_forward.25} parent=0 // pred_fallthru
    _
  // Predicated region
  $region18: #{conformer_forward.25} parent=0 // pred_check
    _
  $region19: #{conformer_forward.25} parent=0 // pred_check_branch
    %19 = sbr.rel (0) target = $region21
  $region20: #{conformer_forward.25} parent=0 // pred_region
    _
  $region21: #{conformer_forward.25} parent=0 // pred_fallthru
    _
  %v21 = vld [vmem:[%s0] sm:$0xff]
  %v22 = vld [vmem:[%s0 + $0x8] sm:$0xff]
  %v23 = vld [vmem:[%s0 + $0x10] sm:$0xff]
  %v24 = vld [vmem:[%s0 + $0x18] sm:$0xff]
  %vm25 = vcmask 261120
  %v26 = vsel %vm25, %v21, 0.0
  %27 = vadd.xlane.f32.xlu0 %v26
  %v28 = vpop.xlane.xlu0 %27
  %v29 = vsel %vm25, %v22, 0.0
  %30 = vadd.xlane.f32.xlu0 %v29
  %v31 = vpop.xlane.xlu0 %30
  %v32 = vsel %vm25, %v23, 0.0
  %33 = vadd.xlane.f32.xlu0 %v32
  %v34 = vpop.xlane.xlu0 %33
  %v35 = vsel %vm25, %v24, 0.0
  %36 = vadd.xlane.f32.xlu0 %v35
  %v37 = vpop.xlane.xlu0 %36
  %v38 = vrcp.pop 32.0
  %v39 = vmul.f32 %v28, %v38
  %v40 = vmul.f32 %v31, %v38
  %v41 = vmul.f32 %v34, %v38
  %v42 = vmul.f32 %v37, %v38
  %v43 = vsub.f32 %v21, %v39
  %v44 = vsub.f32 %v22, %v40
  %v45 = vsub.f32 %v23, %v41
  %v46 = vsub.f32 %v24, %v42
  %v47 = vmul.f32 %v43, %v43
  %v48 = vmul.f32 %v44, %v44
  %v49 = vmul.f32 %v45, %v45
  %v50 = vmul.f32 %v46, %v46
  %v51 = vsel %vm25, %v47, 0.0
  %52 = vadd.xlane.f32.xlu0 %v51
  %v53 = vpop.xlane.xlu0 %52
  %v54 = vsel %vm25, %v48, 0.0
  %55 = vadd.xlane.f32.xlu0 %v54
  %v56 = vpop.xlane.xlu0 %55
  %v57 = vsel %vm25, %v49, 0.0
  %58 = vadd.xlane.f32.xlu0 %v57
  %v59 = vpop.xlane.xlu0 %58
  %v60 = vsel %vm25, %v50, 0.0
  %61 = vadd.xlane.f32.xlu0 %v60
  %v62 = vpop.xlane.xlu0 %61
  %v63 = vmul.f32 %v53, %v38
  %v64 = vmul.f32 %v56, %v38
  %v65 = vmul.f32 %v59, %v38
  %v66 = vmul.f32 %v62, %v38
  %v67 = vadd.f32 %v63, 1e-12
  %v68 = vadd.f32 %v64, 1e-12
  %v69 = vadd.f32 %v65, 1e-12
  %v70 = vadd.f32 %v66, 1e-12
  %v71 = vrsqrt.pop %v67
  %v72 = vrsqrt.pop %v68
  %v73 = vrsqrt.pop %v69
  %v74 = vrsqrt.pop %v70
  %v75 = vmul.f32 %v43, %v71
  %v76 = vmul.f32 %v44, %v72
  %v77 = vmul.f32 %v45, %v73
  %v78 = vmul.f32 %v46, %v74
  %v79 = vld [vmem:[%s1] sm:$0x1]
  %v81 = vlaneseq
  %v82 = vshrl.u32 %v81, 7
  %v83 = vsub.s32 0, %v82
  %v84 = vrot.slane %v79, %v83
  %v86 = vmul.f32 %v75, %v84
  %v87 = vmul.f32 %v76, %v84
  %v88 = vmul.f32 %v77, %v84
  %v89 = vmul.f32 %v78, %v84
  %v90 = vld [vmem:[%s2] sm:$0x1]
  %v92 = vlaneseq
  %v93 = vshrl.u32 %v92, 7
  %v94 = vsub.s32 0, %v93
  %v95 = vrot.slane %v90, %v94
  %v97 = vadd.f32 %v86, %v95
  %v98 = vadd.f32 %v87, %v95
  %v99 = vadd.f32 %v88, %v95
  %v100 = vadd.f32 %v89, %v95
  %v101 = vpack.c.bf16 %v98, %v97
  %v102 = vpack.c.bf16 %v100, %v99
  %v103 = vld [vmem:[%s3] sm:$0xf]
  %v104 = vld [vmem:[%s3 + $0x4] sm:$0xf]
  %v105 = vld [vmem:[%s3 + $0x8] sm:$0xf]
  %v106 = vld [vmem:[%s3 + $0xc] sm:$0xf]
  %v107 = vld [vmem:[%s4] sm:$0x1]
  %v109 = vlaneseq
  %v110 = vshrl.u32 %v109, 7
  %v111 = vsub.s32 0, %v110
  %v112 = vrot.slane %v107, %v111
  %v118 = vunpack.c.l.b16 %v103
  %v119 = vunpack.c.l.b16 %v104
  %v120 = vunpack.c.l.b16 %v105
  %v121 = vunpack.c.l.b16 %v106
  %v122 = vpack.c.b16 %v119, %v118
  %v123 = vpack.c.b16 %v121, %v120
  %v127 = vsel %vm25, %v101, 0
  %v130 = vsel %vm25, %v102, 0
  %132 = vmatprep.subr.bf16.mxu0 0
  %133 = vmatpush1.bf16.msra.mxu0 0
  %134 = vmatprep.subr.bf16.mxu0 0
  %135 = vmatpush1.bf16.msra.mxu0 0
  %136 = vmatprep.subr.bf16.mxu0 0
  %137 = vmatpush1.bf16.msra.mxu0 0
  %138 = vmatprep.subr.bf16.mxu0 0
  %139 = vmatpush1.bf16.msra.mxu0 0
  %140 = vmatprep.subr.bf16.mxu0 0
  %141 = vmatpush1.bf16.msra.mxu0 0
  %142 = vmatprep.subr.bf16.mxu0 0
  %143 = vmatpush1.bf16.msra.mxu0 0
  %144 = vmatprep.subr.bf16.mxu0 0
  %145 = vmatpush1.bf16.msra.mxu0 %v123
  %146 = vmatprep.subr.bf16.mxu0 0
  %147 = vmatpush1.bf16.msra.mxu0 %v122
  %148 = vmatprep.subr.bf16.mxu0 0
  %149 = vmatpush2.bf16.msra.mxu0 0
  %150 = vmatprep.subr.bf16.mxu0 0
  %151 = vmatpush2.bf16.msra.mxu0 0
  %152 = vmatprep.subr.bf16.mxu0 0
  %153 = vmatpush2.bf16.msra.mxu0 0
  %154 = vmatprep.subr.bf16.mxu0 0
  %155 = vmatpush2.bf16.msra.mxu0 0
  %156 = vmatprep.subr.bf16.mxu0 0
  %157 = vmatpush2.bf16.msra.mxu0 0
  %158 = vmatprep.subr.bf16.mxu0 0
  %159 = vmatpush2.bf16.msra.mxu0 0
  %160 = vmatprep.subr.bf16.mxu0 0
  %161 = vmatpush2.bf16.msra.mxu0 0
  %162 = vmatprep.subr.bf16.mxu0 0
  %163 = vmatpush2.bf16.msra.mxu0 0
  %164 = vmatprep.mubr.bf16.mxu0 0
  %165 = vmatmul.mubr.bf16.gmra.mxu0 %v127
  %v166 = vpop.f32.mrf.mxu0
  %v167 = vadd.f32 %v112, %v166
  %v168 = vpop.f32.mrf.mxu0
  %v169 = vpop.f32.mrf.mxu0
  %v170 = vadd.f32 %v112, %v169
  %v171 = vpop.f32.mrf.mxu0
  %172 = vmatprep.mubr.bf16.mxu0 0
  %173 = vmatmul.mubr.bf16.gmra.mxu0 %v130
  %v174 = vpop.f32.mrf.mxu0
  %v175 = vadd.f32 %v112, %v174
  %v176 = vpop.f32.mrf.mxu0
  %v177 = vpop.f32.mrf.mxu0
  %v178 = vadd.f32 %v112, %v177
  %v179 = vpop.f32.mrf.mxu0
  %180 = vdwg.mxu0
  %v181 = vpack.c.bf16 %v170, %v167
  %v182 = vpack.c.bf16 %v178, %v175
  %v185 = vunpack.c.l.b16 %v181
  %v186 = vunpack.c.h.b16 %v181
  %v187 = vunpack.c.l.b16 %v182
  %v188 = vunpack.c.h.b16 %v182
  %v189 = vpack.c.b16 %v185, %v185
  %v190 = vpack.c.b16 %v186, %v186
  %v191 = vpack.c.b16 %v187, %v187
  %v192 = vpack.c.b16 %v188, %v188
  %vm197 = vcmask 781312
  %198 = vst.msk [vmem:[%s5] sm:$0xf] %vm197, %v189
  %199 = vst.msk [vmem:[%s5 + $0x4] sm:$0xf] %vm197, %v190
  %200 = vst.msk [vmem:[%s5 + $0x8] sm:$0xf] %vm197, %v191
  %201 = vst.msk [vmem:[%s5 + $0xc] sm:$0xf] %vm197, %v192
  // Predicated region
  $region22: #{conformer_forward.25} parent=0 // pred_check
    _
  $region23: #{conformer_forward.25} parent=0 // pred_check_branch
    %203 = sbr.rel (0) target = $region25
  $region24: #{conformer_forward.25} parent=0 // pred_region
    _
  $region25: #{conformer_forward.25} parent=0 // pred_fallthru
    _
  // Predicated region
  $region26: #{conformer_forward.25} parent=0 // pred_check
    _
  $region27: #{conformer_forward.25} parent=0 // pred_check_branch
    %205 = sbr.rel (0) target = $region29
  $region28: #{conformer_forward.25} parent=0 // pred_region
    _
  $region29: #{conformer_forward.25} parent=0 // pred_fallthru
    _

// kernel: conformer_forward.27
$region0: #{conformer_forward.27}
  #allocation0 [shape = 'u32[]', space=smem, size = 0x4, offset = 0x4, fixed_abs, tag = 'smem constant byte address 0x4 - core index']
  #allocation1 [shape = 'u32[144,128]{1,0:T(1,128)}', space=vmem, size = 0x12000, scoped, tag = 'internal scratch']
  %s0 = inlined_call_operand.vmem [shape: bf16[32,32], index: 0, kind: input, shape index: {}]
  %s1 = inlined_call_operand.vmem [shape: bf16[32,32], index: 1, kind: input, shape index: {}]
  %s2 = inlined_call_operand.vmem [shape: f32[1,32], index: 2, kind: input, shape index: {}]
  %s3 = inlined_call_operand.vmem [shape: f32[32,32], index: 3, kind: input, shape index: {}]
  %s4 = inlined_call_operand.vmem [shape: f32[32,32], index: 4, kind: output, shape index: {}]
  %s5 = sld [smem:[#allocation0]]
  $region26: #{conformer_forward.27} parent=0
    _
  %s7 = ssub.s32 1, %s5
  %s8 = scalar_select 0, %s7, %s5
  // Predicated region
  $region2: #{conformer_forward.27} parent=0 // pred_check
    _
  $region3: #{conformer_forward.27} parent=0 // pred_check_branch
    %10 = sbr.rel (0) target = $region5
  $region4: #{conformer_forward.27} parent=0 // pred_region
    _
  $region5: #{conformer_forward.27} parent=0 // pred_fallthru
    _
  // Predicated region
  $region6: #{conformer_forward.27} parent=0 // pred_check
    _
  $region7: #{conformer_forward.27} parent=0 // pred_check_branch
    %12 = sbr.rel (0) target = $region9
  $region8: #{conformer_forward.27} parent=0 // pred_region
    _
  $region9: #{conformer_forward.27} parent=0 // pred_fallthru
    _
  // Predicated region
  $region10: #{conformer_forward.27} parent=0 // pred_check
    _
  $region11: #{conformer_forward.27} parent=0 // pred_check_branch
    %14 = sbr.rel (0) target = $region13
  $region12: #{conformer_forward.27} parent=0 // pred_region
    _
  $region13: #{conformer_forward.27} parent=0 // pred_fallthru
    _
  // Predicated region
  $region14: #{conformer_forward.27} parent=0 // pred_check
    _
  $region15: #{conformer_forward.27} parent=0 // pred_check_branch
    %16 = sbr.rel (0) target = $region17
  $region16: #{conformer_forward.27} parent=0 // pred_region
    _
  $region17: #{conformer_forward.27} parent=0 // pred_fallthru
    _
  %v18 = vld [vmem:[%s0] sm:$0xf]
  %v19 = vld [vmem:[%s0 + $0x4] sm:$0xf]
  %v20 = vld [vmem:[%s0 + $0x8] sm:$0xf]
  %v21 = vld [vmem:[%s0 + $0xc] sm:$0xf]
  %v22 = vld [vmem:[%s1] sm:$0xf]
  %v23 = vld [vmem:[%s1 + $0x4] sm:$0xf]
  %v24 = vld [vmem:[%s1 + $0x8] sm:$0xf]
  %v25 = vld [vmem:[%s1 + $0xc] sm:$0xf]
  %v26 = vld [vmem:[%s2] sm:$0x1]
  %v28 = vlaneseq
  %v29 = vshrl.u32 %v28, 7
  %v30 = vsub.s32 0, %v29
  %v31 = vrot.slane %v26, %v30
  %v37 = vunpack.c.l.b16 %v18
  %v38 = vunpack.c.l.b16 %v19
  %v39 = vunpack.c.l.b16 %v20
  %v40 = vunpack.c.l.b16 %v21
  %v41 = vpack.c.b16 %v38, %v37
  %v42 = vpack.c.b16 %v40, %v39
  %v47 = vunpack.c.l.b16 %v22
  %v48 = vunpack.c.l.b16 %v23
  %v49 = vunpack.c.l.b16 %v24
  %v50 = vunpack.c.l.b16 %v25
  %v51 = vpack.c.b16 %v48, %v47
  %v52 = vpack.c.b16 %v50, %v49
  %vm55 = vcmask 261120
  %v57 = vsel %vm55, %v41, 0
  %v60 = vsel %vm55, %v42, 0
  %62 = vmatprep.subr.bf16.mxu0 0
  %63 = vmatpush1.bf16.msra.mxu0 0
  %64 = vmatprep.subr.bf16.mxu0 0
  %65 = vmatpush1.bf16.msra.mxu0 0
  %66 = vmatprep.subr.bf16.mxu0 0
  %67 = vmatpush1.bf16.msra.mxu0 0
  %68 = vmatprep.subr.bf16.mxu0 0
  %69 = vmatpush1.bf16.msra.mxu0 0
  %70 = vmatprep.subr.bf16.mxu0 0
  %71 = vmatpush1.bf16.msra.mxu0 0
  %72 = vmatprep.subr.bf16.mxu0 0
  %73 = vmatpush1.bf16.msra.mxu0 0
  %74 = vmatprep.subr.bf16.mxu0 0
  %75 = vmatpush1.bf16.msra.mxu0 %v52
  %76 = vmatprep.subr.bf16.mxu0 0
  %77 = vmatpush1.bf16.msra.mxu0 %v51
  %78 = vmatprep.subr.bf16.mxu0 0
  %79 = vmatpush2.bf16.msra.mxu0 0
  %80 = vmatprep.subr.bf16.mxu0 0
  %81 = vmatpush2.bf16.msra.mxu0 0
  %82 = vmatprep.subr.bf16.mxu0 0
  %83 = vmatpush2.bf16.msra.mxu0 0
  %84 = vmatprep.subr.bf16.mxu0 0
  %85 = vmatpush2.bf16.msra.mxu0 0
  %86 = vmatprep.subr.bf16.mxu0 0
  %87 = vmatpush2.bf16.msra.mxu0 0
  %88 = vmatprep.subr.bf16.mxu0 0
  %89 = vmatpush2.bf16.msra.mxu0 0
  %90 = vmatprep.subr.bf16.mxu0 0
  %91 = vmatpush2.bf16.msra.mxu0 0
  %92 = vmatprep.subr.bf16.mxu0 0
  %93 = vmatpush2.bf16.msra.mxu0 0
  %94 = vmatprep.mubr.bf16.mxu0 0
  %95 = vmatmul.mubr.bf16.gmra.mxu0 %v57
  %v96 = vpop.f32.mrf.mxu0
  %v97 = vadd.f32 %v31, %v96
  %v98 = vpop.f32.mrf.mxu0
  %v99 = vpop.f32.mrf.mxu0
  %v100 = vadd.f32 %v31, %v99
  %v101 = vpop.f32.mrf.mxu0
  %102 = vmatprep.mubr.bf16.mxu0 0
  %103 = vmatmul.mubr.bf16.gmra.mxu0 %v60
  %v104 = vpop.f32.mrf.mxu0
  %v105 = vadd.f32 %v31, %v104
  %v106 = vpop.f32.mrf.mxu0
  %v107 = vpop.f32.mrf.mxu0
  %v108 = vadd.f32 %v31, %v107
  %v109 = vpop.f32.mrf.mxu0
  %110 = vdwg.mxu0
  %v111 = vld [vmem:[%s3] sm:$0xff]
  %v112 = vld [vmem:[%s3 + $0x8] sm:$0xff]
  %v113 = vld [vmem:[%s3 + $0x10] sm:$0xff]
  %v114 = vld [vmem:[%s3 + $0x18] sm:$0xff]
  %v115 = vadd.f32 %v111, %v97
  %v116 = vadd.f32 %v112, %v100
  %v117 = vadd.f32 %v113, %v105
  %v118 = vadd.f32 %v114, %v108
  %119 = vst.msk [vmem:[%s4] sm:$0xff] %vm55, %v115
  %120 = vst.msk [vmem:[%s4 + $0x8] sm:$0xff] %vm55, %v116
  %121 = vst.msk [vmem:[%s4 + $0x10] sm:$0xff] %vm55, %v117
  %122 = vst.msk [vmem:[%s4 + $0x18] sm:$0xff] %vm55, %v118
  // Predicated region
  $region18: #{conformer_forward.27} parent=0 // pred_check
    _
  $region19: #{conformer_forward.27} parent=0 // pred_check_branch
    %124 = sbr.rel (0) target = $region21
  $region20: #{conformer_forward.27} parent=0 // pred_region
    _
  $region21: #{conformer_forward.27} parent=0 // pred_fallthru
    _
  // Predicated region
  $region22: #{conformer_forward.27} parent=0 // pred_check
    _
  $region23: #{conformer_forward.27} parent=0 // pred_check_branch
    %126 = sbr.rel (0) target = $region25
  $region24: #{conformer_forward.27} parent=0 // pred_region
    _
  $region25: #{conformer_forward.27} parent=0 // pred_fallthru
    _

// kernel: conformer_forward.26
$region0: #{conformer_forward.26}
  #allocation0 [shape = 'u32[]', space=smem, size = 0x4, offset = 0x4, fixed_abs, tag = 'smem constant byte address 0x4 - core index']
  #allocation1 [shape = 'u32[144,128]{1,0:T(1,128)}', space=vmem, size = 0x12000, scoped, tag = 'internal scratch']
  %s0 = inlined_call_operand.vmem [shape: bf16[2,16,96], index: 0, kind: input, shape index: {}]
  %s1 = inlined_call_operand.vmem [shape: f32[1,32], index: 1, kind: input, shape index: {}]
  %s2 = inlined_call_operand.vmem [shape: bf16[2,4,16,16], index: 2, kind: input, shape index: {}]
  %s3 = inlined_call_operand.vmem [shape: f32[2,1,16], index: 3, kind: input, shape index: {}]
  %s4 = inlined_call_operand.vmem [shape: bf16[2,16,32], index: 4, kind: output, shape index: {}]
  %s5 = sld [smem:[#allocation0]]
  $region49: #{conformer_forward.26} parent=0
    _
  %s7 = ssub.s32 1, %s5
  %s8 = scalar_select 0, %s7, %s5
  loop: start=0, step=1, limit=4
  $region2: #{conformer_forward.26} parent=0 // loop_pre_header
    _
  $region3: #{conformer_forward.26} parent=0 // loop_header
    %s10 = sphi 0, %s14
    %p11 = scmp.ge.s32.totalorder %s10, 4
    %s20 = sphi 0, %s22
    %s23 = sphi 0, %s20
    %s24 = sphi 0, %s23
    %s40 = sphi 0, %s24
    %s44 = sphi 0, %s44
    %s46 = sphi 0, %s44
    %s47 = sphi 0, %s46
    %s61 = sphi 0, %s47
    %s67 = sphi 0, %s69
    %s70 = sphi 0, %s67
    %s71 = sphi 0, %s70
    %s87 = sphi 0, %s71
    %s93 = sphi 0, %s95
    %s96 = sphi 0, %s93
    %s97 = sphi 0, %s96
    %s113 = sphi 0, %s97
    %s119 = sphi 0, %s121
    %s122 = sphi 0, %s119
    %s123 = sphi 0, %s122
    %s139 = sphi 0, %s123
  $region4: #{conformer_forward.26} parent=0 // loop_header_branch
    %13 = sbr.rel (%p11) target = $region8
  $region5: #{conformer_forward.26} parent=0 // loop_body
    %s15 = ssub.s32 %s10, 1
    %s16 = ssub.s32 %s10, 2
    %s17 = sadd.s32 %s10, 1
    %s18 = ssub.s32 %s10, %s17
    %p19 = scmp.eq.s32.totalorder %s18, 0
    %s21 = sadd.s32 %s20, 1
    %s22 = scalar_select %p19, %s20, %s21
    %p25 = pneg %p19
    %p26 = scmp.eq.s32.totalorder %s10, 1
    %p27 = por %p25, %p26
    %p28 = scmp.ne.s32.totalorder %s20, %s23
    %p29 = scmp.eq.s32.totalorder %s10, 0
    %p30 = por %p28, %p29
    %p31 = scmp.ne.s32.totalorder %s20, %s23
    %p32 = scmp.eq.s32.totalorder %s15, 1
    %p33 = por %p31, %p32
    %p34 = scmp.ne.s32.totalorder %s23, %s24
    %p35 = scmp.eq.s32.totalorder %s15, 0
    %p36 = por %p34, %p35
    %p37 = scmp.ne.s32.totalorder %s23, %s24
    %p38 = scmp.eq.s32.totalorder %s16, 1
    %p39 = por %p37, %p38
    %p41 = scmp.ne.s32.totalorder %s24, %s40
    %p42 = scmp.eq.s32.totalorder %s16, 0
    %p43 = por %p41, %p42
    %s45 = sadd.s32 %s44, 1
    %p48 = scmp.eq.s32.totalorder %s10, 1
    %p49 = scmp.ne.s32.totalorder %s44, %s46
    %p50 = scmp.eq.s32.totalorder %s10, 0
    %p51 = por %p49, %p50
    %p52 = scmp.ne.s32.totalorder %s44, %s46
    %p53 = scmp.eq.s32.totalorder %s15, 1
    %p54 = por %p52, %p53
    %p55 = scmp.ne.s32.totalorder %s46, %s47
    %p56 = scmp.eq.s32.totalorder %s15, 0
    %p57 = por %p55, %p56
    %p58 = scmp.ne.s32.totalorder %s46, %s47
    %p59 = scmp.eq.s32.totalorder %s16, 1
    %p60 = por %p58, %p59
    %p62 = scmp.ne.s32.totalorder %s47, %s61
    %p63 = scmp.eq.s32.totalorder %s16, 0
    %p64 = por %p62, %p63
    %s65 = ssub.s32 %s10, %s17
    %p66 = scmp.eq.s32.totalorder %s65, 0
    %s68 = sadd.s32 %s67, 1
    %s69 = scalar_select %p66, %s67, %s68
    %p72 = pneg %p66
    %p73 = scmp.eq.s32.totalorder %s10, 1
    %p74 = por %p72, %p73
    %p75 = scmp.ne.s32.totalorder %s67, %s70
    %p76 = scmp.eq.s32.totalorder %s10, 0
    %p77 = por %p75, %p76
    %p78 = scmp.ne.s32.totalorder %s67, %s70
    %p79 = scmp.eq.s32.totalorder %s15, 1
    %p80 = por %p78, %p79
    %p81 = scmp.ne.s32.totalorder %s70, %s71
    %p82 = scmp.eq.s32.totalorder %s15, 0
    %p83 = por %p81, %p82
    %p84 = scmp.ne.s32.totalorder %s70, %s71
    %p85 = scmp.eq.s32.totalorder %s16, 1
    %p86 = por %p84, %p85
    %p88 = scmp.ne.s32.totalorder %s71, %s87
    %p89 = scmp.eq.s32.totalorder %s16, 0
    %p90 = por %p88, %p89
    %s91 = ssub.s32 %s10, %s17
    %p92 = scmp.eq.s32.totalorder %s91, 0
    %s94 = sadd.s32 %s93, 1
    %s95 = scalar_select %p92, %s93, %s94
    %p98 = pneg %p92
    %p99 = scmp.eq.s32.totalorder %s10, 1
    %p100 = por %p98, %p99
    %p101 = scmp.ne.s32.totalorder %s93, %s96
    %p102 = scmp.eq.s32.totalorder %s10, 0
    %p103 = por %p101, %p102
    %p104 = scmp.ne.s32.totalorder %s93, %s96
    %p105 = scmp.eq.s32.totalorder %s15, 1
    %p106 = por %p104, %p105
    %p107 = scmp.ne.s32.totalorder %s96, %s97
    %p108 = scmp.eq.s32.totalorder %s15, 0
    %p109 = por %p107, %p108
    %p110 = scmp.ne.s32.totalorder %s96, %s97
    %p111 = scmp.eq.s32.totalorder %s16, 1
    %p112 = por %p110, %p111
    %p114 = scmp.ne.s32.totalorder %s97, %s113
    %p115 = scmp.eq.s32.totalorder %s16, 0
    %p116 = por %p114, %p115
    %s117 = ssub.s32 %s10, %s17
    %p118 = scmp.eq.s32.totalorder %s117, 0
    %s120 = sadd.s32 %s119, 1
    %s121 = scalar_select %p118, %s119, %s120
    %p124 = pneg %p118
    %p125 = scmp.eq.s32.totalorder %s10, 1
    %p126 = por %p124, %p125
    %p127 = scmp.ne.s32.totalorder %s119, %s122
    %p128 = scmp.eq.s32.totalorder %s10, 0
    %p129 = por %p127, %p128
    %p130 = scmp.ne.s32.totalorder %s119, %s122
    %p131 = scmp.eq.s32.totalorder %s15, 1
    %p132 = por %p130, %p131
    %p133 = scmp.ne.s32.totalorder %s122, %s123
    %p134 = scmp.eq.s32.totalorder %s15, 0
    %p135 = por %p133, %p134
    %p136 = scmp.ne.s32.totalorder %s122, %s123
    %p137 = scmp.eq.s32.totalorder %s16, 1
    %p138 = por %p136, %p137
    %p140 = scmp.ne.s32.totalorder %s123, %s139
    %p141 = scmp.eq.s32.totalorder %s16, 0
    %p142 = por %p140, %p141
    %p143 = scmp.le.s32.totalorder 1, %s10
    %p144 = scmp.lt.s32.totalorder %s10, 3
    %p145 = pnand %p143, %p144
    %p146 = pneg %p145
    // Predicated region
    $region9: #{conformer_forward.26} parent=5 // pred_check
      _
    $region10: #{conformer_forward.26} parent=5 // pred_check_branch
      %148 = sbr.rel (%p145) target = $region12
    $region11: #{conformer_forward.26} parent=5 // pred_region
      %s149 = ssub.s32 %s10, 1
      // Predicated region
      $region13: #{conformer_forward.26} parent=11 // pred_check
        %p150 = pneg %p57
      $region14: #{conformer_forward.26} parent=11 // pred_check_branch
        %152 = sbr.rel (%p150) target = $region16
      $region15: #{conformer_forward.26} parent=11 // pred_region
        _
      $region16: #{conformer_forward.26} parent=11 // pred_fallthru
        _
    $region12: #{conformer_forward.26} parent=5 // pred_fallthru
      _
    %p153 = scmp.lt.s32.totalorder %s10, 2
    // Predicated region
    $region17: #{conformer_forward.26} parent=5 // pred_check
      %p154 = pneg %p153
    $region18: #{conformer_forward.26} parent=5 // pred_check_branch
      %156 = sbr.rel (%p154) target = $region20
    $region19: #{conformer_forward.26} parent=5 // pred_region
      // Predicated region
      $region21: #{conformer_forward.26} parent=19 // pred_check
        %p157 = pneg %p30
      $region22: #{conformer_forward.26} parent=19 // pred_check_branch
        %159 = sbr.rel (%p157) target = $region24
      $region23: #{conformer_forward.26} parent=19 // pred_region
        %p160 = scmp.lt.s32.totalorder %s10, 1
        %s161 = scalar_select %p160, %s10, 1
        %s162 = smul.addr %s161, 2
        %s163 = smul.addr %s162, 4
        %s164 = scalar_lea.vmem %s0, %s163
      $region24: #{conformer_forward.26} parent=19 // pred_fallthru
        _
      // Predicated region
      $region25: #{conformer_forward.26} parent=19 // pred_check
        %p165 = pneg %p77
      $region26: #{conformer_forward.26} parent=19 // pred_check_branch
        %167 = sbr.rel (%p165) target = $region28
      $region27: #{conformer_forward.26} parent=19 // pred_region
        %p168 = scmp.lt.s32.totalorder %s10, 1
        %s169 = scalar_select %p168, %s10, 1
        %s170 = smul.addr %s169, 8
        %s171 = smul.addr %s170, 4
        %s172 = scalar_lea.vmem %s2, %s171
      $region28: #{conformer_forward.26} parent=19 // pred_fallthru
        _
      // Predicated region
      $region29: #{conformer_forward.26} parent=19 // pred_check
        %p173 = pneg %p103
      $region30: #{conformer_forward.26} parent=19 // pred_check_branch
        %175 = sbr.rel (%p173) target = $region32
      $region31: #{conformer_forward.26} parent=19 // pred_region
        %p176 = scmp.lt.s32.totalorder %s10, 1
        %s177 = scalar_select %p176, %s10, 1
        %s178 = scalar_lea.vmem %s3, %s177
      $region32: #{conformer_forward.26} parent=19 // pred_fallthru
        _
    $region20: #{conformer_forward.26} parent=5 // pred_fallthru
      _
    %p179 = scmp.le.s32.totalorder 1, %s10
    %p180 = scmp.lt.s32.totalorder %s10, 3
    %p181 = pnand %p179, %p180
    %p182 = pneg %p181
    // Predicated region
    $region33: #{conformer_forward.26} parent=5 // pred_check
      _
    $region34: #{conformer_forward.26} parent=5 // pred_check_branch
      %184 = sbr.rel (%p181) target = $region36
    $region35: #{conformer_forward.26} parent=5 // pred_region
      %s185 = ssub.s32 %s10, 1
      %p186 = scmp.lt.s32.totalorder %s15, 1
      %s187 = scalar_select %p186, %s15, 1
      %s188 = smul.addr %s187, 2
      %s189 = smul.addr %s188, 4
      %s190 = scalar_lea.vmem %s0, %s189
      %p191 = pneg %p36
      %p192 = pneg %p33
      %p193 = pneg %p57
      %p194 = pneg %p54
      %p195 = scmp.lt.s32.totalorder %s15, 1
      %s196 = scalar_select %p195, %s15, 1
      %s197 = smul.addr %s196, 8
      %s198 = smul.addr %s197, 4
      %s199 = scalar_lea.vmem %s2, %s198
      %p200 = pneg %p83
      %p201 = pneg %p80
      %p202 = scmp.lt.s32.totalorder %s15, 1
      %s203 = scalar_select %p202, %s15, 1
      %s204 = scalar_lea.vmem %s3, %s203
      %p205 = pneg %p109
      %p206 = pneg %p106
      %p207 = pneg %p135
      %p208 = pneg %p132
      %p209 = scmp.lt.s32.totalorder %s15, 1
      %s210 = scalar_select %p209, %s15, 1
      %s211 = smul.addr %s210, 2
      %s212 = smul.addr %s211, 4
      %s213 = scalar_lea.vmem %s4, %s212
      %p214 = scmp.lt.s32.totalorder %s15, 1
      %s215 = scalar_select %p214, %s15, 1
      %s216 = smul.addr %s215, 2
      %s217 = smul.addr %s216, 4
      %s218 = scalar_lea.vmem %s0, %s217
      %p219 = scmp.lt.s32.totalorder %s15, 1
      %s220 = scalar_select %p219, %s15, 1
      %s221 = smul.addr %s220, 8
      %s222 = smul.addr %s221, 4
      %s223 = scalar_lea.vmem %s2, %s222
      %p224 = scmp.lt.s32.totalorder %s15, 1
      %s225 = scalar_select %p224, %s15, 1
      %s226 = scalar_lea.vmem %s3, %s225
      %p227 = scmp.lt.s32.totalorder %s15, 1
      %s228 = scalar_select %p227, %s15, 1
      %s229 = smul.addr %s228, 2
      %s230 = smul.addr %s229, 4
      %s231 = scalar_lea.vmem %s4, %s230
      %v233 = vld [vmem:[%s218] sm:$0xf]
      %v234 = vld [vmem:[%s218 + $0x4] sm:$0xf]
      %v235 = vunpack.c.l.bf16 %v233
      %v236 = vunpack.c.l.bf16 %v234
      %v237 = vld [vmem:[%s1] sm:$0x1]
      %v239 = vlaneseq
      %v240 = vshrl.u32 %v239, 7
      %v241 = vsub.s32 0, %v240
      %v242 = vrot.slane %v237, %v241
      %v244 = vadd.f32 %v235, %v242
      %v245 = vadd.f32 %v236, %v242
      %v246 = vmul.f32 %v244, 0.35355338
      %v247 = vmul.f32 %v245, 0.35355338
      %v248 = vpack.c.bf16 %v247, %v246
      %v249 = vld [vmem:[%s226] sm:$0x1]
      %v250 = vld [vmem:[%s223] sm:$0xf]
      %v251 = vld [vmem:[%s223 + $0x4] sm:$0xf]
      %v252 = vunpack.c.l.bf16 %v250
      %v253 = vunpack.c.l.bf16 %v251
      %v256 = vunpack.c.l.b16 %v233
      %v257 = vunpack.c.l.b16 %v234
      %v258 = vpack.c.b16 %v257, %v256
      %259 = vrot.lane.b32.xlu0 %v258, 96
      %v260 = vpop.permute.xlu0 %259
      %vm261 = vcmask 64512
      %v263 = vsel %vm261, %v248, 0
      %v266 = vsel %vm261, %v260, 0
      %268 = vmatprep.subr.bf16.mxu0 0
      %269 = vmatpush1.bf16.xpose.msra.mxu0 0
      %270 = vmatprep.subr.bf16.mxu0 0
      %271 = vmatpush1.bf16.xpose.msra.mxu0 0
      %272 = vmatprep.subr.bf16.mxu0 0
      %273 = vmatpush1.bf16.xpose.msra.mxu0 0
      %274 = vmatprep.subr.bf16.mxu0 0
      %275 = vmatpush1.bf16.xpose.msra.mxu0 0
      %276 = vmatprep.subr.bf16.mxu0 0
      %277 = vmatpush1.bf16.xpose.msra.mxu0 0
      %278 = vmatprep.subr.bf16.mxu0 0
      %279 = vmatpush1.bf16.xpose.msra.mxu0 0
      %280 = vmatprep.subr.bf16.mxu0 0
      %281 = vmatpush1.bf16.xpose.msra.mxu0 0
      %282 = vmatprep.subr.bf16.mxu0 0
      %283 = vmatpush1.bf16.xpose.msra.mxu0 %v266
      %284 = vmatprep.subr.bf16.mxu0 0
      %285 = vmatpush2.bf16.xpose.msra.mxu0 0
      %286 = vmatprep.subr.bf16.mxu0 0
      %287 = vmatpush2.bf16.xpose.msra.mxu0 0
      %288 = vmatprep.subr.bf16.mxu0 0
      %289 = vmatpush2.bf16.xpose.msra.mxu0 0
      %290 = vmatprep.subr.bf16.mxu0 0
      %291 = vmatpush2.bf16.xpose.msra.mxu0 0
      %292 = vmatprep.subr.bf16.mxu0 0
      %293 = vmatpush2.bf16.xpose.msra.mxu0 0
      %294 = vmatprep.subr.bf16.mxu0 0
      %295 = vmatpush2.bf16.xpose.msra.mxu0 0
      %296 = vmatprep.subr.bf16.mxu0 0
      %297 = vmatpush2.bf16.xpose.msra.mxu0 0
      %298 = vmatprep.subr.bf16.mxu0 0
      %299 = vmatpush2.bf16.xpose.msra.mxu0 0
      %300 = vmatprep.mubr.bf16.mxu0 0
      %301 = vmatmul.mubr.bf16.gmra.mxu0 %v263
      %v302 = vpop.f32.mrf.mxu0
      %v303 = vadd.f32 %v252, %v302
      %v304 = vpop.f32.mrf.mxu0
      %v305 = vpop.f32.mrf.mxu0
      %v306 = vadd.f32 %v253, %v305
      %v307 = vpop.f32.mrf.mxu0
      %308 = vdwg.mxu0
      %vm309 = vcmp.gt.f32.partialorder %v249, 0.0
      %v310 = vsel %vm309, 1, 0
      %v311 = vlaneseq
      %v312 = vshrl.u32 %v311, 7
      %v313 = vsub.s32 0, %v312
      %v314 = vrot.slane %v310, %v313
      %vm315 = vcmp.eq.s32.totalorder %v314, 1
      %v316 = vsel %vm315, %v303, -1e+30
      %v317 = vsel %vm315, %v306, -1e+30
      %vm318 = vcmask 130048
      %v319 = vsel %vm318, %v316, -inf
      %320 = vmax.xlane.f32.xlu0 %v319
      %v321 = vpop.xlane.xlu0 %320
      %v322 = vsel %vm318, %v317, -inf
      %323 = vmax.xlane.f32.xlu0 %v322
      %v324 = vpop.xlane.xlu0 %323
      %v325 = vsub.f32 %v316, %v321
      %v326 = vsub.f32 %v317, %v324
      %v327 = vmul.f32 %v325, 1.442695
      %v328 = vpow.pop %v327
      %v329 = vmul.f32 %v326, 1.442695
      %v330 = vpow.pop %v329
      %v331 = vsel %vm318, %v328, 0.0
      %332 = vadd.xlane.f32.xlu0 %v331
      %v333 = vpop.xlane.xlu0 %332
      %v334 = vsel %vm318, %v330, 0.0
      %335 = vadd.xlane.f32.xlu0 %v334
      %v336 = vpop.xlane.xlu0 %335
      %v337 = vrcp.pop %v333
      %v338 = vrcp.pop %v336
      %v339 = vmul.f32 %v328, %v337
      %v340 = vmul.f32 %v330, %v338
      %v342 = vlaneseq
      %v343 = vshrl.u32 %v342, 7
      %v344 = vsub.s32 0, %v343
      %v345 = vrot.slane %v249, %v344
      %v347 = vmul.f32 %v339, %v345
      %v348 = vmul.f32 %v340, %v345
      %v349 = vpack.c.bf16 %v348, %v347
      %350 = vrot.lane.b32.xlu0 %v258, 64
      %v351 = vpop.permute.xlu0 %350
      %v354 = vsel %vm318, %v349, 0
      %356 = vmatprep.subr.bf16.mxu0 0
      %357 = vmatpush1.bf16.msra.mxu0 0
      %358 = vmatprep.subr.bf16.mxu0 0
      %359 = vmatpush1.bf16.msra.mxu0 0
      %360 = vmatprep.subr.bf16.mxu0 0
      %361 = vmatpush1.bf16.msra.mxu0 0
      %362 = vmatprep.subr.bf16.mxu0 0
      %363 = vmatpush1.bf16.msra.mxu0 0
      %364 = vmatprep.subr.bf16.mxu0 0
      %365 = vmatpush1.bf16.msra.mxu0 0
      %366 = vmatprep.subr.bf16.mxu0 0
      %367 = vmatpush1.bf16.msra.mxu0 0
      %368 = vmatprep.subr.bf16.mxu0 0
      %369 = vmatpush1.bf16.msra.mxu0 0
      %370 = vmatprep.subr.bf16.mxu0 0
      %371 = vmatpush1.bf16.msra.mxu0 %v351
      %372 = vmatprep.subr.bf16.mxu0 0
      %373 = vmatpush2.bf16.msra.mxu0 0
      %374 = vmatprep.subr.bf16.mxu0 0
      %375 = vmatpush2.bf16.msra.mxu0 0
      %376 = vmatprep.subr.bf16.mxu0 0
      %377 = vmatpush2.bf16.msra.mxu0 0
      %378 = vmatprep.subr.bf16.mxu0 0
      %379 = vmatpush2.bf16.msra.mxu0 0
      %380 = vmatprep.subr.bf16.mxu0 0
      %381 = vmatpush2.bf16.msra.mxu0 0
      %382 = vmatprep.subr.bf16.mxu0 0
      %383 = vmatpush2.bf16.msra.mxu0 0
      %384 = vmatprep.subr.bf16.mxu0 0
      %385 = vmatpush2.bf16.msra.mxu0 0
      %386 = vmatprep.subr.bf16.mxu0 0
      %387 = vmatpush2.bf16.msra.mxu0 0
      %388 = vmatprep.mubr.bf16.mxu0 0
      %389 = vmatmul.mubr.bf16.gmra.mxu0 %v354
      %v390 = vpop.f32.mrf.mxu0
      %v391 = vadd.f32 0.0, %v390
      %v392 = vpop.f32.mrf.mxu0
      %v393 = vpop.f32.mrf.mxu0
      %v394 = vadd.f32 0.0, %v393
      %v395 = vpop.f32.mrf.mxu0
      %396 = vdwg.mxu0
      %s397 = scalar_lea.vmem %s223, 8
      %v398 = vld [vmem:[%s397] sm:$0xf]
      %v399 = vld [vmem:[%s397 + $0x4] sm:$0xf]
      %v400 = vunpack.c.l.bf16 %v398
      %v401 = vunpack.c.l.bf16 %v399
      %403 = vrot.lane.b32.xlu0 %v248, 120
      %v404 = vpop.permute.xlu0 %403
      %405 = vrot.lane.b32.xlu0 %v258, 88
      %v406 = vpop.permute.xlu0 %405
      %v408 = vsel %vm261, %v404, 0
      %v411 = vsel %vm261, %v406, 0
      %413 = vmatprep.subr.bf16.mxu0 0
      %414 = vmatpush1.bf16.xpose.msra.mxu0 0
      %415 = vmatprep.subr.bf16.mxu0 0
      %416 = vmatpush1.bf16.xpose.msra.mxu0 0
      %417 = vmatprep.subr.bf16.mxu0 0
      %418 = vmatpush1.bf16.xpose.msra.mxu0 0
      %419 = vmatprep.subr.bf16.mxu0 0
      %420 = vmatpush1.bf16.xpose.msra.mxu0 0
      %421 = vmatprep.subr.bf16.mxu0 0
      %422 = vmatpush1.bf16.xpose.msra.mxu0 0
      %423 = vmatprep.subr.bf16.mxu0 0
      %424 = vmatpush1.bf16.xpose.msra.mxu0 0
      %425 = vmatprep.subr.bf16.mxu0 0
      %426 = vmatpush1.bf16.xpose.msra.mxu0 0
      %427 = vmatprep.subr.bf16.mxu0 0
      %428 = vmatpush1.bf16.xpose.msra.mxu0 %v411
      %429 = vmatprep.subr.bf16.mxu0 0
      %430 = vmatpush2.bf16.xpose.msra.mxu0 0
      %431 = vmatprep.subr.bf16.mxu0 0
      %432 = vmatpush2.bf16.xpose.msra.mxu0 0
      %433 = vmatprep.subr.bf16.mxu0 0
      %434 = vmatpush2.bf16.xpose.msra.mxu0 0
      %435 = vmatprep.subr.bf16.mxu0 0
      %436 = vmatpush2.bf16.xpose.msra.mxu0 0
      %437 = vmatprep.subr.bf16.mxu0 0
      %438 = vmatpush2.bf16.xpose.msra.mxu0 0
      %439 = vmatprep.subr.bf16.mxu0 0
      %440 = vmatpush2.bf16.xpose.msra.mxu0 0
      %441 = vmatprep.subr.bf16.mxu0 0
      %442 = vmatpush2.bf16.xpose.msra.mxu0 0
      %443 = vmatprep.subr.bf16.mxu0 0
      %444 = vmatpush2.bf16.xpose.msra.mxu0 0
      %445 = vmatprep.mubr.bf16.mxu0 0
      %446 = vmatmul.mubr.bf16.gmra.mxu0 %v408
      %v447 = vpop.f32.mrf.mxu0
      %v448 = vadd.f32 %v400, %v447
      %v449 = vpop.f32.mrf.mxu0
      %v450 = vpop.f32.mrf.mxu0
      %v451 = vadd.f32 %v401, %v450
      %v452 = vpop.f32.mrf.mxu0
      %453 = vdwg.mxu0
      %v454 = vsel %vm315, %v448, -1e+30
      %v455 = vsel %vm315, %v451, -1e+30
      %v456 = vsel %vm318, %v454, -inf
      %457 = vmax.xlane.f32.xlu0 %v456
      %v458 = vpop.xlane.xlu0 %457
      %v459 = vsel %vm318, %v455, -inf
      %460 = vmax.xlane.f32.xlu0 %v459
      %v461 = vpop.xlane.xlu0 %460
      %v462 = vsub.f32 %v454, %v458
      %v463 = vsub.f32 %v455, %v461
      %v464 = vmul.f32 %v462, 1.442695
      %v465 = vpow.pop %v464
      %v466 = vmul.f32 %v463, 1.442695
      %v467 = vpow.pop %v466
      %v468 = vsel %vm318, %v465, 0.0
      %469 = vadd.xlane.f32.xlu0 %v468
      %v470 = vpop.xlane.xlu0 %469
      %v471 = vsel %vm318, %v467, 0.0
      %472 = vadd.xlane.f32.xlu0 %v471
      %v473 = vpop.xlane.xlu0 %472
      %v474 = vrcp.pop %v470
      %v475 = vrcp.pop %v473
      %v476 = vmul.f32 %v465, %v474
      %v477 = vmul.f32 %v467, %v475
      %v478 = vmul.f32 %v476, %v345
      %v479 = vmul.f32 %v477, %v345
      %v480 = vpack.c.bf16 %v479, %v478
      %481 = vrot.lane.b32.xlu0 %v258, 56
      %v482 = vpop.permute.xlu0 %481
      %v485 = vsel %vm318, %v480, 0
      %487 = vmatprep.subr.bf16.mxu0 0
      %488 = vmatpush1.bf16.msra.mxu0 0
      %489 = vmatprep.subr.bf16.mxu0 0
      %490 = vmatpush1.bf16.msra.mxu0 0
      %491 = vmatprep.subr.bf16.mxu0 0
      %492 = vmatpush1.bf16.msra.mxu0 0
      %493 = vmatprep.subr.bf16.mxu0 0
      %494 = vmatpush1.bf16.msra.mxu0 0
      %495 = vmatprep.subr.bf16.mxu0 0
      %496 = vmatpush1.bf16.msra.mxu0 0
      %497 = vmatprep.subr.bf16.mxu0 0
      %498 = vmatpush1.bf16.msra.mxu0 0
      %499 = vmatprep.subr.bf16.mxu0 0
      %500 = vmatpush1.bf16.msra.mxu0 0
      %501 = vmatprep.subr.bf16.mxu0 0
      %502 = vmatpush1.bf16.msra.mxu0 %v482
      %503 = vmatprep.subr.bf16.mxu0 0
      %504 = vmatpush2.bf16.msra.mxu0 0
      %505 = vmatprep.subr.bf16.mxu0 0
      %506 = vmatpush2.bf16.msra.mxu0 0
      %507 = vmatprep.subr.bf16.mxu0 0
      %508 = vmatpush2.bf16.msra.mxu0 0
      %509 = vmatprep.subr.bf16.mxu0 0
      %510 = vmatpush2.bf16.msra.mxu0 0
      %511 = vmatprep.subr.bf16.mxu0 0
      %512 = vmatpush2.bf16.msra.mxu0 0
      %513 = vmatprep.subr.bf16.mxu0 0
      %514 = vmatpush2.bf16.msra.mxu0 0
      %515 = vmatprep.subr.bf16.mxu0 0
      %516 = vmatpush2.bf16.msra.mxu0 0
      %517 = vmatprep.subr.bf16.mxu0 0
      %518 = vmatpush2.bf16.msra.mxu0 0
      %519 = vmatprep.mubr.bf16.mxu0 0
      %520 = vmatmul.mubr.bf16.gmra.mxu0 %v485
      %v521 = vpop.f32.mrf.mxu0
      %v522 = vadd.f32 0.0, %v521
      %v523 = vpop.f32.mrf.mxu0
      %v524 = vpop.f32.mrf.mxu0
      %v525 = vadd.f32 0.0, %v524
      %v526 = vpop.f32.mrf.mxu0
      %527 = vdwg.mxu0
      %s528 = scalar_lea.vmem %s223, 16
      %v529 = vld [vmem:[%s528] sm:$0xf]
      %v530 = vld [vmem:[%s528 + $0x4] sm:$0xf]
      %v531 = vunpack.c.l.bf16 %v529
      %v532 = vunpack.c.l.bf16 %v530
      %533 = vrot.lane.b32.xlu0 %v248, 112
      %v534 = vpop.permute.xlu0 %533
      %535 = vrot.lane.b32.xlu0 %v258, 80
      %v536 = vpop.permute.xlu0 %535
      %v538 = vsel %vm261, %v534, 0
      %v541 = vsel %vm261, %v536, 0
      %543 = vmatprep.subr.bf16.mxu0 0
      %544 = vmatpush1.bf16.xpose.msra.mxu0 0
      %545 = vmatprep.subr.bf16.mxu0 0
      %546 = vmatpush1.bf16.xpose.msra.mxu0 0
      %547 = vmatprep.subr.bf16.mxu0 0
      %548 = vmatpush1.bf16.xpose.msra.mxu0 0
      %549 = vmatprep.subr.bf16.mxu0 0
      %550 = vmatpush1.bf16.xpose.msra.mxu0 0
      %551 = vmatprep.subr.bf16.mxu0 0
      %552 = vmatpush1.bf16.xpose.msra.mxu0 0
      %553 = vmatprep.subr.bf16.mxu0 0
      %554 = vmatpush1.bf16.xpose.msra.mxu0 0
      %555 = vmatprep.subr.bf16.mxu0 0
      %556 = vmatpush1.bf16.xpose.msra.mxu0 0
      %557 = vmatprep.subr.bf16.mxu0 0
      %558 = vmatpush1.bf16.xpose.msra.mxu0 %v541
      %559 = vmatprep.subr.bf16.mxu0 0
      %560 = vmatpush2.bf16.xpose.msra.mxu0 0
      %561 = vmatprep.subr.bf16.mxu0 0
      %562 = vmatpush2.bf16.xpose.msra.mxu0 0
      %563 = vmatprep.subr.bf16.mxu0 0
      %564 = vmatpush2.bf16.xpose.msra.mxu0 0
      %565 = vmatprep.subr.bf16.mxu0 0
      %566 = vmatpush2.bf16.xpose.msra.mxu0 0
      %567 = vmatprep.subr.bf16.mxu0 0
      %568 = vmatpush2.bf16.xpose.msra.mxu0 0
      %569 = vmatprep.subr.bf16.mxu0 0
      %570 = vmatpush2.bf16.xpose.msra.mxu0 0
      %571 = vmatprep.subr.bf16.mxu0 0
      %572 = vmatpush2.bf16.xpose.msra.mxu0 0
      %573 = vmatprep.subr.bf16.mxu0 0
      %574 = vmatpush2.bf16.xpose.msra.mxu0 0
      %575 = vmatprep.mubr.bf16.mxu0 0
      %576 = vmatmul.mubr.bf16.gmra.mxu0 %v538
      %v577 = vpop.f32.mrf.mxu0
      %v578 = vadd.f32 %v531, %v577
      %v579 = vpop.f32.mrf.mxu0
      %v580 = vpop.f32.mrf.mxu0
      %v581 = vadd.f32 %v532, %v580
      %v582 = vpop.f32.mrf.mxu0
      %583 = vdwg.mxu0
      %v584 = vsel %vm315, %v578, -1e+30
      %v585 = vsel %vm315, %v581, -1e+30
      %v586 = vsel %vm318, %v584, -inf
      %587 = vmax.xlane.f32.xlu0 %v586
      %v588 = vpop.xlane.xlu0 %587
      %v589 = vsel %vm318, %v585, -inf
      %590 = vmax.xlane.f32.xlu0 %v589
      %v591 = vpop.xlane.xlu0 %590
      %v592 = vsub.f32 %v584, %v588
      %v593 = vsub.f32 %v585, %v591
      %v594 = vmul.f32 %v592, 1.442695
      %v595 = vpow.pop %v594
      %v596 = vmul.f32 %v593, 1.442695
      %v597 = vpow.pop %v596
      %v598 = vsel %vm318, %v595, 0.0
      %599 = vadd.xlane.f32.xlu0 %v598
      %v600 = vpop.xlane.xlu0 %599
      %v601 = vsel %vm318, %v597, 0.0
      %602 = vadd.xlane.f32.xlu0 %v601
      %v603 = vpop.xlane.xlu0 %602
      %v604 = vrcp.pop %v600
      %v605 = vrcp.pop %v603
      %v606 = vmul.f32 %v595, %v604
      %v607 = vmul.f32 %v597, %v605
      %v608 = vmul.f32 %v606, %v345
      %v609 = vmul.f32 %v607, %v345
      %v610 = vpack.c.bf16 %v609, %v608
      %611 = vrot.lane.b32.xlu0 %v258, 48
      %v612 = vpop.permute.xlu0 %611
      %v615 = vsel %vm318, %v610, 0
      %617 = vmatprep.subr.bf16.mxu0 0
      %618 = vmatpush1.bf16.msra.mxu0 0
      %619 = vmatprep.subr.bf16.mxu0 0
      %620 = vmatpush1.bf16.msra.mxu0 0
      %621 = vmatprep.subr.bf16.mxu0 0
      %622 = vmatpush1.bf16.msra.mxu0 0
      %623 = vmatprep.subr.bf16.mxu0 0
      %624 = vmatpush1.bf16.msra.mxu0 0
      %625 = vmatprep.subr.bf16.mxu0 0
      %626 = vmatpush1.bf16.msra.mxu0 0
      %627 = vmatprep.subr.bf16.mxu0 0
      %628 = vmatpush1.bf16.msra.mxu0 0
      %629 = vmatprep.subr.bf16.mxu0 0
      %630 = vmatpush1.bf16.msra.mxu0 0
      %631 = vmatprep.subr.bf16.mxu0 0
      %632 = vmatpush1.bf16.msra.mxu0 %v612
      %633 = vmatprep.subr.bf16.mxu0 0
      %634 = vmatpush2.bf16.msra.mxu0 0
      %635 = vmatprep.subr.bf16.mxu0 0
      %636 = vmatpush2.bf16.msra.mxu0 0
      %637 = vmatprep.subr.bf16.mxu0 0
      %638 = vmatpush2.bf16.msra.mxu0 0
      %639 = vmatprep.subr.bf16.mxu0 0
      %640 = vmatpush2.bf16.msra.mxu0 0
      %641 = vmatprep.subr.bf16.mxu0 0
      %642 = vmatpush2.bf16.msra.mxu0 0
      %643 = vmatprep.subr.bf16.mxu0 0
      %644 = vmatpush2.bf16.msra.mxu0 0
      %645 = vmatprep.subr.bf16.mxu0 0
      %646 = vmatpush2.bf16.msra.mxu0 0
      %647 = vmatprep.subr.bf16.mxu0 0
      %648 = vmatpush2.bf16.msra.mxu0 0
      %649 = vmatprep.mubr.bf16.mxu0 0
      %650 = vmatmul.mubr.bf16.gmra.mxu0 %v615
      %v651 = vpop.f32.mrf.mxu0
      %v652 = vadd.f32 0.0, %v651
      %v653 = vpop.f32.mrf.mxu0
      %v654 = vpop.f32.mrf.mxu0
      %v655 = vadd.f32 0.0, %v654
      %v656 = vpop.f32.mrf.mxu0
      %657 = vdwg.mxu0
      %s658 = scalar_lea.vmem %s223, 24
      %v659 = vld [vmem:[%s658] sm:$0xf]
      %v660 = vld [vmem:[%s658 + $0x4] sm:$0xf]
      %v661 = vunpack.c.l.bf16 %v659
      %v662 = vunpack.c.l.bf16 %v660
      %663 = vrot.lane.b32.xlu0 %v248, 104
      %v664 = vpop.permute.xlu0 %663
      %665 = vrot.lane.b32.xlu0 %v258, 72
      %v666 = vpop.permute.xlu0 %665
      %v668 = vsel %vm261, %v664, 0
      %v671 = vsel %vm261, %v666, 0
      %673 = vmatprep.subr.bf16.mxu0 0
      %674 = vmatpush1.bf16.xpose.msra.mxu0 0
      %675 = vmatprep.subr.bf16.mxu0 0
      %676 = vmatpush1.bf16.xpose.msra.mxu0 0
      %677 = vmatprep.subr.bf16.mxu0 0
      %678 = vmatpush1.bf16.xpose.msra.mxu0 0
      %679 = vmatprep.subr.bf16.mxu0 0
      %680 = vmatpush1.bf16.xpose.msra.mxu0 0
      %681 = vmatprep.subr.bf16.mxu0 0
      %682 = vmatpush1.bf16.xpose.msra.mxu0 0
      %683 = vmatprep.subr.bf16.mxu0 0
      %684 = vmatpush1.bf16.xpose.msra.mxu0 0
      %685 = vmatprep.subr.bf16.mxu0 0
      %686 = vmatpush1.bf16.xpose.msra.mxu0 0
      %687 = vmatprep.subr.bf16.mxu0 0
      %688 = vmatpush1.bf16.xpose.msra.mxu0 %v671
      %689 = vmatprep.subr.bf16.mxu0 0
      %690 = vmatpush2.bf16.xpose.msra.mxu0 0
      %691 = vmatprep.subr.bf16.mxu0 0
      %692 = vmatpush2.bf16.xpose.msra.mxu0 0
      %693 = vmatprep.subr.bf16.mxu0 0
      %694 = vmatpush2.bf16.xpose.msra.mxu0 0
      %695 = vmatprep.subr.bf16.mxu0 0
      %696 = vmatpush2.bf16.xpose.msra.mxu0 0
      %697 = vmatprep.subr.bf16.mxu0 0
      %698 = vmatpush2.bf16.xpose.msra.mxu0 0
      %699 = vmatprep.subr.bf16.mxu0 0
      %700 = vmatpush2.bf16.xpose.msra.mxu0 0
      %701 = vmatprep.subr.bf16.mxu0 0
      %702 = vmatpush2.bf16.xpose.msra.mxu0 0
      %703 = vmatprep.subr.bf16.mxu0 0
      %704 = vmatpush2.bf16.xpose.msra.mxu0 0
      %705 = vmatprep.mubr.bf16.mxu0 0
      %706 = vmatmul.mubr.bf16.gmra.mxu0 %v668
      %v707 = vpop.f32.mrf.mxu0
      %v708 = vadd.f32 %v661, %v707
      %v709 = vpop.f32.mrf.mxu0
      %v710 = vpop.f32.mrf.mxu0
      %v711 = vadd.f32 %v662, %v710
      %v712 = vpop.f32.mrf.mxu0
      %713 = vdwg.mxu0
      %v714 = vsel %vm315, %v708, -1e+30
      %v715 = vsel %vm315, %v711, -1e+30
      %v716 = vsel %vm318, %v714, -inf
      %717 = vmax.xlane.f32.xlu0 %v716
      %v718 = vpop.xlane.xlu0 %717
      %v719 = vsel %vm318, %v715, -inf
      %720 = vmax.xlane.f32.xlu0 %v719
      %v721 = vpop.xlane.xlu0 %720
      %v722 = vsub.f32 %v714, %v718
      %v723 = vsub.f32 %v715, %v721
      %v724 = vmul.f32 %v722, 1.442695
      %v725 = vpow.pop %v724
      %v726 = vmul.f32 %v723, 1.442695
      %v727 = vpow.pop %v726
      %v728 = vsel %vm318, %v725, 0.0
      %729 = vadd.xlane.f32.xlu0 %v728
      %v730 = vpop.xlane.xlu0 %729
      %v731 = vsel %vm318, %v727, 0.0
      %732 = vadd.xlane.f32.xlu0 %v731
      %v733 = vpop.xlane.xlu0 %732
      %v734 = vrcp.pop %v730
      %v735 = vrcp.pop %v733
      %v736 = vmul.f32 %v725, %v734
      %v737 = vmul.f32 %v727, %v735
      %v738 = vmul.f32 %v736, %v345
      %v739 = vmul.f32 %v737, %v345
      %v740 = vpack.c.bf16 %v739, %v738
      %741 = vrot.lane.b32.xlu0 %v258, 40
      %v742 = vpop.permute.xlu0 %741
      %v745 = vsel %vm318, %v740, 0
      %747 = vmatprep.subr.bf16.mxu0 0
      %748 = vmatpush1.bf16.msra.mxu0 0
      %749 = vmatprep.subr.bf16.mxu0 0
      %750 = vmatpush1.bf16.msra.mxu0 0
      %751 = vmatprep.subr.bf16.mxu0 0
      %752 = vmatpush1.bf16.msra.mxu0 0
      %753 = vmatprep.subr.bf16.mxu0 0
      %754 = vmatpush1.bf16.msra.mxu0 0
      %755 = vmatprep.subr.bf16.mxu0 0
      %756 = vmatpush1.bf16.msra.mxu0 0
      %757 = vmatprep.subr.bf16.mxu0 0
      %758 = vmatpush1.bf16.msra.mxu0 0
      %759 = vmatprep.subr.bf16.mxu0 0
      %760 = vmatpush1.bf16.msra.mxu0 0
      %761 = vmatprep.subr.bf16.mxu0 0
      %762 = vmatpush1.bf16.msra.mxu0 %v742
      %763 = vmatprep.subr.bf16.mxu0 0
      %764 = vmatpush2.bf16.msra.mxu0 0
      %765 = vmatprep.subr.bf16.mxu0 0
      %766 = vmatpush2.bf16.msra.mxu0 0
      %767 = vmatprep.subr.bf16.mxu0 0
      %768 = vmatpush2.bf16.msra.mxu0 0
      %769 = vmatprep.subr.bf16.mxu0 0
      %770 = vmatpush2.bf16.msra.mxu0 0
      %771 = vmatprep.subr.bf16.mxu0 0
      %772 = vmatpush2.bf16.msra.mxu0 0
      %773 = vmatprep.subr.bf16.mxu0 0
      %774 = vmatpush2.bf16.msra.mxu0 0
      %775 = vmatprep.subr.bf16.mxu0 0
      %776 = vmatpush2.bf16.msra.mxu0 0
      %777 = vmatprep.subr.bf16.mxu0 0
      %778 = vmatpush2.bf16.msra.mxu0 0
      %779 = vmatprep.mubr.bf16.mxu0 0
      %780 = vmatmul.mubr.bf16.gmra.mxu0 %v745
      %v781 = vpop.f32.mrf.mxu0
      %v782 = vadd.f32 0.0, %v781
      %v783 = vpop.f32.mrf.mxu0
      %v784 = vpop.f32.mrf.mxu0
      %v785 = vadd.f32 0.0, %v784
      %v786 = vpop.f32.mrf.mxu0
      %787 = vdwg.mxu0
      %790 = vrot.lane.b32.xlu0 %v522, 8
      %v791 = vpop.permute.xlu0 %790
      %792 = vrot.lane.b32.xlu0 %v525, 8
      %v793 = vpop.permute.xlu0 %792
      %798 = vrot.lane.b32.xlu0 %v652, 16
      %v799 = vpop.permute.xlu0 %798
      %800 = vrot.lane.b32.xlu0 %v655, 16
      %v801 = vpop.permute.xlu0 %800
      %806 = vrot.lane.b32.xlu0 %v782, 24
      %v807 = vpop.permute.xlu0 %806
      %808 = vrot.lane.b32.xlu0 %v785, 24
      %v809 = vpop.permute.xlu0 %808
      %v812 = vsel %vm261, %v391, %v791
      %v813 = vsel %vm261, %v394, %v793
      %v814 = vsel %vm318, %v812, %v799
      %v815 = vsel %vm318, %v813, %v801
      %vm816 = vcmask 195584
      %v817 = vsel %vm816, %v814, %v807
      %v818 = vsel %vm816, %v815, %v809
      %v819 = vpack.c.bf16 %v818, %v817
      %v821 = vunpack.c.l.b16 %v819
      %v822 = vunpack.c.h.b16 %v819
      %v823 = vpack.c.b16 %v821, %v821
      %v824 = vpack.c.b16 %v822, %v822
      %vm827 = vcmask 257024
      %828 = vst.msk [vmem:[%s231] sm:$0xf] %vm827, %v823
      %829 = vst.msk [vmem:[%s231 + $0x4] sm:$0xf] %vm827, %v824
      %p830 = scmp.lt.s32.totalorder %s15, 1
      %s831 = scalar_select %p830, %s15, 1
      %s832 = smul.addr %s831, 2
      %s833 = smul.addr %s832, 4
      %s834 = scalar_lea.vmem %s4, %s833
      // Predicated region
      $region37: #{conformer_forward.26} parent=35 // pred_check
        %p835 = pneg %p132
      $region38: #{conformer_forward.26} parent=35 // pred_check_branch
        %837 = sbr.rel (%p835) target = $region40
      $region39: #{conformer_forward.26} parent=35 // pred_region
        _
      $region40: #{conformer_forward.26} parent=35 // pred_fallthru
        _
    $region36: #{conformer_forward.26} parent=5 // pred_fallthru
      _
    %p838 = scmp.le.s32.totalorder 2, %s10
    // Predicated region
    $region41: #{conformer_forward.26} parent=5 // pred_check
      %p839 = pneg %p838
    $region42: #{conformer_forward.26} parent=5 // pred_check_branch
      %841 = sbr.rel (%p839) target = $region44
    $region43: #{conformer_forward.26} parent=5 // pred_region
      %s842 = ssub.s32 %s10, 2
      // Predicated region
      $region45: #{conformer_forward.26} parent=43 // pred_check
        %p843 = pneg %p138
      $region46: #{conformer_forward.26} parent=43 // pred_check_branch
        %845 = sbr.rel (%p843) target = $region48
      $region47: #{conformer_forward.26} parent=43 // pred_region
        %p846 = scmp.lt.s32.totalorder %s16, 1
        %s847 = scalar_select %p846, %s16, 1
        %s848 = smul.addr %s847, 2
        %s849 = smul.addr %s848, 4
        %s850 = scalar_lea.vmem %s4, %s849
      $region48: #{conformer_forward.26} parent=43 // pred_fallthru
        _
    $region44: #{conformer_forward.26} parent=5 // pred_fallthru
      _
  $region6: #{conformer_forward.26} parent=0 // loop_footer
    %s14 = sadd.s32 1, %s10
  $region7: #{conformer_forward.26} parent=0 // loop_footer_branch
    %9 = sbr.rel target = $region3
  $region8: #{conformer_forward.26} parent=0 // loop_exit
    _

// kernel: conformer_forward.28
$region0: #{conformer_forward.28}
  #allocation0 [shape = 'u32[]', space=smem, size = 0x4, offset = 0x4, fixed_abs, tag = 'smem constant byte address 0x4 - core index']
  #allocation1 [shape = 'u32[144,128]{1,0:T(1,128)}', space=vmem, size = 0x12000, scoped, tag = 'internal scratch']
  %s0 = inlined_call_operand.vmem [shape: f32[32,32], index: 0, kind: input, shape index: {}]
  %s1 = inlined_call_operand.vmem [shape: f32[1,32], index: 1, kind: input, shape index: {}]
  %s2 = inlined_call_operand.vmem [shape: f32[1,32], index: 2, kind: input, shape index: {}]
  %s3 = inlined_call_operand.vmem [shape: bf16[32,32], index: 3, kind: input, shape index: {}]
  %s4 = inlined_call_operand.vmem [shape: f32[1,32], index: 4, kind: input, shape index: {}]
  %s5 = inlined_call_operand.vmem [shape: bf16[32,32], index: 5, kind: input, shape index: {}]
  %s6 = inlined_call_operand.vmem [shape: f32[1,32], index: 6, kind: input, shape index: {}]
  %s7 = inlined_call_operand.vmem [shape: bf16[32,32], index: 7, kind: output, shape index: {}]
  %s8 = sld [smem:[#allocation0]]
  $region38: #{conformer_forward.28} parent=0
    _
  %s10 = ssub.s32 1, %s8
  %s11 = scalar_select 0, %s10, %s8
  // Predicated region
  $region2: #{conformer_forward.28} parent=0 // pred_check
    _
  $region3: #{conformer_forward.28} parent=0 // pred_check_branch
    %13 = sbr.rel (0) target = $region5
  $region4: #{conformer_forward.28} parent=0 // pred_region
    _
  $region5: #{conformer_forward.28} parent=0 // pred_fallthru
    _
  // Predicated region
  $region6: #{conformer_forward.28} parent=0 // pred_check
    _
  $region7: #{conformer_forward.28} parent=0 // pred_check_branch
    %15 = sbr.rel (0) target = $region9
  $region8: #{conformer_forward.28} parent=0 // pred_region
    _
  $region9: #{conformer_forward.28} parent=0 // pred_fallthru
    _
  // Predicated region
  $region10: #{conformer_forward.28} parent=0 // pred_check
    _
  $region11: #{conformer_forward.28} parent=0 // pred_check_branch
    %17 = sbr.rel (0) target = $region13
  $region12: #{conformer_forward.28} parent=0 // pred_region
    _
  $region13: #{conformer_forward.28} parent=0 // pred_fallthru
    _
  // Predicated region
  $region14: #{conformer_forward.28} parent=0 // pred_check
    _
  $region15: #{conformer_forward.28} parent=0 // pred_check_branch
    %19 = sbr.rel (0) target = $region17
  $region16: #{conformer_forward.28} parent=0 // pred_region
    _
  $region17: #{conformer_forward.28} parent=0 // pred_fallthru
    _
  // Predicated region
  $region18: #{conformer_forward.28} parent=0 // pred_check
    _
  $region19: #{conformer_forward.28} parent=0 // pred_check_branch
    %21 = sbr.rel (0) target = $region21
  $region20: #{conformer_forward.28} parent=0 // pred_region
    _
  $region21: #{conformer_forward.28} parent=0 // pred_fallthru
    _
  // Predicated region
  $region22: #{conformer_forward.28} parent=0 // pred_check
    _
  $region23: #{conformer_forward.28} parent=0 // pred_check_branch
    %23 = sbr.rel (0) target = $region25
  $region24: #{conformer_forward.28} parent=0 // pred_region
    _
  $region25: #{conformer_forward.28} parent=0 // pred_fallthru
    _
  // Predicated region
  $region26: #{conformer_forward.28} parent=0 // pred_check
    _
  $region27: #{conformer_forward.28} parent=0 // pred_check_branch
    %25 = sbr.rel (0) target = $region29
  $region28: #{conformer_forward.28} parent=0 // pred_region
    _
  $region29: #{conformer_forward.28} parent=0 // pred_fallthru
    _
  %v27 = vld [vmem:[%s0] sm:$0xff]
  %v28 = vld [vmem:[%s0 + $0x8] sm:$0xff]
  %v29 = vld [vmem:[%s0 + $0x10] sm:$0xff]
  %v30 = vld [vmem:[%s0 + $0x18] sm:$0xff]
  %vm31 = vcmask 261120
  %v32 = vsel %vm31, %v27, 0.0
  %33 = vadd.xlane.f32.xlu0 %v32
  %v34 = vpop.xlane.xlu0 %33
  %v35 = vsel %vm31, %v28, 0.0
  %36 = vadd.xlane.f32.xlu0 %v35
  %v37 = vpop.xlane.xlu0 %36
  %v38 = vsel %vm31, %v29, 0.0
  %39 = vadd.xlane.f32.xlu0 %v38
  %v40 = vpop.xlane.xlu0 %39
  %v41 = vsel %vm31, %v30, 0.0
  %42 = vadd.xlane.f32.xlu0 %v41
  %v43 = vpop.xlane.xlu0 %42
  %v44 = vrcp.pop 32.0
  %v45 = vmul.f32 %v34, %v44
  %v46 = vmul.f32 %v37, %v44
  %v47 = vmul.f32 %v40, %v44
  %v48 = vmul.f32 %v43, %v44
  %v49 = vsub.f32 %v27, %v45
  %v50 = vsub.f32 %v28, %v46
  %v51 = vsub.f32 %v29, %v47
  %v52 = vsub.f32 %v30, %v48
  %v53 = vmul.f32 %v49, %v49
  %v54 = vmul.f32 %v50, %v50
  %v55 = vmul.f32 %v51, %v51
  %v56 = vmul.f32 %v52, %v52
  %v57 = vsel %vm31, %v53, 0.0
  %58 = vadd.xlane.f32.xlu0 %v57
  %v59 = vpop.xlane.xlu0 %58
  %v60 = vsel %vm31, %v54, 0.0
  %61 = vadd.xlane.f32.xlu0 %v60
  %v62 = vpop.xlane.xlu0 %61
  %v63 = vsel %vm31, %v55, 0.0
  %64 = vadd.xlane.f32.xlu0 %v63
  %v65 = vpop.xlane.xlu0 %64
  %v66 = vsel %vm31, %v56, 0.0
  %67 = vadd.xlane.f32.xlu0 %v66
  %v68 = vpop.xlane.xlu0 %67
  %v69 = vmul.f32 %v59, %v44
  %v70 = vmul.f32 %v62, %v44
  %v71 = vmul.f32 %v65, %v44
  %v72 = vmul.f32 %v68, %v44
  %v73 = vadd.f32 %v69, 1e-12
  %v74 = vadd.f32 %v70, 1e-12
  %v75 = vadd.f32 %v71, 1e-12
  %v76 = vadd.f32 %v72, 1e-12
  %v77 = vrsqrt.pop %v73
  %v78 = vrsqrt.pop %v74
  %v79 = vrsqrt.pop %v75
  %v80 = vrsqrt.pop %v76
  %v81 = vmul.f32 %v49, %v77
  %v82 = vmul.f32 %v50, %v78
  %v83 = vmul.f32 %v51, %v79
  %v84 = vmul.f32 %v52, %v80
  %v85 = vld [vmem:[%s1] sm:$0x1]
  %v87 = vlaneseq
  %v88 = vshrl.u32 %v87, 7
  %v89 = vsub.s32 0, %v88
  %v90 = vrot.slane %v85, %v89
  %v92 = vmul.f32 %v81, %v90
  %v93 = vmul.f32 %v82, %v90
  %v94 = vmul.f32 %v83, %v90
  %v95 = vmul.f32 %v84, %v90
  %v96 = vld [vmem:[%s2] sm:$0x1]
  %v98 = vlaneseq
  %v99 = vshrl.u32 %v98, 7
  %v100 = vsub.s32 0, %v99
  %v101 = vrot.slane %v96, %v100
  %v103 = vadd.f32 %v92, %v101
  %v104 = vadd.f32 %v93, %v101
  %v105 = vadd.f32 %v94, %v101
  %v106 = vadd.f32 %v95, %v101
  %v107 = vpack.c.bf16 %v104, %v103
  %v108 = vpack.c.bf16 %v106, %v105
  %v109 = vld [vmem:[%s3] sm:$0xf]
  %v110 = vld [vmem:[%s3 + $0x4] sm:$0xf]
  %v111 = vld [vmem:[%s3 + $0x8] sm:$0xf]
  %v112 = vld [vmem:[%s3 + $0xc] sm:$0xf]
  %v113 = vld [vmem:[%s4] sm:$0x1]
  %v115 = vlaneseq
  %v116 = vshrl.u32 %v115, 7
  %v117 = vsub.s32 0, %v116
  %v118 = vrot.slane %v113, %v117
  %v124 = vunpack.c.l.b16 %v109
  %v125 = vunpack.c.l.b16 %v110
  %v126 = vunpack.c.l.b16 %v111
  %v127 = vunpack.c.l.b16 %v112
  %v128 = vpack.c.b16 %v125, %v124
  %v129 = vpack.c.b16 %v127, %v126
  %v133 = vsel %vm31, %v107, 0
  %v136 = vsel %vm31, %v108, 0
  %138 = vmatprep.subr.bf16.mxu0 0
  %139 = vmatpush1.bf16.msra.mxu0 0
  %140 = vmatprep.subr.bf16.mxu0 0
  %141 = vmatpush1.bf16.msra.mxu0 0
  %142 = vmatprep.subr.bf16.mxu0 0
  %143 = vmatpush1.bf16.msra.mxu0 0
  %144 = vmatprep.subr.bf16.mxu0 0
  %145 = vmatpush1.bf16.msra.mxu0 0
  %146 = vmatprep.subr.bf16.mxu0 0
  %147 = vmatpush1.bf16.msra.mxu0 0
  %148 = vmatprep.subr.bf16.mxu0 0
  %149 = vmatpush1.bf16.msra.mxu0 0
  %150 = vmatprep.subr.bf16.mxu0 0
  %151 = vmatpush1.bf16.msra.mxu0 %v129
  %152 = vmatprep.subr.bf16.mxu0 0
  %153 = vmatpush1.bf16.msra.mxu0 %v128
  %154 = vmatprep.subr.bf16.mxu0 0
  %155 = vmatpush2.bf16.msra.mxu0 0
  %156 = vmatprep.subr.bf16.mxu0 0
  %157 = vmatpush2.bf16.msra.mxu0 0
  %158 = vmatprep.subr.bf16.mxu0 0
  %159 = vmatpush2.bf16.msra.mxu0 0
  %160 = vmatprep.subr.bf16.mxu0 0
  %161 = vmatpush2.bf16.msra.mxu0 0
  %162 = vmatprep.subr.bf16.mxu0 0
  %163 = vmatpush2.bf16.msra.mxu0 0
  %164 = vmatprep.subr.bf16.mxu0 0
  %165 = vmatpush2.bf16.msra.mxu0 0
  %166 = vmatprep.subr.bf16.mxu0 0
  %167 = vmatpush2.bf16.msra.mxu0 0
  %168 = vmatprep.subr.bf16.mxu0 0
  %169 = vmatpush2.bf16.msra.mxu0 0
  %170 = vmatprep.mubr.bf16.mxu0 0
  %171 = vmatmul.mubr.bf16.gmra.mxu0 %v133
  %v172 = vpop.f32.mrf.mxu0
  %v173 = vadd.f32 %v118, %v172
  %v174 = vpop.f32.mrf.mxu0
  %v175 = vpop.f32.mrf.mxu0
  %v176 = vadd.f32 %v118, %v175
  %v177 = vpop.f32.mrf.mxu0
  %178 = vmatprep.mubr.bf16.mxu0 0
  %179 = vmatmul.mubr.bf16.gmra.mxu0 %v136
  %v180 = vpop.f32.mrf.mxu0
  %v181 = vadd.f32 %v118, %v180
  %v182 = vpop.f32.mrf.mxu0
  %v183 = vpop.f32.mrf.mxu0
  %v184 = vadd.f32 %v118, %v183
  %v185 = vpop.f32.mrf.mxu0
  %186 = vdwg.mxu0
  %v187 = vld [vmem:[%s5] sm:$0xf]
  %v188 = vld [vmem:[%s5 + $0x4] sm:$0xf]
  %v189 = vld [vmem:[%s5 + $0x8] sm:$0xf]
  %v190 = vld [vmem:[%s5 + $0xc] sm:$0xf]
  %v191 = vld [vmem:[%s6] sm:$0x1]
  %v193 = vlaneseq
  %v194 = vshrl.u32 %v193, 7
  %v195 = vsub.s32 0, %v194
  %v196 = vrot.slane %v191, %v195
  %v202 = vunpack.c.l.b16 %v187
  %v203 = vunpack.c.l.b16 %v188
  %v204 = vunpack.c.l.b16 %v189
  %v205 = vunpack.c.l.b16 %v190
  %v206 = vpack.c.b16 %v203, %v202
  %v207 = vpack.c.b16 %v205, %v204
  %210 = vmatprep.subr.bf16.mxu0 0
  %211 = vmatpush1.bf16.msra.mxu0 0
  %212 = vmatprep.subr.bf16.mxu0 0
  %213 = vmatpush1.bf16.msra.mxu0 0
  %214 = vmatprep.subr.bf16.mxu0 0
  %215 = vmatpush1.bf16.msra.mxu0 0
  %216 = vmatprep.subr.bf16.mxu0 0
  %217 = vmatpush1.bf16.msra.mxu0 0
  %218 = vmatprep.subr.bf16.mxu0 0
  %219 = vmatpush1.bf16.msra.mxu0 0
  %220 = vmatprep.subr.bf16.mxu0 0
  %221 = vmatpush1.bf16.msra.mxu0 0
  %222 = vmatprep.subr.bf16.mxu0 0
  %223 = vmatpush1.bf16.msra.mxu0 %v207
  %224 = vmatprep.subr.bf16.mxu0 0
  %225 = vmatpush1.bf16.msra.mxu0 %v206
  %226 = vmatprep.subr.bf16.mxu0 0
  %227 = vmatpush2.bf16.msra.mxu0 0
  %228 = vmatprep.subr.bf16.mxu0 0
  %229 = vmatpush2.bf16.msra.mxu0 0
  %230 = vmatprep.subr.bf16.mxu0 0
  %231 = vmatpush2.bf16.msra.mxu0 0
  %232 = vmatprep.subr.bf16.mxu0 0
  %233 = vmatpush2.bf16.msra.mxu0 0
  %234 = vmatprep.subr.bf16.mxu0 0
  %235 = vmatpush2.bf16.msra.mxu0 0
  %236 = vmatprep.subr.bf16.mxu0 0
  %237 = vmatpush2.bf16.msra.mxu0 0
  %238 = vmatprep.subr.bf16.mxu0 0
  %239 = vmatpush2.bf16.msra.mxu0 0
  %240 = vmatprep.subr.bf16.mxu0 0
  %241 = vmatpush2.bf16.msra.mxu0 0
  %242 = vmatprep.mubr.bf16.mxu0 0
  %243 = vmatmul.mubr.bf16.gmra.mxu0 %v133
  %v244 = vpop.f32.mrf.mxu0
  %v245 = vadd.f32 %v196, %v244
  %v246 = vpop.f32.mrf.mxu0
  %v247 = vpop.f32.mrf.mxu0
  %v248 = vadd.f32 %v196, %v247
  %v249 = vpop.f32.mrf.mxu0
  %250 = vmatprep.mubr.bf16.mxu0 0
  %251 = vmatmul.mubr.bf16.gmra.mxu0 %v136
  %v252 = vpop.f32.mrf.mxu0
  %v253 = vadd.f32 %v196, %v252
  %v254 = vpop.f32.mrf.mxu0
  %v255 = vpop.f32.mrf.mxu0
  %v256 = vadd.f32 %v196, %v255
  %v257 = vpop.f32.mrf.mxu0
  %258 = vdwg.mxu0
  %v259 = vxor.u32 %v245, 2147483648
  %v260 = vxor.u32 %v248, 2147483648
  %v261 = vxor.u32 %v253, 2147483648
  %v262 = vxor.u32 %v256, 2147483648
  %v263 = vmul.f32 %v259, 1.442695
  %v264 = vpow.pop %v263
  %v265 = vmul.f32 %v260, 1.442695
  %v266 = vpow.pop %v265
  %v267 = vmul.f32 %v261, 1.442695
  %v268 = vpow.pop %v267
  %v269 = vmul.f32 %v262, 1.442695
  %v270 = vpow.pop %v269
  %v271 = vadd.f32 %v264, 1.0
  %v272 = vadd.f32 %v266, 1.0
  %v273 = vadd.f32 %v268, 1.0
  %v274 = vadd.f32 %v270, 1.0
  %v275 = vrcp.pop %v271
  %v276 = vmul.f32 1.0, %v275
  %v277 = vrcp.pop %v272
  %v278 = vmul.f32 1.0, %v277
  %v279 = vrcp.pop %v273
  %v280 = vmul.f32 1.0, %v279
  %v281 = vrcp.pop %v274
  %v282 = vmul.f32 1.0, %v281
  %v283 = vmul.f32 %v173, %v276
  %v284 = vmul.f32 %v176, %v278
  %v285 = vmul.f32 %v181, %v280
  %v286 = vmul.f32 %v184, %v282
  %v287 = vpack.c.bf16 %v284, %v283
  %v288 = vpack.c.bf16 %v286, %v285
  %v291 = vunpack.c.l.b16 %v287
  %v292 = vunpack.c.h.b16 %v287
  %v293 = vunpack.c.l.b16 %v288
  %v294 = vunpack.c.h.b16 %v288
  %v295 = vpack.c.b16 %v291, %v291
  %v296 = vpack.c.b16 %v292, %v292
  %v297 = vpack.c.b16 %v293, %v293
  %v298 = vpack.c.b16 %v294, %v294
  %vm303 = vcmask 257024
  %304 = vst.msk [vmem:[%s7] sm:$0xf] %vm303, %v295
  %305 = vst.msk [vmem:[%s7 + $0x4] sm:$0xf] %vm303, %v296
  %306 = vst.msk [vmem:[%s7 + $0x8] sm:$0xf] %vm303, %v297
  %307 = vst.msk [vmem:[%s7 + $0xc] sm:$0xf] %vm303, %v298
  // Predicated region
  $region30: #{conformer_forward.28} parent=0 // pred_check
    _
  $region31: #{conformer_forward.28} parent=0 // pred_check_branch
    %309 = sbr.rel (0) target = $region33
  $region32: #{conformer_forward.28} parent=0 // pred_region
    _
  $region33: #{conformer_forward.28} parent=0 // pred_fallthru
    _
  // Predicated region
  $region34: #{conformer_forward.28} parent=0 // pred_check
    _
  $region35: #{conformer_forward.28} parent=0 // pred_check_branch
    %311 = sbr.rel (0) target = $region37
  $region36: #{conformer_forward.28} parent=0 // pred_region
    _
  $region37: #{conformer_forward.28} parent=0 // pred_fallthru
    _

// kernel: conformer_forward.29
$region0: #{conformer_forward.29}
  #allocation0 [shape = 'u32[]', space=smem, size = 0x4, offset = 0x4, fixed_abs, tag = 'smem constant byte address 0x4 - core index']
  #allocation1 [shape = 'u32[144,128]{1,0:T(1,128)}', space=vmem, size = 0x12000, scoped, tag = 'internal scratch']
  %s0 = inlined_call_operand.vmem [shape: bf16[2,16,32], index: 0, kind: input, shape index: {}]
  %s1 = inlined_call_operand.vmem [shape: f32[7,32], index: 1, kind: input, shape index: {}]
  %s2 = inlined_call_operand.vmem [shape: f32[1,32], index: 2, kind: input, shape index: {}]
  %s3 = inlined_call_operand.vmem [shape: f32[1,32], index: 3, kind: input, shape index: {}]
  %s4 = inlined_call_operand.vmem [shape: bf16[2,16,32], index: 4, kind: output, shape index: {}]
  %s5 = sld [smem:[#allocation0]]
  $region49: #{conformer_forward.29} parent=0
    _
  %s7 = ssub.s32 1, %s5
  %s8 = scalar_select 0, %s7, %s5
  loop: start=0, step=1, limit=4
  $region2: #{conformer_forward.29} parent=0 // loop_pre_header
    _
  $region3: #{conformer_forward.29} parent=0 // loop_header
    %s10 = sphi 0, %s14
    %p11 = scmp.ge.s32.totalorder %s10, 4
    %s20 = sphi 0, %s22
    %s23 = sphi 0, %s20
    %s24 = sphi 0, %s23
    %s40 = sphi 0, %s24
    %s44 = sphi 0, %s44
    %s46 = sphi 0, %s44
    %s47 = sphi 0, %s46
    %s61 = sphi 0, %s47
    %s65 = sphi 0, %s65
    %s67 = sphi 0, %s65
    %s68 = sphi 0, %s67
    %s82 = sphi 0, %s68
    %s86 = sphi 0, %s86
    %s88 = sphi 0, %s86
    %s89 = sphi 0, %s88
    %s103 = sphi 0, %s89
    %s109 = sphi 0, %s111
    %s112 = sphi 0, %s109
    %s113 = sphi 0, %s112
    %s129 = sphi 0, %s113
  $region4: #{conformer_forward.29} parent=0 // loop_header_branch
    %13 = sbr.rel (%p11) target = $region8
  $region5: #{conformer_forward.29} parent=0 // loop_body
    %s15 = ssub.s32 %s10, 1
    %s16 = ssub.s32 %s10, 2
    %s17 = sadd.s32 %s10, 1
    %s18 = ssub.s32 %s10, %s17
    %p19 = scmp.eq.s32.totalorder %s18, 0
    %s21 = sadd.s32 %s20, 1
    %s22 = scalar_select %p19, %s20, %s21
    %p25 = pneg %p19
    %p26 = scmp.eq.s32.totalorder %s10, 1
    %p27 = por %p25, %p26
    %p28 = scmp.ne.s32.totalorder %s20, %s23
    %p29 = scmp.eq.s32.totalorder %s10, 0
    %p30 = por %p28, %p29
    %p31 = scmp.ne.s32.totalorder %s20, %s23
    %p32 = scmp.eq.s32.totalorder %s15, 1
    %p33 = por %p31, %p32
    %p34 = scmp.ne.s32.totalorder %s23, %s24
    %p35 = scmp.eq.s32.totalorder %s15, 0
    %p36 = por %p34, %p35
    %p37 = scmp.ne.s32.totalorder %s23, %s24
    %p38 = scmp.eq.s32.totalorder %s16, 1
    %p39 = por %p37, %p38
    %p41 = scmp.ne.s32.totalorder %s24, %s40
    %p42 = scmp.eq.s32.totalorder %s16, 0
    %p43 = por %p41, %p42
    %s45 = sadd.s32 %s44, 1
    %p48 = scmp.eq.s32.totalorder %s10, 1
    %p49 = scmp.ne.s32.totalorder %s44, %s46
    %p50 = scmp.eq.s32.totalorder %s10, 0
    %p51 = por %p49, %p50
    %p52 = scmp.ne.s32.totalorder %s44, %s46
    %p53 = scmp.eq.s32.totalorder %s15, 1
    %p54 = por %p52, %p53
    %p55 = scmp.ne.s32.totalorder %s46, %s47
    %p56 = scmp.eq.s32.totalorder %s15, 0
    %p57 = por %p55, %p56
    %p58 = scmp.ne.s32.totalorder %s46, %s47
    %p59 = scmp.eq.s32.totalorder %s16, 1
    %p60 = por %p58, %p59
    %p62 = scmp.ne.s32.totalorder %s47, %s61
    %p63 = scmp.eq.s32.totalorder %s16, 0
    %p64 = por %p62, %p63
    %s66 = sadd.s32 %s65, 1
    %p69 = scmp.eq.s32.totalorder %s10, 1
    %p70 = scmp.ne.s32.totalorder %s65, %s67
    %p71 = scmp.eq.s32.totalorder %s10, 0
    %p72 = por %p70, %p71
    %p73 = scmp.ne.s32.totalorder %s65, %s67
    %p74 = scmp.eq.s32.totalorder %s15, 1
    %p75 = por %p73, %p74
    %p76 = scmp.ne.s32.totalorder %s67, %s68
    %p77 = scmp.eq.s32.totalorder %s15, 0
    %p78 = por %p76, %p77
    %p79 = scmp.ne.s32.totalorder %s67, %s68
    %p80 = scmp.eq.s32.totalorder %s16, 1
    %p81 = por %p79, %p80
    %p83 = scmp.ne.s32.totalorder %s68, %s82
    %p84 = scmp.eq.s32.totalorder %s16, 0
    %p85 = por %p83, %p84
    %s87 = sadd.s32 %s86, 1
    %p90 = scmp.eq.s32.totalorder %s10, 1
    %p91 = scmp.ne.s32.totalorder %s86, %s88
    %p92 = scmp.eq.s32.totalorder %s10, 0
    %p93 = por %p91, %p92
    %p94 = scmp.ne.s32.totalorder %s86, %s88
    %p95 = scmp.eq.s32.totalorder %s15, 1
    %p96 = por %p94, %p95
    %p97 = scmp.ne.s32.totalorder %s88, %s89
    %p98 = scmp.eq.s32.totalorder %s15, 0
    %p99 = por %p97, %p98
    %p100 = scmp.ne.s32.totalorder %s88, %s89
    %p101 = scmp.eq.s32.totalorder %s16, 1
    %p102 = por %p100, %p101
    %p104 = scmp.ne.s32.totalorder %s89, %s103
    %p105 = scmp.eq.s32.totalorder %s16, 0
    %p106 = por %p104, %p105
    %s107 = ssub.s32 %s10, %s17
    %p108 = scmp.eq.s32.totalorder %s107, 0
    %s110 = sadd.s32 %s109, 1
    %s111 = scalar_select %p108, %s109, %s110
    %p114 = pneg %p108
    %p115 = scmp.eq.s32.totalorder %s10, 1
    %p116 = por %p114, %p115
    %p117 = scmp.ne.s32.totalorder %s109, %s112
    %p118 = scmp.eq.s32.totalorder %s10, 0
    %p119 = por %p117, %p118
    %p120 = scmp.ne.s32.totalorder %s109, %s112
    %p121 = scmp.eq.s32.totalorder %s15, 1
    %p122 = por %p120, %p121
    %p123 = scmp.ne.s32.totalorder %s112, %s113
    %p124 = scmp.eq.s32.totalorder %s15, 0
    %p125 = por %p123, %p124
    %p126 = scmp.ne.s32.totalorder %s112, %s113
    %p127 = scmp.eq.s32.totalorder %s16, 1
    %p128 = por %p126, %p127
    %p130 = scmp.ne.s32.totalorder %s113, %s129
    %p131 = scmp.eq.s32.totalorder %s16, 0
    %p132 = por %p130, %p131
    %p133 = scmp.le.s32.totalorder 1, %s10
    %p134 = scmp.lt.s32.totalorder %s10, 3
    %p135 = pnand %p133, %p134
    %p136 = pneg %p135
    // Predicated region
    $region9: #{conformer_forward.29} parent=5 // pred_check
      _
    $region10: #{conformer_forward.29} parent=5 // pred_check_branch
      %138 = sbr.rel (%p135) target = $region12
    $region11: #{conformer_forward.29} parent=5 // pred_region
      %s139 = ssub.s32 %s10, 1
      // Predicated region
      $region13: #{conformer_forward.29} parent=11 // pred_check
        %p140 = pneg %p57
      $region14: #{conformer_forward.29} parent=11 // pred_check_branch
        %142 = sbr.rel (%p140) target = $region16
      $region15: #{conformer_forward.29} parent=11 // pred_region
        _
      $region16: #{conformer_forward.29} parent=11 // pred_fallthru
        _
      // Predicated region
      $region17: #{conformer_forward.29} parent=11 // pred_check
        %p143 = pneg %p78
      $region18: #{conformer_forward.29} parent=11 // pred_check_branch
        %145 = sbr.rel (%p143) target = $region20
      $region19: #{conformer_forward.29} parent=11 // pred_region
        _
      $region20: #{conformer_forward.29} parent=11 // pred_fallthru
        _
      // Predicated region
      $region21: #{conformer_forward.29} parent=11 // pred_check
        %p146 = pneg %p99
      $region22: #{conformer_forward.29} parent=11 // pred_check_branch
        %148 = sbr.rel (%p146) target = $region24
      $region23: #{conformer_forward.29} parent=11 // pred_region
        _
      $region24: #{conformer_forward.29} parent=11 // pred_fallthru
        _
    $region12: #{conformer_forward.29} parent=5 // pred_fallthru
      _
    %p149 = scmp.lt.s32.totalorder %s10, 2
    // Predicated region
    $region25: #{conformer_forward.29} parent=5 // pred_check
      %p150 = pneg %p149
    $region26: #{conformer_forward.29} parent=5 // pred_check_branch
      %152 = sbr.rel (%p150) target = $region28
    $region27: #{conformer_forward.29} parent=5 // pred_region
      // Predicated region
      $region29: #{conformer_forward.29} parent=27 // pred_check
        %p153 = pneg %p30
      $region30: #{conformer_forward.29} parent=27 // pred_check_branch
        %155 = sbr.rel (%p153) target = $region32
      $region31: #{conformer_forward.29} parent=27 // pred_region
        %p156 = scmp.lt.s32.totalorder %s10, 1
        %s157 = scalar_select %p156, %s10, 1
        %s158 = smul.addr %s157, 2
        %s159 = smul.addr %s158, 4
        %s160 = scalar_lea.vmem %s0, %s159
      $region32: #{conformer_forward.29} parent=27 // pred_fallthru
        _
    $region28: #{conformer_forward.29} parent=5 // pred_fallthru
      _
    %p161 = scmp.le.s32.totalorder 1, %s10
    %p162 = scmp.lt.s32.totalorder %s10, 3
    %p163 = pnand %p161, %p162
    %p164 = pneg %p163
    // Predicated region
    $region33: #{conformer_forward.29} parent=5 // pred_check
      _
    $region34: #{conformer_forward.29} parent=5 // pred_check_branch
      %166 = sbr.rel (%p163) target = $region36
    $region35: #{conformer_forward.29} parent=5 // pred_region
      %s167 = ssub.s32 %s10, 1
      %p168 = scmp.lt.s32.totalorder %s15, 1
      %s169 = scalar_select %p168, %s15, 1
      %s170 = smul.addr %s169, 2
      %s171 = smul.addr %s170, 4
      %s172 = scalar_lea.vmem %s0, %s171
      %p173 = pneg %p36
      %p174 = pneg %p33
      %p175 = pneg %p57
      %p176 = pneg %p54
      %p177 = pneg %p78
      %p178 = pneg %p75
      %p179 = pneg %p99
      %p180 = pneg %p96
      %p181 = pneg %p125
      %p182 = pneg %p122
      %p183 = scmp.lt.s32.totalorder %s15, 1
      %s184 = scalar_select %p183, %s15, 1
      %s185 = smul.addr %s184, 2
      %s186 = smul.addr %s185, 4
      %s187 = scalar_lea.vmem %s4, %s186
      %p188 = scmp.lt.s32.totalorder %s15, 1
      %s189 = scalar_select %p188, %s15, 1
      %s190 = smul.addr %s189, 2
      %s191 = smul.addr %s190, 4
      %s192 = scalar_lea.vmem %s0, %s191
      %p193 = scmp.lt.s32.totalorder %s15, 1
      %s194 = scalar_select %p193, %s15, 1
      %s195 = smul.addr %s194, 2
      %s196 = smul.addr %s195, 4
      %s197 = scalar_lea.vmem %s4, %s196
      %v198 = vld [vmem:[%s192] sm:$0xf]
      %v199 = vld [vmem:[%s192 + $0x4] sm:$0xf]
      %v200 = vunpack.c.l.bf16 %v198
      %v201 = vunpack.c.l.bf16 %v199
      %vm204 = vcmask 1042432
      %v205 = vrot.slane %v200, 5
      %v206 = vrot.slane %v201, 5
      %v207 = vsel %vm204, %v205, %v206
      %v211 = vsel %vm204, 0.0, %v205
      %v212 = vsel %vm204, %v206, 0.0
      %v213 = vld [vmem:[%s1] sm:$0x7f]
      %v214 = vlaneseq
      %v215 = vshrl.u32 %v214, 7
      %v216 = vsub.s32 0, %v215
      %v217 = vrot.slane %v213, %v216
      %v218 = vmul.f32 %v211, %v217
      %v219 = vmul.f32 %v207, %v217
      %v220 = vlaneseq
      %v221 = vshrl.u32 %v220, 7
      %v222 = vsub.s32 1, %v221
      %v223 = vrot.slane %v213, %v222
      %v224 = vmul.f32 %v211, %v223
      %v225 = vmul.f32 %v207, %v223
      %v226 = vmul.f32 %v212, %v223
      %vm230 = vcmask 1046528
      %v231 = vrot.slane %v224, 1
      %v232 = vrot.slane %v225, 1
      %v233 = vsel %vm230, %v231, %v232
      %v234 = vrot.slane %v226, 1
      %v235 = vsel %vm230, %v232, %v234
      %v238 = vadd.f32 %v218, %v233
      %v239 = vadd.f32 %v219, %v235
      %v240 = vlaneseq
      %v241 = vshrl.u32 %v240, 7
      %v242 = vsub.s32 2, %v241
      %v243 = vrot.slane %v213, %v242
      %v244 = vmul.f32 %v211, %v243
      %v245 = vmul.f32 %v207, %v243
      %v246 = vmul.f32 %v212, %v243
      %vm250 = vcmask 1045504
      %v251 = vrot.slane %v244, 2
      %v252 = vrot.slane %v245, 2
      %v253 = vsel %vm250, %v251, %v252
      %v254 = vrot.slane %v246, 2
      %v255 = vsel %vm250, %v252, %v254
      %v258 = vadd.f32 %v238, %v253
      %v259 = vadd.f32 %v239, %v255
      %v260 = vlaneseq
      %v261 = vshrl.u32 %v260, 7
      %v262 = vsub.s32 3, %v261
      %v263 = vrot.slane %v213, %v262
      %v264 = vmul.f32 %v211, %v263
      %v265 = vmul.f32 %v207, %v263
      %v266 = vmul.f32 %v212, %v263
      %vm270 = vcmask 1044480
      %v271 = vrot.slane %v264, 3
      %v272 = vrot.slane %v265, 3
      %v273 = vsel %vm270, %v271, %v272
      %v274 = vrot.slane %v266, 3
      %v275 = vsel %vm270, %v272, %v274
      %v278 = vadd.f32 %v258, %v273
      %v279 = vadd.f32 %v259, %v275
      %v280 = vlaneseq
      %v281 = vshrl.u32 %v280, 7
      %v282 = vsub.s32 4, %v281
      %v283 = vrot.slane %v213, %v282
      %v284 = vmul.f32 %v211, %v283
      %v285 = vmul.f32 %v207, %v283
      %v286 = vmul.f32 %v212, %v283
      %vm290 = vcmask 1043456
      %v291 = vrot.slane %v284, 4
      %v292 = vrot.slane %v285, 4
      %v293 = vsel %vm290, %v291, %v292
      %v294 = vrot.slane %v286, 4
      %v295 = vsel %vm290, %v292, %v294
      %v298 = vadd.f32 %v278, %v293
      %v299 = vadd.f32 %v279, %v295
      %v300 = vlaneseq
      %v301 = vshrl.u32 %v300, 7
      %v302 = vsub.s32 5, %v301
      %v303 = vrot.slane %v213, %v302
      %v304 = vmul.f32 %v211, %v303
      %v305 = vmul.f32 %v207, %v303
      %v306 = vmul.f32 %v212, %v303
      %v310 = vrot.slane %v304, 5
      %v311 = vrot.slane %v305, 5
      %v312 = vsel %vm204, %v310, %v311
      %v313 = vrot.slane %v306, 5
      %v314 = vsel %vm204, %v311, %v313
      %v317 = vadd.f32 %v298, %v312
      %v318 = vadd.f32 %v299, %v314
      %v319 = vlaneseq
      %v320 = vshrl.u32 %v319, 7
      %v321 = vsub.s32 6, %v320
      %v322 = vrot.slane %v213, %v321
      %v323 = vmul.f32 %v211, %v322
      %v324 = vmul.f32 %v207, %v322
      %v325 = vmul.f32 %v212, %v322
      %vm329 = vcmask 1041408
      %v330 = vrot.slane %v323, 6
      %v331 = vrot.slane %v324, 6
      %v332 = vsel %vm329, %v330, %v331
      %v333 = vrot.slane %v325, 6
      %v334 = vsel %vm329, %v331, %v333
      %v337 = vadd.f32 %v317, %v332
      %v338 = vadd.f32 %v318, %v334
      %v339 = vld [vmem:[%s2] sm:$0x1]
      %v341 = vlaneseq
      %v342 = vshrl.u32 %v341, 7
      %v343 = vsub.s32 0, %v342
      %v344 = vrot.slane %v339, %v343
      %v346 = vmul.f32 %v337, %v344
      %v347 = vmul.f32 %v338, %v344
      %v348 = vld [vmem:[%s3] sm:$0x1]
      %v350 = vlaneseq
      %v351 = vshrl.u32 %v350, 7
      %v352 = vsub.s32 0, %v351
      %v353 = vrot.slane %v348, %v352
      %v355 = vadd.f32 %v346, %v353
      %v356 = vadd.f32 %v347, %v353
      %v357 = vxor.u32 %v355, 2147483648
      %v358 = vxor.u32 %v356, 2147483648
      %v359 = vmul.f32 %v357, 1.442695
      %v360 = vpow.pop %v359
      %v361 = vmul.f32 %v358, 1.442695
      %v362 = vpow.pop %v361
      %v363 = vadd.f32 %v360, 1.0
      %v364 = vadd.f32 %v362, 1.0
      %v365 = vrcp.pop %v363
      %v366 = vmul.f32 1.0, %v365
      %v367 = vrcp.pop %v364
      %v368 = vmul.f32 1.0, %v367
      %v369 = vmul.f32 %v355, %v366
      %v370 = vmul.f32 %v356, %v368
      %v371 = vpack.c.bf16 %v370, %v369
      %v373 = vunpack.c.l.b16 %v371
      %v374 = vunpack.c.h.b16 %v371
      %v375 = vpack.c.b16 %v373, %v373
      %v376 = vpack.c.b16 %v374, %v374
      %vm379 = vcmask 257024
      %380 = vst.msk [vmem:[%s197] sm:$0xf] %vm379, %v375
      %381 = vst.msk [vmem:[%s197 + $0x4] sm:$0xf] %vm379, %v376
      %p382 = scmp.lt.s32.totalorder %s15, 1
      %s383 = scalar_select %p382, %s15, 1
      %s384 = smul.addr %s383, 2
      %s385 = smul.addr %s384, 4
      %s386 = scalar_lea.vmem %s4, %s385
      // Predicated region
      $region37: #{conformer_forward.29} parent=35 // pred_check
        %p387 = pneg %p122
      $region38: #{conformer_forward.29} parent=35 // pred_check_branch
        %389 = sbr.rel (%p387) target = $region40
      $region39: #{conformer_forward.29} parent=35 // pred_region
        _
      $region40: #{conformer_forward.29} parent=35 // pred_fallthru
        _
    $region36: #{conformer_forward.29} parent=5 // pred_fallthru
      _
    %p390 = scmp.le.s32.totalorder 2, %s10
    // Predicated region
    $region41: #{conformer_forward.29} parent=5 // pred_check
      %p391 = pneg %p390
    $region42: #{conformer_forward.29} parent=5 // pred_check_branch
      %393 = sbr.rel (%p391) target = $region44
    $region43: #{conformer_forward.29} parent=5 // pred_region
      %s394 = ssub.s32 %s10, 2
      // Predicated region
      $region45: #{conformer_forward.29} parent=43 // pred_check
        %p395 = pneg %p128
      $region46: #{conformer_forward.29} parent=43 // pred_check_branch
        %397 = sbr.rel (%p395) target = $region48
      $region47: #{conformer_forward.29} parent=43 // pred_region
        %p398 = scmp.lt.s32.totalorder %s16, 1
        %s399 = scalar_select %p398, %s16, 1
        %s400 = smul.addr %s399, 2
        %s401 = smul.addr %s400, 4
        %s402 = scalar_lea.vmem %s4, %s401
      $region48: #{conformer_forward.29} parent=43 // pred_fallthru
        _
    $region44: #{conformer_forward.29} parent=5 // pred_fallthru
      _
  $region6: #{conformer_forward.29} parent=0 // loop_footer
    %s14 = sadd.s32 1, %s10
  $region7: #{conformer_forward.29} parent=0 // loop_footer_branch
    %9 = sbr.rel target = $region3
  $region8: #{conformer_forward.29} parent=0 // loop_exit
    _

// kernel: conformer_forward.43
$region0: #{conformer_forward.43}
  #allocation0 [shape = 'u32[]', space=smem, size = 0x4, offset = 0x4, fixed_abs, tag = 'smem constant byte address 0x4 - core index']
  #allocation1 [shape = 'u32[144,128]{1,0:T(1,128)}', space=vmem, size = 0x12000, scoped, tag = 'internal scratch']
  %s0 = inlined_call_operand.vmem [shape: f32[32,32], index: 0, kind: input, shape index: {}]
  %s1 = inlined_call_operand.vmem [shape: f32[1,32], index: 1, kind: input, shape index: {}]
  %s2 = inlined_call_operand.vmem [shape: f32[1,32], index: 2, kind: input, shape index: {}]
  %s3 = inlined_call_operand.hbm [shape: f32[32,32], index: 3, kind: output, shape index: {}]
  %s4 = sld [smem:[#allocation0]]
  $region22: #{conformer_forward.43} parent=0
    _
  %s6 = ssub.s32 1, %s4
  %s7 = scalar_select 0, %s6, %s4
  $region1: #{conformer_forward.43} parent=0
    #allocation2 [shape = 'u8[16384]{0}', space=vmem, size = 0x4000, scoped, tag = 'output window, operand 0, single buffered']
    #allocation3 [shape = 's32[1]{0}', space=sflag, size = 0x4, scoped, tag = 'scoped memory for conformer_forward.43']
    %8 = vsyncpa [#allocation3], 0
    // Predicated region
    $region2: #{conformer_forward.43} parent=1 // pred_check
      _
    $region3: #{conformer_forward.43} parent=1 // pred_check_branch
      %10 = sbr.rel (0) target = $region5
    $region4: #{conformer_forward.43} parent=1 // pred_region
      _
    $region5: #{conformer_forward.43} parent=1 // pred_fallthru
      _
    // Predicated region
    $region6: #{conformer_forward.43} parent=1 // pred_check
      _
    $region7: #{conformer_forward.43} parent=1 // pred_check_branch
      %12 = sbr.rel (0) target = $region9
    $region8: #{conformer_forward.43} parent=1 // pred_region
      _
    $region9: #{conformer_forward.43} parent=1 // pred_fallthru
      _
    // Predicated region
    $region10: #{conformer_forward.43} parent=1 // pred_check
      _
    $region11: #{conformer_forward.43} parent=1 // pred_check_branch
      %14 = sbr.rel (0) target = $region13
    $region12: #{conformer_forward.43} parent=1 // pred_region
      _
    $region13: #{conformer_forward.43} parent=1 // pred_fallthru
      _
    %v15 = vld [vmem:[%s0] sm:$0xff]
    %v16 = vld [vmem:[%s0 + $0x8] sm:$0xff]
    %v17 = vld [vmem:[%s0 + $0x10] sm:$0xff]
    %v18 = vld [vmem:[%s0 + $0x18] sm:$0xff]
    %vm19 = vcmask 261120
    %v20 = vsel %vm19, %v15, 0.0
    %21 = vadd.xlane.f32.xlu0 %v20
    %v22 = vpop.xlane.xlu0 %21
    %v23 = vsel %vm19, %v16, 0.0
    %24 = vadd.xlane.f32.xlu0 %v23
    %v25 = vpop.xlane.xlu0 %24
    %v26 = vsel %vm19, %v17, 0.0
    %27 = vadd.xlane.f32.xlu0 %v26
    %v28 = vpop.xlane.xlu0 %27
    %v29 = vsel %vm19, %v18, 0.0
    %30 = vadd.xlane.f32.xlu0 %v29
    %v31 = vpop.xlane.xlu0 %30
    %v32 = vrcp.pop 32.0
    %v33 = vmul.f32 %v22, %v32
    %v34 = vmul.f32 %v25, %v32
    %v35 = vmul.f32 %v28, %v32
    %v36 = vmul.f32 %v31, %v32
    %v37 = vsub.f32 %v15, %v33
    %v38 = vsub.f32 %v16, %v34
    %v39 = vsub.f32 %v17, %v35
    %v40 = vsub.f32 %v18, %v36
    %v41 = vmul.f32 %v37, %v37
    %v42 = vmul.f32 %v38, %v38
    %v43 = vmul.f32 %v39, %v39
    %v44 = vmul.f32 %v40, %v40
    %v45 = vsel %vm19, %v41, 0.0
    %46 = vadd.xlane.f32.xlu0 %v45
    %v47 = vpop.xlane.xlu0 %46
    %v48 = vsel %vm19, %v42, 0.0
    %49 = vadd.xlane.f32.xlu0 %v48
    %v50 = vpop.xlane.xlu0 %49
    %v51 = vsel %vm19, %v43, 0.0
    %52 = vadd.xlane.f32.xlu0 %v51
    %v53 = vpop.xlane.xlu0 %52
    %v54 = vsel %vm19, %v44, 0.0
    %55 = vadd.xlane.f32.xlu0 %v54
    %v56 = vpop.xlane.xlu0 %55
    %v57 = vmul.f32 %v47, %v32
    %v58 = vmul.f32 %v50, %v32
    %v59 = vmul.f32 %v53, %v32
    %v60 = vmul.f32 %v56, %v32
    %v61 = vadd.f32 %v57, 1e-12
    %v62 = vadd.f32 %v58, 1e-12
    %v63 = vadd.f32 %v59, 1e-12
    %v64 = vadd.f32 %v60, 1e-12
    %v65 = vrsqrt.pop %v61
    %v66 = vrsqrt.pop %v62
    %v67 = vrsqrt.pop %v63
    %v68 = vrsqrt.pop %v64
    %v69 = vmul.f32 %v37, %v65
    %v70 = vmul.f32 %v38, %v66
    %v71 = vmul.f32 %v39, %v67
    %v72 = vmul.f32 %v40, %v68
    %v73 = vld [vmem:[%s1] sm:$0x1]
    %v75 = vlaneseq
    %v76 = vshrl.u32 %v75, 7
    %v77 = vsub.s32 0, %v76
    %v78 = vrot.slane %v73, %v77
    %v80 = vmul.f32 %v69, %v78
    %v81 = vmul.f32 %v70, %v78
    %v82 = vmul.f32 %v71, %v78
    %v83 = vmul.f32 %v72, %v78
    %v84 = vld [vmem:[%s2] sm:$0x1]
    %v86 = vlaneseq
    %v87 = vshrl.u32 %v86, 7
    %v88 = vsub.s32 0, %v87
    %v89 = vrot.slane %v84, %v88
    %v91 = vadd.f32 %v80, %v89
    %v92 = vadd.f32 %v81, %v89
    %v93 = vadd.f32 %v82, %v89
    %v94 = vadd.f32 %v83, %v89
    %95 = vst.msk [vmem:[#allocation2] sm:$0xff] %vm19, %v91
    %96 = vst.msk [vmem:[#allocation2 + $0x8] sm:$0xff] %vm19, %v92
    %97 = vst.msk [vmem:[#allocation2 + $0x10] sm:$0xff] %vm19, %v93
    %98 = vst.msk [vmem:[#allocation2 + $0x18] sm:$0xff] %vm19, %v94
    // Predicated region
    $region14: #{conformer_forward.43} parent=1 // pred_check
      _
    $region15: #{conformer_forward.43} parent=1 // pred_check_branch
      %100 = sbr.rel (0) target = $region17
    $region16: #{conformer_forward.43} parent=1 // pred_region
      %s102 = ssub.s32 512, 512
      %103 = vsyncadd [#allocation3], %s102
      %s104 = sshll.u32 [#allocation2], 4
      %s105 = int_to_ptr.vmem [resolvable:$true] %s104
      %110 = dma.vmem_to_hbm [thread:$0]  %s105, 512, %s3, [#allocation3], 128, 128, 8
    $region17: #{conformer_forward.43} parent=1 // pred_fallthru
      _
    // Predicated region
    $region18: #{conformer_forward.43} parent=1 // pred_check
      _
    $region19: #{conformer_forward.43} parent=1 // pred_check_branch
      %112 = sbr.rel (0) target = $region21
    $region20: #{conformer_forward.43} parent=1 // pred_region
      %113 = dma.done [#allocation3], 512
    $region21: #{conformer_forward.43} parent=1 // pred_fallthru
      _
    %114 = vsyncpa [#allocation3], 1

// kernel: conformer_forward.32
$region0: #{conformer_forward.32}
  #allocation0 [shape = 'u32[]', space=smem, size = 0x4, offset = 0x4, fixed_abs, tag = 'smem constant byte address 0x4 - core index']
  #allocation1 [shape = 'u32[144,128]{1,0:T(1,128)}', space=vmem, size = 0x12000, scoped, tag = 'internal scratch']
  %s0 = inlined_call_operand.vmem [shape: bf16[32,64], index: 0, kind: input, shape index: {}]
  %s1 = inlined_call_operand.vmem [shape: bf16[64,32], index: 1, kind: input, shape index: {}]
  %s2 = inlined_call_operand.vmem [shape: f32[1,32], index: 2, kind: input, shape index: {}]
  %s3 = inlined_call_operand.vmem [shape: f32[32,32], index: 3, kind: input, shape index: {}]
  %s4 = inlined_call_operand.vmem [shape: f32[1,32], index: 4, kind: input, shape index: {}]
  %s5 = inlined_call_operand.vmem [shape: f32[1,32], index: 5, kind: input, shape index: {}]
  %s6 = inlined_call_operand.vmem [shape: f32[32,32], index: 6, kind: output, shape index: {}]
  %s7 = sld [smem:[#allocation0]]
  $region34: #{conformer_forward.32} parent=0
    _
  %s9 = ssub.s32 1, %s7
  %s10 = scalar_select 0, %s9, %s7
  // Predicated region
  $region2: #{conformer_forward.32} parent=0 // pred_check
    _
  $region3: #{conformer_forward.32} parent=0 // pred_check_branch
    %12 = sbr.rel (0) target = $region5
  $region4: #{conformer_forward.32} parent=0 // pred_region
    _
  $region5: #{conformer_forward.32} parent=0 // pred_fallthru
    _
  // Predicated region
  $region6: #{conformer_forward.32} parent=0 // pred_check
    _
  $region7: #{conformer_forward.32} parent=0 // pred_check_branch
    %14 = sbr.rel (0) target = $region9
  $region8: #{conformer_forward.32} parent=0 // pred_region
    _
  $region9: #{conformer_forward.32} parent=0 // pred_fallthru
    _
  // Predicated region
  $region10: #{conformer_forward.32} parent=0 // pred_check
    _
  $region11: #{conformer_forward.32} parent=0 // pred_check_branch
    %16 = sbr.rel (0) target = $region13
  $region12: #{conformer_forward.32} parent=0 // pred_region
    _
  $region13: #{conformer_forward.32} parent=0 // pred_fallthru
    _
  // Predicated region
  $region14: #{conformer_forward.32} parent=0 // pred_check
    _
  $region15: #{conformer_forward.32} parent=0 // pred_check_branch
    %18 = sbr.rel (0) target = $region17
  $region16: #{conformer_forward.32} parent=0 // pred_region
    _
  $region17: #{conformer_forward.32} parent=0 // pred_fallthru
    _
  // Predicated region
  $region18: #{conformer_forward.32} parent=0 // pred_check
    _
  $region19: #{conformer_forward.32} parent=0 // pred_check_branch
    %20 = sbr.rel (0) target = $region21
  $region20: #{conformer_forward.32} parent=0 // pred_region
    _
  $region21: #{conformer_forward.32} parent=0 // pred_fallthru
    _
  // Predicated region
  $region22: #{conformer_forward.32} parent=0 // pred_check
    _
  $region23: #{conformer_forward.32} parent=0 // pred_check_branch
    %22 = sbr.rel (0) target = $region25
  $region24: #{conformer_forward.32} parent=0 // pred_region
    _
  $region25: #{conformer_forward.32} parent=0 // pred_fallthru
    _
  %v24 = vld [vmem:[%s0] sm:$0xf]
  %v25 = vld [vmem:[%s0 + $0x4] sm:$0xf]
  %v26 = vld [vmem:[%s0 + $0x8] sm:$0xf]
  %v27 = vld [vmem:[%s0 + $0xc] sm:$0xf]
  %v28 = vld [vmem:[%s1] sm:$0xf]
  %v29 = vld [vmem:[%s1 + $0x4] sm:$0xf]
  %v30 = vld [vmem:[%s1 + $0x8] sm:$0xf]
  %v31 = vld [vmem:[%s1 + $0xc] sm:$0xf]
  %v32 = vld [vmem:[%s1 + $0x10] sm:$0xf]
  %v33 = vld [vmem:[%s1 + $0x14] sm:$0xf]
  %v34 = vld [vmem:[%s1 + $0x18] sm:$0xf]
  %v35 = vld [vmem:[%s1 + $0x1c] sm:$0xf]
  %v36 = vld [vmem:[%s2] sm:$0x1]
  %v38 = vlaneseq
  %v39 = vshrl.u32 %v38, 7
  %v40 = vsub.s32 0, %v39
  %v41 = vrot.slane %v36, %v40
  %v47 = vunpack.c.l.b16 %v24
  %v48 = vunpack.c.l.b16 %v25
  %v49 = vunpack.c.l.b16 %v26
  %v50 = vunpack.c.l.b16 %v27
  %v51 = vpack.c.b16 %v48, %v47
  %v52 = vpack.c.b16 %v50, %v49
  %v61 = vunpack.c.l.b16 %v28
  %v62 = vunpack.c.l.b16 %v29
  %v63 = vunpack.c.l.b16 %v30
  %v64 = vunpack.c.l.b16 %v31
  %v65 = vunpack.c.l.b16 %v32
  %v66 = vunpack.c.l.b16 %v33
  %v67 = vunpack.c.l.b16 %v34
  %v68 = vunpack.c.l.b16 %v35
  %v69 = vpack.c.b16 %v62, %v61
  %v70 = vpack.c.b16 %v64, %v63
  %v71 = vpack.c.b16 %v66, %v65
  %v72 = vpack.c.b16 %v68, %v67
  %vm77 = vcmask 523264
  %v79 = vsel %vm77, %v51, 0
  %v82 = vsel %vm77, %v52, 0
  %84 = vmatprep.subr.bf16.mxu0 0
  %85 = vmatpush1.bf16.msra.mxu0 0
  %86 = vmatprep.subr.bf16.mxu0 0
  %87 = vmatpush1.bf16.msra.mxu0 0
  %88 = vmatprep.subr.bf16.mxu0 0
  %89 = vmatpush1.bf16.msra.mxu0 0
  %90 = vmatprep.subr.bf16.mxu0 0
  %91 = vmatpush1.bf16.msra.mxu0 0
  %92 = vmatprep.subr.bf16.mxu0 0
  %93 = vmatpush1.bf16.msra.mxu0 %v72
  %94 = vmatprep.subr.bf16.mxu0 0
  %95 = vmatpush1.bf16.msra.mxu0 %v71
  %96 = vmatprep.subr.bf16.mxu0 0
  %97 = vmatpush1.bf16.msra.mxu0 %v70
  %98 = vmatprep.subr.bf16.mxu0 0
  %99 = vmatpush1.bf16.msra.mxu0 %v69
  %100 = vmatprep.subr.bf16.mxu0 0
  %101 = vmatpush2.bf16.msra.mxu0 0
  %102 = vmatprep.subr.bf16.mxu0 0
  %103 = vmatpush2.bf16.msra.mxu0 0
  %104 = vmatprep.subr.bf16.mxu0 0
  %105 = vmatpush2.bf16.msra.mxu0 0
  %106 = vmatprep.subr.bf16.mxu0 0
  %107 = vmatpush2.bf16.msra.mxu0 0
  %108 = vmatprep.subr.bf16.mxu0 0
  %109 = vmatpush2.bf16.msra.mxu0 0
  %110 = vmatprep.subr.bf16.mxu0 0
  %111 = vmatpush2.bf16.msra.mxu0 0
  %112 = vmatprep.subr.bf16.mxu0 0
  %113 = vmatpush2.bf16.msra.mxu0 0
  %114 = vmatprep.subr.bf16.mxu0 0
  %115 = vmatpush2.bf16.msra.mxu0 0
  %116 = vmatprep.mubr.bf16.mxu0 0
  %117 = vmatmul.mubr.bf16.gmra.mxu0 %v79
  %v118 = vpop.f32.mrf.mxu0
  %v119 = vadd.f32 %v41, %v118
  %v120 = vpop.f32.mrf.mxu0
  %v121 = vpop.f32.mrf.mxu0
  %v122 = vadd.f32 %v41, %v121
  %v123 = vpop.f32.mrf.mxu0
  %124 = vmatprep.mubr.bf16.mxu0 0
  %125 = vmatmul.mubr.bf16.gmra.mxu0 %v82
  %v126 = vpop.f32.mrf.mxu0
  %v127 = vadd.f32 %v41, %v126
  %v128 = vpop.f32.mrf.mxu0
  %v129 = vpop.f32.mrf.mxu0
  %v130 = vadd.f32 %v41, %v129
  %v131 = vpop.f32.mrf.mxu0
  %132 = vdwg.mxu0
  %v133 = vld [vmem:[%s3] sm:$0xff]
  %v134 = vld [vmem:[%s3 + $0x8] sm:$0xff]
  %v135 = vld [vmem:[%s3 + $0x10] sm:$0xff]
  %v136 = vld [vmem:[%s3 + $0x18] sm:$0xff]
  %v137 = vmul.f32 %v119, 0.5
  %v138 = vmul.f32 %v122, 0.5
  %v139 = vmul.f32 %v127, 0.5
  %v140 = vmul.f32 %v130, 0.5
  %v141 = vadd.f32 %v133, %v137
  %v142 = vadd.f32 %v134, %v138
  %v143 = vadd.f32 %v135, %v139
  %v144 = vadd.f32 %v136, %v140
  %vm145 = vcmask 261120
  %v146 = vsel %vm145, %v141, 0.0
  %147 = vadd.xlane.f32.xlu0 %v146
  %v148 = vpop.xlane.xlu0 %147
  %v149 = vsel %vm145, %v142, 0.0
  %150 = vadd.xlane.f32.xlu0 %v149
  %v151 = vpop.xlane.xlu0 %150
  %v152 = vsel %vm145, %v143, 0.0
  %153 = vadd.xlane.f32.xlu0 %v152
  %v154 = vpop.xlane.xlu0 %153
  %v155 = vsel %vm145, %v144, 0.0
  %156 = vadd.xlane.f32.xlu0 %v155
  %v157 = vpop.xlane.xlu0 %156
  %v158 = vrcp.pop 32.0
  %v159 = vmul.f32 %v148, %v158
  %v160 = vmul.f32 %v151, %v158
  %v161 = vmul.f32 %v154, %v158
  %v162 = vmul.f32 %v157, %v158
  %v163 = vsub.f32 %v141, %v159
  %v164 = vsub.f32 %v142, %v160
  %v165 = vsub.f32 %v143, %v161
  %v166 = vsub.f32 %v144, %v162
  %v167 = vmul.f32 %v163, %v163
  %v168 = vmul.f32 %v164, %v164
  %v169 = vmul.f32 %v165, %v165
  %v170 = vmul.f32 %v166, %v166
  %v171 = vsel %vm145, %v167, 0.0
  %172 = vadd.xlane.f32.xlu0 %v171
  %v173 = vpop.xlane.xlu0 %172
  %v174 = vsel %vm145, %v168, 0.0
  %175 = vadd.xlane.f32.xlu0 %v174
  %v176 = vpop.xlane.xlu0 %175
  %v177 = vsel %vm145, %v169, 0.0
  %178 = vadd.xlane.f32.xlu0 %v177
  %v179 = vpop.xlane.xlu0 %178
  %v180 = vsel %vm145, %v170, 0.0
  %181 = vadd.xlane.f32.xlu0 %v180
  %v182 = vpop.xlane.xlu0 %181
  %v183 = vmul.f32 %v173, %v158
  %v184 = vmul.f32 %v176, %v158
  %v185 = vmul.f32 %v179, %v158
  %v186 = vmul.f32 %v182, %v158
  %v187 = vadd.f32 %v183, 1e-12
  %v188 = vadd.f32 %v184, 1e-12
  %v189 = vadd.f32 %v185, 1e-12
  %v190 = vadd.f32 %v186, 1e-12
  %v191 = vrsqrt.pop %v187
  %v192 = vrsqrt.pop %v188
  %v193 = vrsqrt.pop %v189
  %v194 = vrsqrt.pop %v190
  %v195 = vmul.f32 %v163, %v191
  %v196 = vmul.f32 %v164, %v192
  %v197 = vmul.f32 %v165, %v193
  %v198 = vmul.f32 %v166, %v194
  %v199 = vld [vmem:[%s4] sm:$0x1]
  %v201 = vlaneseq
  %v202 = vshrl.u32 %v201, 7
  %v203 = vsub.s32 0, %v202
  %v204 = vrot.slane %v199, %v203
  %v206 = vmul.f32 %v195, %v204
  %v207 = vmul.f32 %v196, %v204
  %v208 = vmul.f32 %v197, %v204
  %v209 = vmul.f32 %v198, %v204
  %v210 = vld [vmem:[%s5] sm:$0x1]
  %v212 = vlaneseq
  %v213 = vshrl.u32 %v212, 7
  %v214 = vsub.s32 0, %v213
  %v215 = vrot.slane %v210, %v214
  %v217 = vadd.f32 %v206, %v215
  %v218 = vadd.f32 %v207, %v215
  %v219 = vadd.f32 %v208, %v215
  %v220 = vadd.f32 %v209, %v215
  %221 = vst.msk [vmem:[%s6] sm:$0xff] %vm145, %v217
  %222 = vst.msk [vmem:[%s6 + $0x8] sm:$0xff] %vm145, %v218
  %223 = vst.msk [vmem:[%s6 + $0x10] sm:$0xff] %vm145, %v219
  %224 = vst.msk [vmem:[%s6 + $0x18] sm:$0xff] %vm145, %v220
  // Predicated region
  $region26: #{conformer_forward.32} parent=0 // pred_check
    _
  $region27: #{conformer_forward.32} parent=0 // pred_check_branch
    %226 = sbr.rel (0) target = $region29
  $region28: #{conformer_forward.32} parent=0 // pred_region
    _
  $region29: #{conformer_forward.32} parent=0 // pred_fallthru
    _
  // Predicated region
  $region30: #{conformer_forward.32} parent=0 // pred_check
    _
  $region31: #{conformer_forward.32} parent=0 // pred_check_branch
    %228 = sbr.rel (0) target = $region33
  $region32: #{conformer_forward.32} parent=0 // pred_region
    _
  $region33: #{conformer_forward.32} parent=0 // pred_fallthru
    _

</llo_original>
